<compile_context>
chip_gen: v6e
topology: v6e:2x2x1
jax: 0.10.0
libtpu: 0.0.40
codegen_flags: <defaults>
</compile_context>

<pallas_src>
import functools
import math

import jax
import jax.numpy as jnp
from jax.experimental import pallas as pl
from jax.experimental.pallas import tpu as pltpu

MODES = 16    # module global `modes`
WIDTH = 64    # module global `width`
BN_EPS = 1e-5
N_LAYERS = 4


# --------------------------------------------------------------------------
# Pallas kernel: one grid step == one FNO layer (fc0 / head gated by pl.when)
# --------------------------------------------------------------------------

def _fno_layer_kernel(x_ref, fc0w_ref, fc0b_ref, f_ref, g_ref,
                      wblk_ref, wk_ref, bk_ref, gamma_ref, beta_ref,
                      fc1w_ref, fc1b_ref, fc2w_ref, fc2b_ref,
                      o_ref, h_ref, *, batch, n_spatial, n_modes, width):
    """One FNO layer on a lane-dense spatial-major (N, B*C) slab.

    x_ref:      (N, B*2)       input slab, columns ordered (b, i)
    fc0w:       (B*2, B*C)     block-diagonal lifted fc0 weight; fc0b (1, B*C)
    f_ref:      (2M, N)        stacked ortho rfft bases [cos; sin]
    g_ref:      (N, 2M)        stacked ortho irfft bases [cos | sin] (folded)
    wblk:       (L, M, 2C, 2C) block-complex spectral weights (bf16)
    wk:         (L, B*C, B*C)  block-diagonal 1x1-conv weights; bk (L,1,B*C)
    gamma/beta: (L, 1, B*C)    BN affine params tiled across batch lanes
    fc1w/fc2w:  block-diagonal head weights; o_ref (N, B)
    h_ref:      (N, B*C)       f32 VMEM scratch carrying the activation
    """
    l = pl.program_id(0)
    B, N, M, C = batch, n_spatial, n_modes, width

    # ---- fc0 (first grid step only) ----
    @pl.when(l == 0)
    def _():
        h_ref[...] = (jnp.dot(x_ref[...], fc0w_ref[...],
                              preferred_element_type=jnp.float32)
                      + fc0b_ref[...])

    h = h_ref[...]                                                    # (N, B*C)

    # ---- SpectralConv1d: stacked forward DFT (one MXU matmul) ----
    xri = jnp.dot(f_ref[...], h, preferred_element_type=jnp.float32)  # (2M, B*C)
    xr = xri[:M].reshape(M, B, C)
    xi = xri[M:].reshape(M, B, C)
    xin = jnp.concatenate([xr, xi], axis=-1).astype(jnp.bfloat16)     # (M, B, 2C)

    # Per-mode block-complex channel mixing on the MXU:
    #   [yr | yi] = [xr | xi] @ [[wr, wi], [-wi, wr]]   (per mode, 2C x 2C)
    yout = jnp.einsum('mbi,mio->mbo', xin, wblk_ref[0],
                      preferred_element_type=jnp.float32)             # (M, B, 2C)
    yr = yout[:, :, :C].reshape(M, B * C)
    yi = yout[:, :, C:].reshape(M, B * C)
    yri = jnp.concatenate([yr, yi], axis=0)                           # (2M, B*C)

    # Stacked inverse DFT of the (zero-padded) truncated spectrum.
    spec = jnp.dot(g_ref[...], yri, preferred_element_type=jnp.float32)  # (N, B*C)

    # ---- 1x1 Conv skip over the lane-dense slab (block-diagonal weight) ----
    skip = jnp.dot(h, wk_ref[0], preferred_element_type=jnp.float32) + bk_ref[0]

    z = spec + skip                                                   # (N, B*C)

    # ---- BatchNorm1d (training-mode biased stats over batch & spatial) ----
    s1 = jnp.sum(z, axis=0, keepdims=True)                            # (1, B*C)
    s2 = jnp.sum(z * z, axis=0, keepdims=True)
    t1, t2 = s1, s2
    for k in range(1, B):                 # fold stats across batch lane-blocks
        t1 = t1 + pltpu.roll(s1, shift=k * C, axis=1)
        t2 = t2 + pltpu.roll(s2, shift=k * C, axis=1)
    inv_n = 1.0 / (B * N)
    mean = t1 * inv_n
    var = t2 * inv_n - mean * mean
    scale = gamma_ref[0] * jax.lax.rsqrt(var + BN_EPS)
    z = (z - mean) * scale + beta_ref[0]

    # ---- ReLU + carry for next layer (all but last) ----
    @pl.when(l < N_LAYERS - 1)
    def _():
        h_ref[...] = jnp.maximum(z, 0.0)

    # ---- head: fc1 -> relu -> fc2 (last grid step only) ----
    @pl.when(l == N_LAYERS - 1)
    def _():
        t = jnp.maximum(
            jnp.dot(z, fc1w_ref[...],
                    preferred_element_type=jnp.float32) + fc1b_ref[...], 0.0)
        o_ref[...] = (jnp.dot(t, fc2w_ref[...],
                              preferred_element_type=jnp.float32)
                      + fc2b_ref[...])                                # (N, B)


# --------------------------------------------------------------------------
# One-time preparation: stacked DFT bases + kernel-ready weights
# --------------------------------------------------------------------------

def prepare_inputs(p, n, batch):
    c, m, b = WIDTH, MODES, batch

    # Ortho rfft / irfft bases, truncated to m modes, Hermitian-folded, stacked.
    n_idx = jnp.arange(n, dtype=jnp.float32)
    k_idx = jnp.arange(m, dtype=jnp.float32)
    ang = 2.0 * jnp.pi * k_idx[:, None] * n_idx[None, :] / n          # (M, N)
    s = 1.0 / jnp.sqrt(jnp.float32(n))
    fcos = jnp.cos(ang) * s
    fsin = -jnp.sin(ang) * s
    ck = jnp.where(jnp.arange(m) == 0, 1.0, 2.0).astype(jnp.float32)  # fold factor
    gcos = (jnp.cos(ang) * ck[:, None] * s).T                         # (N, M)
    gsin = (-jnp.sin(ang) * ck[:, None] * s).T
    f_stk = jnp.concatenate([fcos, fsin], axis=0)                     # (2M, N)
    g_stk = jnp.concatenate([gcos, gsin], axis=1)                     # (N, 2M)

    def bdiag(w):          # (i, o) -> (b*i, b*o) batch-block-diagonal
        return jax.scipy.linalg.block_diag(*([w] * b))

    def btile(v):          # (o,) -> (1, b*o) tiled across batch lane-blocks
        return jnp.tile(v, b)[None, :]

    wblk, wk, bk, gamma, beta = [], [], [], [], []
    for l in range(N_LAYERS):
        wc = p[f"conv{l}_w"]                            # (C_in, C_out, M, 2)
        wr = jnp.transpose(wc[..., 0], (2, 0, 1))       # (M, C_in, C_out)
        wi = jnp.transpose(wc[..., 1], (2, 0, 1))
        top = jnp.concatenate([wr, wi], axis=-1)        # rows for xr
        bot = jnp.concatenate([-wi, wr], axis=-1)       # rows for xi
        wblk.append(jnp.concatenate([top, bot], axis=-2))   # (M, 2C, 2C)
        wk.append(bdiag(p[f"w{l}_w"].T))                # (B*C, B*C)
        bk.append(btile(p[f"w{l}_b"]))
        gamma.append(btile(p[f"bn{l}_gamma"]))
        beta.append(btile(p[f"bn{l}_beta"]))

    return dict(
        fc0_w=bdiag(p["fc0_w"].T), fc0_b=btile(p["fc0_b"]),
        f=f_stk, g=g_stk,
        wblk=jnp.stack(wblk).astype(jnp.bfloat16),      # bf16: 93% of bytes
        wk=jnp.stack(wk), bk=jnp.stack(bk),
        gamma=jnp.stack(gamma), beta=jnp.stack(beta),
        fc1_w=bdiag(p["fc1_w"].T), fc1_b=btile(p["fc1_b"]),
        fc2_w=bdiag(p["fc2_w"].T), fc2_b=btile(p["fc2_b"]),
    )


# --------------------------------------------------------------------------
# Forward wrapper (layer-pipelined pallas_call)
# --------------------------------------------------------------------------

def simple_block1d_pallas(x, prep):
    """x: (B, N, 2) float32 -> (B, N, 1) float32."""
    batch, n, nin = x.shape
    m, c = MODES, WIDTH
    bc = batch * c
    assert 2 * m <= n, "need modes <= n//2 (no Nyquist bin among kept modes)"

    # Lane-dense spatial-major slab: (N, B*2), columns ordered (b, i).
    x2 = jnp.transpose(x, (1, 0, 2)).reshape(n, batch * nin)

    kernel = functools.partial(_fno_layer_kernel, batch=batch,
                               n_spatial=n, n_modes=m, width=c)

    def inv(shape):        # grid-invariant full-array block (DMA'd once)
        nd = len(shape)
        return pl.BlockSpec(shape, lambda l: (0,) * nd)

    in_specs = [
        inv(x2.shape),
        inv(prep["fc0_w"].shape), inv(prep["fc0_b"].shape),
        inv(prep["f"].shape), inv(prep["g"].shape),
        # per-layer weights: pipelined (layer l+1 prefetched during layer l)
        pl.BlockSpec((1, m, 2 * c, 2 * c), lambda l: (l, 0, 0, 0)),
        pl.BlockSpec((1, bc, bc), lambda l: (l, 0, 0)),
        pl.BlockSpec((1, 1, bc), lambda l: (l, 0, 0)),
        pl.BlockSpec((1, 1, bc), lambda l: (l, 0, 0)),
        pl.BlockSpec((1, 1, bc), lambda l: (l, 0, 0)),
        inv(prep["fc1_w"].shape), inv(prep["fc1_b"].shape),
        inv(prep["fc2_w"].shape), inv(prep["fc2_b"].shape),
    ]

    out = pl.pallas_call(
        kernel,
        out_shape=jax.ShapeDtypeStruct((n, batch), jnp.float32),
        grid_spec=pltpu.PrefetchScalarGridSpec(
            num_scalar_prefetch=0,
            grid=(N_LAYERS,),
            in_specs=in_specs,
            out_specs=pl.BlockSpec((n, batch), lambda l: (0, 0)),
            scratch_shapes=[pltpu.VMEM((n, bc), jnp.float32)],
        ),
        compiler_params=pltpu.CompilerParams(
            dimension_semantics=("arbitrary",)),
    )(x2, prep["fc0_w"], prep["fc0_b"], prep["f"], prep["g"],
      prep["wblk"], prep["wk"], prep["bk"], prep["gamma"], prep["beta"],
      prep["fc1_w"], prep["fc1_b"], prep["fc2_w"], prep["fc2_b"])

    return jnp.transpose(out, (1, 0))[:, :, None]                     # (B, N, 1)


# --------------------------------------------------------------------------
# Pure-JAX reference (PyTorch layout / semantics) for verification
# --------------------------------------------------------------------------

def _spectral_conv_ref(x, w_complex, n_modes):
    b, c, n = x.shape
    x_ft = jnp.fft.rfft(x, axis=-1, norm="ortho")
    out_modes = jnp.einsum("bik,iok->bok", x_ft[:, :, :n_modes], w_complex)
    out_ft = jnp.zeros((b, w_complex.shape[1], n // 2 + 1), dtype=jnp.complex64)
    out_ft = out_ft.at[:, :, :n_modes].set(out_modes)
    # old torch.irfft (onesided C2R) ignores the imaginary part of the DC bin
    out_ft = out_ft.at[:, :, 0].set(jnp.real(out_ft[:, :, 0]).astype(jnp.complex64))
    return jnp.fft.irfft(out_ft, n=n, axis=-1, norm="ortho")


def simple_block1d_reference(x, p):
    h = x @ p["fc0_w"].T + p["fc0_b"]
    h = jnp.transpose(h, (0, 2, 1))                          # (B, C, N)
    for layer, relu in zip(range(N_LAYERS), (True, True, True, False)):
        wcplx = p[f"conv{layer}_w"]
        w_complex = wcplx[..., 0] + 1j * wcplx[..., 1]
        x1 = _spectral_conv_ref(h, w_complex, MODES)
        x2 = (jnp.einsum("oi,bin->bon", p[f"w{layer}_w"], h)
              + p[f"w{layer}_b"][None, :, None])
        z = x1 + x2
        mean = jnp.mean(z, axis=(0, 2), keepdims=True)
        var = jnp.mean((z - mean) ** 2, axis=(0, 2), keepdims=True)
        z = (z - mean) / jnp.sqrt(var + BN_EPS)
        z = z * p[f"bn{layer}_gamma"][None, :, None] + p[f"bn{layer}_beta"][None, :, None]
        h = jnp.maximum(z, 0.0) if relu else z
    h = jnp.transpose(h, (0, 2, 1))                          # (B, N, C)
    h = jnp.maximum(h @ p["fc1_w"].T + p["fc1_b"], 0.0)
    return h @ p["fc2_w"].T + p["fc2_b"]


# --------------------------------------------------------------------------
# Deterministic parameter init (shapes from SimpleBlock1d.__init__)
# --------------------------------------------------------------------------

def init_params(key):
    c, m = WIDTH, MODES
    p = {}

    def uni(k, shape, bound):
        return jax.random.uniform(k, shape, jnp.float32, -bound, bound)

    keys = iter(jax.random.split(key, 40))
    p["fc0_w"] = uni(next(keys), (c, 2), 1.0 / math.sqrt(2.0))
    p["fc0_b"] = uni(next(keys), (c,), 1.0 / math.sqrt(2.0))
    for layer in range(N_LAYERS):
        p[f"conv{layer}_w"] = (1.0 / (c * c)) * jax.random.uniform(
            next(keys), (c, c, m, 2), jnp.float32)           # scale * rand(.)
        p[f"w{layer}_w"] = uni(next(keys), (c, c), 1.0 / math.sqrt(c))  # Conv1d k=1
        p[f"w{layer}_b"] = uni(next(keys), (c,), 1.0 / math.sqrt(c))
        p[f"bn{layer}_gamma"] = jnp.ones((c,), jnp.float32)
        p[f"bn{layer}_beta"] = jnp.zeros((c,), jnp.float32)
    p["fc1_w"] = uni(next(keys), (128, c), 1.0 / math.sqrt(c))
    p["fc1_b"] = uni(next(keys), (128,), 1.0 / math.sqrt(c))
    p["fc2_w"] = uni(next(keys), (1, 128), 1.0 / math.sqrt(128.0))
    p["fc2_b"] = uni(next(keys), (1,), 1.0 / math.sqrt(128.0))
    return p


if __name__ == "__main__":
    key = jax.random.PRNGKey(0)
    pkey, xkey = jax.random.split(key)
    params = init_params(pkey)

    B, N = 2, 64
    grid_pts = jnp.linspace(0.0, 1.0, N, dtype=jnp.float32)
    a_field = jax.random.normal(xkey, (B, N), jnp.float32)
    x = jnp.stack([a_field, jnp.broadcast_to(grid_pts, (B, N))], axis=-1)  # (B,N,2)

    prep = prepare_inputs(params, N, B)        # bases & weights prepared once
    fwd = jax.jit(simple_block1d_pallas)

    out = jax.block_until_ready(fwd(x, prep))
    ref = jax.block_until_ready(simple_block1d_reference(x, params))

    assert out.shape == (B, N, 1)
    max_err = float(jnp.max(jnp.abs(out - ref)))
    if not math.isfinite(max_err) or max_err > 3e-2:
        raise AssertionError(f"Pallas output mismatch vs reference: max|err|={max_err}")
    print("KERNEL_OK")
</pallas_src>

<mosaic_0001>
module attributes {stable_mosaic.version = 11 : i64} {
  func.func @_fno_layer_kernel(%arg0: i32, %arg1: memref<64x4xf32, #tpu.memory_space<vmem>>, %arg2: memref<4x128xf32, #tpu.memory_space<vmem>>, %arg3: memref<1x128xf32, #tpu.memory_space<vmem>>, %arg4: memref<32x64xf32, #tpu.memory_space<vmem>>, %arg5: memref<64x32xf32, #tpu.memory_space<vmem>>, %arg6: memref<1x16x128x128xbf16, #tpu.memory_space<vmem>>, %arg7: memref<1x128x128xf32, #tpu.memory_space<vmem>>, %arg8: memref<1x1x128xf32, #tpu.memory_space<vmem>>, %arg9: memref<1x1x128xf32, #tpu.memory_space<vmem>>, %arg10: memref<1x1x128xf32, #tpu.memory_space<vmem>>, %arg11: memref<128x256xf32, #tpu.memory_space<vmem>>, %arg12: memref<1x256xf32, #tpu.memory_space<vmem>>, %arg13: memref<256x2xf32, #tpu.memory_space<vmem>>, %arg14: memref<1x2xf32, #tpu.memory_space<vmem>>, %arg15: memref<64x2xf32, #tpu.memory_space<vmem>>, %arg16: memref<64x128xf32, #tpu.memory_space<vmem>>) attributes {dimension_semantics = [#tpu.dimension_semantics<arbitrary>], iteration_bounds = array<i64: 4>, scalar_prefetch = 0 : i64, scratch_operands = 1 : i64, tpu.core_type = #tpu.core_type<tc>, window_params = [{pipeline_mode = #tpu.pipeline_mode<synchronous>, transform_indices = @transform_0, window_bounds = array<i64: 64, 4>}, {pipeline_mode = #tpu.pipeline_mode<synchronous>, transform_indices = @transform_1, window_bounds = array<i64: 4, 128>}, {pipeline_mode = #tpu.pipeline_mode<synchronous>, transform_indices = @transform_2, window_bounds = array<i64: 1, 128>}, {pipeline_mode = #tpu.pipeline_mode<synchronous>, transform_indices = @transform_3, window_bounds = array<i64: 32, 64>}, {pipeline_mode = #tpu.pipeline_mode<synchronous>, transform_indices = @transform_4, window_bounds = array<i64: 64, 32>}, {transform_indices = @transform_5, window_bounds = array<i64: 1, 16, 128, 128>}, {transform_indices = @transform_6, window_bounds = array<i64: 1, 128, 128>}, {transform_indices = @transform_7, window_bounds = array<i64: 1, 1, 128>}, {transform_indices = @transform_8, window_bounds = array<i64: 1, 1, 128>}, {transform_indices = @transform_9, window_bounds = array<i64: 1, 1, 128>}, {pipeline_mode = #tpu.pipeline_mode<synchronous>, transform_indices = @transform_10, window_bounds = array<i64: 128, 256>}, {pipeline_mode = #tpu.pipeline_mode<synchronous>, transform_indices = @transform_11, window_bounds = array<i64: 1, 256>}, {pipeline_mode = #tpu.pipeline_mode<synchronous>, transform_indices = @transform_12, window_bounds = array<i64: 256, 2>}, {pipeline_mode = #tpu.pipeline_mode<synchronous>, transform_indices = @transform_13, window_bounds = array<i64: 1, 2>}, {pipeline_mode = #tpu.pipeline_mode<synchronous>, transform_indices = @transform_14, window_bounds = array<i64: 64, 2>}]} {
    %c0_i32 = arith.constant 0 : i32
    %0 = arith.cmpi eq, %arg0, %c0_i32 : i32
    %1 = arith.extui %0 : i1 to i32
    %c0_i32_0 = arith.constant 0 : i32
    %2 = arith.cmpi ne, %1, %c0_i32_0 : i32
    scf.if %2 {
      %c0_34 = arith.constant 0 : index
      %c0_35 = arith.constant 0 : index
      %65 = vector.load %arg1[%c0_34, %c0_35] : memref<64x4xf32, #tpu.memory_space<vmem>>, vector<64x4xf32>
      %c0_36 = arith.constant 0 : index
      %c0_37 = arith.constant 0 : index
      %66 = vector.load %arg2[%c0_36, %c0_37] : memref<4x128xf32, #tpu.memory_space<vmem>>, vector<4x128xf32>
      %cst_38 = arith.constant dense<0.000000e+00> : vector<64x128xf32>
      %67 = tpu.matmul %65, %66, %cst_38 {dimension_numbers = #tpu.dot_dimension_numbers<[1], [0], [0], [1], [0, 0, 1, 1], [], []>} : vector<64x4xf32>, vector<4x128xf32>, vector<64x128xf32> -> vector<64x128xf32>
      %c0_39 = arith.constant 0 : index
      %c0_40 = arith.constant 0 : index
      %68 = vector.load %arg3[%c0_39, %c0_40] : memref<1x128xf32, #tpu.memory_space<vmem>>, vector<1x128xf32>
      %69 = vector.broadcast %68 : vector<1x128xf32> to vector<64x128xf32>
      %70 = arith.addf %67, %69 : vector<64x128xf32>
      %c0_41 = arith.constant 0 : index
      %c0_42 = arith.constant 0 : index
      %71 = vector.load %arg16[%c0_41, %c0_42] : memref<64x128xf32, #tpu.memory_space<vmem>>, vector<64x128xf32>
      tpu.vector_store %arg16[%c0_41, %c0_42], %70 {strides = array<i32>} : memref<64x128xf32, #tpu.memory_space<vmem>>, vector<64x128xf32>,
    } else {
    }
    %c0 = arith.constant 0 : index
    %c0_1 = arith.constant 0 : index
    %3 = vector.load %arg16[%c0, %c0_1] : memref<64x128xf32, #tpu.memory_space<vmem>>, vector<64x128xf32>
    %c0_2 = arith.constant 0 : index
    %c0_3 = arith.constant 0 : index
    %4 = vector.load %arg4[%c0_2, %c0_3] : memref<32x64xf32, #tpu.memory_space<vmem>>, vector<32x64xf32>
    %cst = arith.constant dense<0.000000e+00> : vector<32x128xf32>
    %5 = tpu.matmul %4, %3, %cst {dimension_numbers = #tpu.dot_dimension_numbers<[1], [0], [0], [1], [0, 0, 1, 1], [], []>} : vector<32x64xf32>, vector<64x128xf32>, vector<32x128xf32> -> vector<32x128xf32>
    %6 = vector.extract_strided_slice %5 {offsets = [0, 0], sizes = [16, 128], strides = [1, 1]} : vector<32x128xf32> to vector<16x128xf32>
    %7 = vector.shape_cast %6 : vector<16x128xf32> to vector<16x2x64xf32>
    %8 = vector.extract_strided_slice %5 {offsets = [16, 0], sizes = [16, 128], strides = [1, 1]} : vector<32x128xf32> to vector<16x128xf32>
    %9 = vector.shape_cast %8 : vector<16x128xf32> to vector<16x2x64xf32>
    %10 = tpu.concatenate %7, %9 in 2 : vector<16x2x64xf32>, vector<16x2x64xf32> -> vector<16x2x128xf32>
    %11 = arith.truncf %10 : vector<16x2x128xf32> to vector<16x2x128xbf16>
    %c0_4 = arith.constant 0 : index
    %c0_5 = arith.constant 0 : index
    %c0_6 = arith.constant 0 : index
    %c0_7 = arith.constant 0 : index
    %12 = vector.load %arg6[%c0_4, %c0_5, %c0_6, %c0_7] : memref<1x16x128x128xbf16, #tpu.memory_space<vmem>>, vector<1x16x128x128xbf16>
    %13 = vector.shape_cast %12 : vector<1x16x128x128xbf16> to vector<16x128x128xbf16>
    "tpu.trace_start"() <{level = 10 : i32, message = "mbi,mio->mbo"}> : () -> ()
    %cst_8 = arith.constant dense<0.000000e+00> : vector<16x2x128xf32>
    %14 = tpu.matmul %11, %13, %cst_8 {dimension_numbers = #tpu.dot_dimension_numbers<[2], [1], [1], [2], [0, 0, 0, 1, 1, 2], [0], [0]>} : vector<16x2x128xbf16>, vector<16x128x128xbf16>, vector<16x2x128xf32> -> vector<16x2x128xf32>
    "tpu.trace_stop"() : () -> ()
    %15 = vector.extract_strided_slice %14 {offsets = [0, 0, 0], sizes = [16, 2, 64], strides = [1, 1, 1]} : vector<16x2x128xf32> to vector<16x2x64xf32>
    %16 = vector.shape_cast %15 : vector<16x2x64xf32> to vector<16x128xf32>
    %17 = vector.extract_strided_slice %14 {offsets = [0, 0, 64], sizes = [16, 2, 64], strides = [1, 1, 1]} : vector<16x2x128xf32> to vector<16x2x64xf32>
    %18 = vector.shape_cast %17 : vector<16x2x64xf32> to vector<16x128xf32>
    %19 = tpu.concatenate %16, %18 in 0 : vector<16x128xf32>, vector<16x128xf32> -> vector<32x128xf32>
    %c0_9 = arith.constant 0 : index
    %c0_10 = arith.constant 0 : index
    %20 = vector.load %arg5[%c0_9, %c0_10] : memref<64x32xf32, #tpu.memory_space<vmem>>, vector<64x32xf32>
    %cst_11 = arith.constant dense<0.000000e+00> : vector<64x128xf32>
    %21 = tpu.matmul %20, %19, %cst_11 {dimension_numbers = #tpu.dot_dimension_numbers<[1], [0], [0], [1], [0, 0, 1, 1], [], []>} : vector<64x32xf32>, vector<32x128xf32>, vector<64x128xf32> -> vector<64x128xf32>
    %c0_12 = arith.constant 0 : index
    %c0_13 = arith.constant 0 : index
    %c0_14 = arith.constant 0 : index
    %22 = vector.load %arg7[%c0_12, %c0_13, %c0_14] : memref<1x128x128xf32, #tpu.memory_space<vmem>>, vector<1x128x128xf32>
    %23 = vector.shape_cast %22 : vector<1x128x128xf32> to vector<128x128xf32>
    %cst_15 = arith.constant dense<0.000000e+00> : vector<64x128xf32>
    %24 = tpu.matmul %3, %23, %cst_15 {dimension_numbers = #tpu.dot_dimension_numbers<[1], [0], [0], [1], [0, 0, 1, 1], [], []>} : vector<64x128xf32>, vector<128x128xf32>, vector<64x128xf32> -> vector<64x128xf32>
    %c0_16 = arith.constant 0 : index
    %c0_17 = arith.constant 0 : index
    %c0_18 = arith.constant 0 : index
    %25 = vector.load %arg8[%c0_16, %c0_17, %c0_18] : memref<1x1x128xf32, #tpu.memory_space<vmem>>, vector<1x1x128xf32>
    %26 = vector.shape_cast %25 : vector<1x1x128xf32> to vector<1x128xf32>
    %27 = vector.broadcast %26 : vector<1x128xf32> to vector<64x128xf32>
    %28 = arith.addf %24, %27 : vector<64x128xf32>
    %29 = arith.addf %21, %28 : vector<64x128xf32>
    %cst_19 = arith.constant dense<0.000000e+00> : vector<128xf32>
    %30 = vector.multi_reduction <add>, %29, %cst_19 [0] : vector<64x128xf32> to vector<128xf32>
    %31 = vector.shape_cast %30 : vector<128xf32> to vector<1x128xf32>
    %32 = arith.mulf %29, %29 : vector<64x128xf32>
    %cst_20 = arith.constant dense<0.000000e+00> : vector<128xf32>
    %33 = vector.multi_reduction <add>, %32, %cst_20 [0] : vector<64x128xf32> to vector<128xf32>
    %34 = vector.shape_cast %33 : vector<128xf32> to vector<1x128xf32>
    %c64_i32 = arith.constant 64 : i32
    %35 = tpu.dynamic_rotate %31 by %c64_i32 dim 1 : vector<1x128xf32>, i32 -> vector<1x128xf32>
    %36 = arith.addf %31, %35 : vector<1x128xf32>
    %c64_i32_21 = arith.constant 64 : i32
    %37 = tpu.dynamic_rotate %34 by %c64_i32_21 dim 1 : vector<1x128xf32>, i32 -> vector<1x128xf32>
    %38 = arith.addf %34, %37 : vector<1x128xf32>
    %cst_22 = arith.constant 7.812500e-03 : f32
    %39 = vector.broadcast %cst_22 : f32 to vector<1x128xf32>
    %40 = arith.mulf %36, %39 : vector<1x128xf32>
    %cst_23 = arith.constant 7.812500e-03 : f32
    %41 = vector.broadcast %cst_23 : f32 to vector<1x128xf32>
    %42 = arith.mulf %38, %41 : vector<1x128xf32>
    %43 = arith.mulf %40, %40 : vector<1x128xf32>
    %44 = arith.subf %42, %43 : vector<1x128xf32>
    %c0_24 = arith.constant 0 : index
    %c0_25 = arith.constant 0 : index
    %c0_26 = arith.constant 0 : index
    %45 = vector.load %arg9[%c0_24, %c0_25, %c0_26] : memref<1x1x128xf32, #tpu.memory_space<vmem>>, vector<1x1x128xf32>
    %46 = vector.shape_cast %45 : vector<1x1x128xf32> to vector<1x128xf32>
    %cst_27 = arith.constant 9.99999974E-6 : f32
    %47 = vector.broadcast %cst_27 : f32 to vector<1x128xf32>
    %48 = arith.addf %44, %47 : vector<1x128xf32>
    %49 = math.rsqrt %48 : vector<1x128xf32>
    %50 = arith.mulf %46, %49 : vector<1x128xf32>
    %51 = vector.broadcast %40 : vector<1x128xf32> to vector<64x128xf32>
    %52 = arith.subf %29, %51 : vector<64x128xf32>
    %53 = vector.broadcast %50 : vector<1x128xf32> to vector<64x128xf32>
    %54 = arith.mulf %52, %53 : vector<64x128xf32>
    %c0_28 = arith.constant 0 : index
    %c0_29 = arith.constant 0 : index
    %c0_30 = arith.constant 0 : index
    %55 = vector.load %arg10[%c0_28, %c0_29, %c0_30] : memref<1x1x128xf32, #tpu.memory_space<vmem>>, vector<1x1x128xf32>
    %56 = vector.shape_cast %55 : vector<1x1x128xf32> to vector<1x128xf32>
    %57 = vector.broadcast %56 : vector<1x128xf32> to vector<64x128xf32>
    %58 = arith.addf %54, %57 : vector<64x128xf32>
    %c3_i32 = arith.constant 3 : i32
    %59 = arith.cmpi slt, %arg0, %c3_i32 : i32
    %60 = arith.extui %59 : i1 to i32
    %c0_i32_31 = arith.constant 0 : i32
    %61 = arith.cmpi ne, %60, %c0_i32_31 : i32
    scf.if %61 {
      %cst_34 = arith.constant 0.000000e+00 : f32
      %65 = vector.broadcast %cst_34 : f32 to vector<64x128xf32>
      %66 = arith.maximumf %58, %65 : vector<64x128xf32>
      %c0_35 = arith.constant 0 : index
      %c0_36 = arith.constant 0 : index
      %67 = vector.load %arg16[%c0_35, %c0_36] : memref<64x128xf32, #tpu.memory_space<vmem>>, vector<64x128xf32>
      tpu.vector_store %arg16[%c0_35, %c0_36], %66 {strides = array<i32>} : memref<64x128xf32, #tpu.memory_space<vmem>>, vector<64x128xf32>,
    } else {
    }
    %c3_i32_32 = arith.constant 3 : i32
    %62 = arith.cmpi eq, %arg0, %c3_i32_32 : i32
    %63 = arith.extui %62 : i1 to i32
    %c0_i32_33 = arith.constant 0 : i32
    %64 = arith.cmpi ne, %63, %c0_i32_33 : i32
    scf.if %64 {
      %c0_34 = arith.constant 0 : index
      %c0_35 = arith.constant 0 : index
      %65 = vector.load %arg11[%c0_34, %c0_35] : memref<128x256xf32, #tpu.memory_space<vmem>>, vector<128x256xf32>
      %cst_36 = arith.constant dense<0.000000e+00> : vector<64x256xf32>
      %66 = tpu.matmul %58, %65, %cst_36 {dimension_numbers = #tpu.dot_dimension_numbers<[1], [0], [0], [1], [0, 0, 1, 1], [], []>} : vector<64x128xf32>, vector<128x256xf32>, vector<64x256xf32> -> vector<64x256xf32>
      %c0_37 = arith.constant 0 : index
      %c0_38 = arith.constant 0 : index
      %67 = vector.load %arg12[%c0_37, %c0_38] : memref<1x256xf32, #tpu.memory_space<vmem>>, vector<1x256xf32>
      %68 = vector.broadcast %67 : vector<1x256xf32> to vector<64x256xf32>
      %69 = arith.addf %66, %68 : vector<64x256xf32>
      %cst_39 = arith.constant 0.000000e+00 : f32
      %70 = vector.broadcast %cst_39 : f32 to vector<64x256xf32>
      %71 = arith.maximumf %69, %70 : vector<64x256xf32>
      %c0_40 = arith.constant 0 : index
      %c0_41 = arith.constant 0 : index
      %72 = vector.load %arg13[%c0_40, %c0_41] : memref<256x2xf32, #tpu.memory_space<vmem>>, vector<256x2xf32>
      %cst_42 = arith.constant dense<0.000000e+00> : vector<64x2xf32>
      %73 = tpu.matmul %71, %72, %cst_42 {dimension_numbers = #tpu.dot_dimension_numbers<[1], [0], [0], [1], [0, 0, 1, 1], [], []>} : vector<64x256xf32>, vector<256x2xf32>, vector<64x2xf32> -> vector<64x2xf32>
      %c0_43 = arith.constant 0 : index
      %c0_44 = arith.constant 0 : index
      %74 = vector.load %arg14[%c0_43, %c0_44] : memref<1x2xf32, #tpu.memory_space<vmem>>, vector<1x2xf32>
      %75 = vector.broadcast %74 : vector<1x2xf32> to vector<64x2xf32>
      %76 = arith.addf %73, %75 : vector<64x2xf32>
      %c0_45 = arith.constant 0 : index
      %c0_46 = arith.constant 0 : index
      %77 = vector.load %arg15[%c0_45, %c0_46] : memref<64x2xf32, #tpu.memory_space<vmem>>, vector<64x2xf32>
      tpu.vector_store %arg15[%c0_45, %c0_46], %76 {strides = array<i32>} : memref<64x2xf32, #tpu.memory_space<vmem>>, vector<64x2xf32>,
    } else {
    }
    return
  }
  func.func @transform_0(%arg0: i32) -> (i32, i32) {
    %c0_i32 = arith.constant 0 : i32
    %c0_i32_0 = arith.constant 0 : i32
    %c0_i32_1 = arith.constant 0 : i32
    return %c0_i32, %c0_i32_0 : i32, i32
  }
  func.func @transform_1(%arg0: i32) -> (i32, i32) {
    %c0_i32 = arith.constant 0 : i32
    %c0_i32_0 = arith.constant 0 : i32
    %c0_i32_1 = arith.constant 0 : i32
    return %c0_i32, %c0_i32_0 : i32, i32
  }
  func.func @transform_2(%arg0: i32) -> (i32, i32) {
    %c0_i32 = arith.constant 0 : i32
    %c0_i32_0 = arith.constant 0 : i32
    %c0_i32_1 = arith.constant 0 : i32
    return %c0_i32, %c0_i32_0 : i32, i32
  }
  func.func @transform_3(%arg0: i32) -> (i32, i32) {
    %c0_i32 = arith.constant 0 : i32
    %c0_i32_0 = arith.constant 0 : i32
    %c0_i32_1 = arith.constant 0 : i32
    return %c0_i32, %c0_i32_0 : i32, i32
  }
  func.func @transform_4(%arg0: i32) -> (i32, i32) {
    %c0_i32 = arith.constant 0 : i32
    %c0_i32_0 = arith.constant 0 : i32
    %c0_i32_1 = arith.constant 0 : i32
    return %c0_i32, %c0_i32_0 : i32, i32
  }
  func.func @transform_5(%arg0: i32) -> (i32, i32, i32, i32) {
    %c0_i32 = arith.constant 0 : i32
    %c0_i32_0 = arith.constant 0 : i32
    %c0_i32_1 = arith.constant 0 : i32
    %c0_i32_2 = arith.constant 0 : i32
    return %arg0, %c0_i32, %c0_i32_0, %c0_i32_1 : i32, i32, i32, i32
  }
  func.func @transform_6(%arg0: i32) -> (i32, i32, i32) {
    %c0_i32 = arith.constant 0 : i32
    %c0_i32_0 = arith.constant 0 : i32
    %c0_i32_1 = arith.constant 0 : i32
    return %arg0, %c0_i32, %c0_i32_0 : i32, i32, i32
  }
  func.func @transform_7(%arg0: i32) -> (i32, i32, i32) {
    %c0_i32 = arith.constant 0 : i32
    %c0_i32_0 = arith.constant 0 : i32
    %c0_i32_1 = arith.constant 0 : i32
    return %arg0, %c0_i32, %c0_i32_0 : i32, i32, i32
  }
  func.func @transform_8(%arg0: i32) -> (i32, i32, i32) {
    %c0_i32 = arith.constant 0 : i32
    %c0_i32_0 = arith.constant 0 : i32
    %c0_i32_1 = arith.constant 0 : i32
    return %arg0, %c0_i32, %c0_i32_0 : i32, i32, i32
  }
  func.func @transform_9(%arg0: i32) -> (i32, i32, i32) {
    %c0_i32 = arith.constant 0 : i32
    %c0_i32_0 = arith.constant 0 : i32
    %c0_i32_1 = arith.constant 0 : i32
    return %arg0, %c0_i32, %c0_i32_0 : i32, i32, i32
  }
  func.func @transform_10(%arg0: i32) -> (i32, i32) {
    %c0_i32 = arith.constant 0 : i32
    %c0_i32_0 = arith.constant 0 : i32
    %c0_i32_1 = arith.constant 0 : i32
    return %c0_i32, %c0_i32_0 : i32, i32
  }
  func.func @transform_11(%arg0: i32) -> (i32, i32) {
    %c0_i32 = arith.constant 0 : i32
    %c0_i32_0 = arith.constant 0 : i32
    %c0_i32_1 = arith.constant 0 : i32
    return %c0_i32, %c0_i32_0 : i32, i32
  }
  func.func @transform_12(%arg0: i32) -> (i32, i32) {
    %c0_i32 = arith.constant 0 : i32
    %c0_i32_0 = arith.constant 0 : i32
    %c0_i32_1 = arith.constant 0 : i32
    return %c0_i32, %c0_i32_0 : i32, i32
  }
  func.func @transform_13(%arg0: i32) -> (i32, i32) {
    %c0_i32 = arith.constant 0 : i32
    %c0_i32_0 = arith.constant 0 : i32
    %c0_i32_1 = arith.constant 0 : i32
    return %c0_i32, %c0_i32_0 : i32, i32
  }
  func.func @transform_14(%arg0: i32) -> (i32, i32) {
    %c0_i32 = arith.constant 0 : i32
    %c0_i32_0 = arith.constant 0 : i32
    %c0_i32_1 = arith.constant 0 : i32
    return %c0_i32, %c0_i32_0 : i32, i32
  }
}

</mosaic_0001>

<llo_original>
// kernel: simple_block1d_pallas.1
$region0: #{simple_block1d_pallas.1}
  #allocation0 [shape = 'u32[]', space=smem, size = 0x4, offset = 0x4, fixed_abs, tag = 'smem constant byte address 0x4 - core index']
  #allocation1 [shape = 'u32[144,128]{1,0:T(1,128)}', space=vmem, size = 0x12000, scoped, tag = 'internal scratch']
  #allocation2 [shape = 'f32[64,128]{1,0:T(8,128)}', space=vmem, size = 0x8000, scoped, tag = 'scratch operand']
  %s0 = inlined_call_operand.vmem [shape: f32[64,4], index: 0, kind: input, shape index: {}]
  %s1 = inlined_call_operand.hbm [shape: f32[4,128], index: 1, kind: input, shape index: {}]
  %s2 = inlined_call_operand.hbm [shape: f32[1,128], index: 2, kind: input, shape index: {}]
  %s3 = inlined_call_operand.hbm [shape: f32[32,64], index: 3, kind: input, shape index: {}]
  %s4 = inlined_call_operand.vmem [shape: f32[64,32], index: 4, kind: input, shape index: {}]
  %s5 = inlined_call_operand.hbm [shape: bf16[4,16,128,128], index: 5, kind: input, shape index: {}]
  %s6 = inlined_call_operand.hbm [shape: f32[4,128,128], index: 6, kind: input, shape index: {}]
  %s7 = inlined_call_operand.hbm [shape: f32[4,1,128], index: 7, kind: input, shape index: {}]
  %s8 = inlined_call_operand.hbm [shape: f32[4,1,128], index: 8, kind: input, shape index: {}]
  %s9 = inlined_call_operand.hbm [shape: f32[4,1,128], index: 9, kind: input, shape index: {}]
  %s10 = inlined_call_operand.hbm [shape: f32[128,256], index: 10, kind: input, shape index: {}]
  %s11 = inlined_call_operand.hbm [shape: f32[1,256], index: 11, kind: input, shape index: {}]
  %s12 = inlined_call_operand.vmem [shape: f32[256,2], index: 12, kind: input, shape index: {}]
  %s13 = inlined_call_operand.hbm [shape: f32[1,2], index: 13, kind: input, shape index: {}]
  %s14 = inlined_call_operand.vmem [shape: f32[64,2], index: 14, kind: output, shape index: {}]
  %s15 = sld [smem:[#allocation0]]
  $region145: #{simple_block1d_pallas.1} parent=0
    _
  %s17 = ssub.s32 1, %s15
  %s18 = scalar_select 0, %s17, %s15
  $region1: #{simple_block1d_pallas.1} parent=0
    #allocation3 [shape = 'u8[2048]{0}', space=vmem, size = 0x800, scoped, tag = 'input window, operand 1, single buffered']
    #allocation4 [shape = 's32[2]{0}', space=sflag, size = 0x8, scoped, tag = 'scoped memory for simple_block1d_pallas.1']
    #allocation5 [shape = 'u8[512]{0}', space=vmem, size = 0x400, scoped, tag = 'input window, operand 2, single buffered']
    #allocation6 [shape = 's32[1]{0}', space=sflag, size = 0x4, scoped, tag = 'scoped memory for simple_block1d_pallas.1']
    #allocation7 [shape = 'u8[16384]{0}', space=vmem, size = 0x4000, scoped, tag = 'input window, operand 3, single buffered']
    #allocation8 [shape = 'u8[1048576]{0}', space=vmem, size = 0x100000, scoped, tag = 'input window, operand 5']
    #allocation9 [shape = 's32[2]{0}', space=sflag, size = 0x8, scoped, tag = 'scoped memory for simple_block1d_pallas.1']
    #allocation10 [shape = 'u8[131072]{0}', space=vmem, size = 0x20000, scoped, tag = 'input window, operand 6']
    #allocation11 [shape = 'u8[1024]{0}', space=vmem, size = 0x400, scoped, tag = 'input window, operand 7']
    #allocation12 [shape = 's32[2]{0}', space=sflag, size = 0x8, scoped, tag = 'scoped memory for simple_block1d_pallas.1']
    #allocation13 [shape = 'u8[1024]{0}', space=vmem, size = 0x400, scoped, tag = 'input window, operand 8']
    #allocation14 [shape = 'u8[1024]{0}', space=vmem, size = 0x400, scoped, tag = 'input window, operand 9']
    #allocation15 [shape = 's32[2]{0}', space=sflag, size = 0x8, scoped, tag = 'scoped memory for simple_block1d_pallas.1']
    #allocation16 [shape = 'u8[131072]{0}', space=vmem, size = 0x20000, scoped, tag = 'input window, operand 10, single buffered']
    #allocation17 [shape = 'u8[1024]{0}', space=vmem, size = 0x400, scoped, tag = 'input window, operand 11, single buffered']
    #allocation18 [shape = 's32[1]{0}', space=sflag, size = 0x4, scoped, tag = 'scoped memory for simple_block1d_pallas.1']
    #allocation19 [shape = 'u8[512]{0}', space=vmem, size = 0x400, scoped, tag = 'input window, operand 13, single buffered']
    %19 = vsyncpa [#allocation4], 0
    %20 = vsyncpa [#allocation6], 0
    %21 = vsyncpa [#allocation9], 0
    %s22 = scalar_lea.sflag [#allocation9], 1
    %23 = vsyncpa %s22, 0
    %24 = vsyncpa [#allocation12], 0
    %s25 = scalar_lea.sflag [#allocation12], 1
    %26 = vsyncpa %s25, 0
    %27 = vsyncpa [#allocation15], 0
    %s28 = scalar_lea.sflag [#allocation15], 1
    %29 = vsyncpa %s28, 0
    %30 = vsyncpa [#allocation18], 0
    loop: start=0, step=1, limit=6
    $region2: #{simple_block1d_pallas.1} parent=1 // loop_pre_header
      _
    $region3: #{simple_block1d_pallas.1} parent=1 // loop_header
      %s32 = sphi 0, %s36
      %p33 = scmp.ge.s32.totalorder %s32, 6
      %s40 = sphi 0, %s40
      %s42 = sphi 0, %s40
      %s43 = sphi 0, %s42
      %s57 = sphi 0, %s43
      %s61 = sphi 0, %s61
      %s63 = sphi 0, %s61
      %s64 = sphi 0, %s63
      %s78 = sphi 0, %s64
      %s82 = sphi 0, %s82
      %s84 = sphi 0, %s82
      %s85 = sphi 0, %s84
      %s99 = sphi 0, %s85
      %s103 = sphi 0, %s103
      %s105 = sphi 0, %s103
      %s106 = sphi 0, %s105
      %s120 = sphi 0, %s106
      %s124 = sphi 0, %s124
      %s126 = sphi 0, %s124
      %s127 = sphi 0, %s126
      %s141 = sphi 0, %s127
      %s147 = sphi 0, %s149
      %s150 = sphi 0, %s147
      %s151 = sphi 0, %s150
      %s167 = sphi 0, %s151
      %s173 = sphi 0, %s175
      %s176 = sphi 0, %s173
      %s177 = sphi 0, %s176
      %s193 = sphi 0, %s177
      %s199 = sphi 0, %s201
      %s202 = sphi 0, %s199
      %s203 = sphi 0, %s202
      %s219 = sphi 0, %s203
      %s225 = sphi 0, %s227
      %s228 = sphi 0, %s225
      %s229 = sphi 0, %s228
      %s245 = sphi 0, %s229
      %s251 = sphi 0, %s253
      %s254 = sphi 0, %s251
      %s255 = sphi 0, %s254
      %s271 = sphi 0, %s255
      %s275 = sphi 0, %s275
      %s277 = sphi 0, %s275
      %s278 = sphi 0, %s277
      %s292 = sphi 0, %s278
      %s296 = sphi 0, %s296
      %s298 = sphi 0, %s296
      %s299 = sphi 0, %s298
      %s313 = sphi 0, %s299
      %s317 = sphi 0, %s317
      %s319 = sphi 0, %s317
      %s320 = sphi 0, %s319
      %s334 = sphi 0, %s320
      %s338 = sphi 0, %s338
      %s340 = sphi 0, %s338
      %s341 = sphi 0, %s340
      %s355 = sphi 0, %s341
      %s359 = sphi 0, %s359
      %s361 = sphi 0, %s359
      %s362 = sphi 0, %s361
      %s376 = sphi 0, %s362
    $region4: #{simple_block1d_pallas.1} parent=1 // loop_header_branch
      %35 = sbr.rel (%p33) target = $region8
    $region5: #{simple_block1d_pallas.1} parent=1 // loop_body
      %s37 = ssub.s32 %s32, 1
      %s38 = ssub.s32 %s32, 2
      %s39 = sadd.s32 %s32, 1
      %s41 = sadd.s32 %s40, 1
      %p44 = scmp.eq.s32.totalorder %s32, 3
      %p45 = scmp.ne.s32.totalorder %s40, %s42
      %p46 = scmp.eq.s32.totalorder %s32, 0
      %p47 = por %p45, %p46
      %p48 = scmp.ne.s32.totalorder %s40, %s42
      %p49 = scmp.eq.s32.totalorder %s37, 3
      %p50 = por %p48, %p49
      %p51 = scmp.ne.s32.totalorder %s42, %s43
      %p52 = scmp.eq.s32.totalorder %s37, 0
      %p53 = por %p51, %p52
      %p54 = scmp.ne.s32.totalorder %s42, %s43
      %p55 = scmp.eq.s32.totalorder %s38, 3
      %p56 = por %p54, %p55
      %p58 = scmp.ne.s32.totalorder %s43, %s57
      %p59 = scmp.eq.s32.totalorder %s38, 0
      %p60 = por %p58, %p59
      %s62 = sadd.s32 %s61, 1
      %p65 = scmp.eq.s32.totalorder %s32, 3
      %p66 = scmp.ne.s32.totalorder %s61, %s63
      %p67 = scmp.eq.s32.totalorder %s32, 0
      %p68 = por %p66, %p67
      %p69 = scmp.ne.s32.totalorder %s61, %s63
      %p70 = scmp.eq.s32.totalorder %s37, 3
      %p71 = por %p69, %p70
      %p72 = scmp.ne.s32.totalorder %s63, %s64
      %p73 = scmp.eq.s32.totalorder %s37, 0
      %p74 = por %p72, %p73
      %p75 = scmp.ne.s32.totalorder %s63, %s64
      %p76 = scmp.eq.s32.totalorder %s38, 3
      %p77 = por %p75, %p76
      %p79 = scmp.ne.s32.totalorder %s64, %s78
      %p80 = scmp.eq.s32.totalorder %s38, 0
      %p81 = por %p79, %p80
      %s83 = sadd.s32 %s82, 1
      %p86 = scmp.eq.s32.totalorder %s32, 3
      %p87 = scmp.ne.s32.totalorder %s82, %s84
      %p88 = scmp.eq.s32.totalorder %s32, 0
      %p89 = por %p87, %p88
      %p90 = scmp.ne.s32.totalorder %s82, %s84
      %p91 = scmp.eq.s32.totalorder %s37, 3
      %p92 = por %p90, %p91
      %p93 = scmp.ne.s32.totalorder %s84, %s85
      %p94 = scmp.eq.s32.totalorder %s37, 0
      %p95 = por %p93, %p94
      %p96 = scmp.ne.s32.totalorder %s84, %s85
      %p97 = scmp.eq.s32.totalorder %s38, 3
      %p98 = por %p96, %p97
      %p100 = scmp.ne.s32.totalorder %s85, %s99
      %p101 = scmp.eq.s32.totalorder %s38, 0
      %p102 = por %p100, %p101
      %s104 = sadd.s32 %s103, 1
      %p107 = scmp.eq.s32.totalorder %s32, 3
      %p108 = scmp.ne.s32.totalorder %s103, %s105
      %p109 = scmp.eq.s32.totalorder %s32, 0
      %p110 = por %p108, %p109
      %p111 = scmp.ne.s32.totalorder %s103, %s105
      %p112 = scmp.eq.s32.totalorder %s37, 3
      %p113 = por %p111, %p112
      %p114 = scmp.ne.s32.totalorder %s105, %s106
      %p115 = scmp.eq.s32.totalorder %s37, 0
      %p116 = por %p114, %p115
      %p117 = scmp.ne.s32.totalorder %s105, %s106
      %p118 = scmp.eq.s32.totalorder %s38, 3
      %p119 = por %p117, %p118
      %p121 = scmp.ne.s32.totalorder %s106, %s120
      %p122 = scmp.eq.s32.totalorder %s38, 0
      %p123 = por %p121, %p122
      %s125 = sadd.s32 %s124, 1
      %p128 = scmp.eq.s32.totalorder %s32, 3
      %p129 = scmp.ne.s32.totalorder %s124, %s126
      %p130 = scmp.eq.s32.totalorder %s32, 0
      %p131 = por %p129, %p130
      %p132 = scmp.ne.s32.totalorder %s124, %s126
      %p133 = scmp.eq.s32.totalorder %s37, 3
      %p134 = por %p132, %p133
      %p135 = scmp.ne.s32.totalorder %s126, %s127
      %p136 = scmp.eq.s32.totalorder %s37, 0
      %p137 = por %p135, %p136
      %p138 = scmp.ne.s32.totalorder %s126, %s127
      %p139 = scmp.eq.s32.totalorder %s38, 3
      %p140 = por %p138, %p139
      %p142 = scmp.ne.s32.totalorder %s127, %s141
      %p143 = scmp.eq.s32.totalorder %s38, 0
      %p144 = por %p142, %p143
      %s145 = ssub.s32 %s32, %s39
      %p146 = scmp.eq.s32.totalorder %s145, 0
      %s148 = sadd.s32 %s147, 1
      %s149 = scalar_select %p146, %s147, %s148
      %p152 = pneg %p146
      %p153 = scmp.eq.s32.totalorder %s32, 3
      %p154 = por %p152, %p153
      %p155 = scmp.ne.s32.totalorder %s147, %s150
      %p156 = scmp.eq.s32.totalorder %s32, 0
      %p157 = por %p155, %p156
      %p158 = scmp.ne.s32.totalorder %s147, %s150
      %p159 = scmp.eq.s32.totalorder %s37, 3
      %p160 = por %p158, %p159
      %p161 = scmp.ne.s32.totalorder %s150, %s151
      %p162 = scmp.eq.s32.totalorder %s37, 0
      %p163 = por %p161, %p162
      %p164 = scmp.ne.s32.totalorder %s150, %s151
      %p165 = scmp.eq.s32.totalorder %s38, 3
      %p166 = por %p164, %p165
      %p168 = scmp.ne.s32.totalorder %s151, %s167
      %p169 = scmp.eq.s32.totalorder %s38, 0
      %p170 = por %p168, %p169
      %s171 = ssub.s32 %s32, %s39
      %p172 = scmp.eq.s32.totalorder %s171, 0
      %s174 = sadd.s32 %s173, 1
      %s175 = scalar_select %p172, %s173, %s174
      %p178 = pneg %p172
      %p179 = scmp.eq.s32.totalorder %s32, 3
      %p180 = por %p178, %p179
      %p181 = scmp.ne.s32.totalorder %s173, %s176
      %p182 = scmp.eq.s32.totalorder %s32, 0
      %p183 = por %p181, %p182
      %p184 = scmp.ne.s32.totalorder %s173, %s176
      %p185 = scmp.eq.s32.totalorder %s37, 3
      %p186 = por %p184, %p185
      %p187 = scmp.ne.s32.totalorder %s176, %s177
      %p188 = scmp.eq.s32.totalorder %s37, 0
      %p189 = por %p187, %p188
      %p190 = scmp.ne.s32.totalorder %s176, %s177
      %p191 = scmp.eq.s32.totalorder %s38, 3
      %p192 = por %p190, %p191
      %p194 = scmp.ne.s32.totalorder %s177, %s193
      %p195 = scmp.eq.s32.totalorder %s38, 0
      %p196 = por %p194, %p195
      %s197 = ssub.s32 %s32, %s39
      %p198 = scmp.eq.s32.totalorder %s197, 0
      %s200 = sadd.s32 %s199, 1
      %s201 = scalar_select %p198, %s199, %s200
      %p204 = pneg %p198
      %p205 = scmp.eq.s32.totalorder %s32, 3
      %p206 = por %p204, %p205
      %p207 = scmp.ne.s32.totalorder %s199, %s202
      %p208 = scmp.eq.s32.totalorder %s32, 0
      %p209 = por %p207, %p208
      %p210 = scmp.ne.s32.totalorder %s199, %s202
      %p211 = scmp.eq.s32.totalorder %s37, 3
      %p212 = por %p210, %p211
      %p213 = scmp.ne.s32.totalorder %s202, %s203
      %p214 = scmp.eq.s32.totalorder %s37, 0
      %p215 = por %p213, %p214
      %p216 = scmp.ne.s32.totalorder %s202, %s203
      %p217 = scmp.eq.s32.totalorder %s38, 3
      %p218 = por %p216, %p217
      %p220 = scmp.ne.s32.totalorder %s203, %s219
      %p221 = scmp.eq.s32.totalorder %s38, 0
      %p222 = por %p220, %p221
      %s223 = ssub.s32 %s32, %s39
      %p224 = scmp.eq.s32.totalorder %s223, 0
      %s226 = sadd.s32 %s225, 1
      %s227 = scalar_select %p224, %s225, %s226
      %p230 = pneg %p224
      %p231 = scmp.eq.s32.totalorder %s32, 3
      %p232 = por %p230, %p231
      %p233 = scmp.ne.s32.totalorder %s225, %s228
      %p234 = scmp.eq.s32.totalorder %s32, 0
      %p235 = por %p233, %p234
      %p236 = scmp.ne.s32.totalorder %s225, %s228
      %p237 = scmp.eq.s32.totalorder %s37, 3
      %p238 = por %p236, %p237
      %p239 = scmp.ne.s32.totalorder %s228, %s229
      %p240 = scmp.eq.s32.totalorder %s37, 0
      %p241 = por %p239, %p240
      %p242 = scmp.ne.s32.totalorder %s228, %s229
      %p243 = scmp.eq.s32.totalorder %s38, 3
      %p244 = por %p242, %p243
      %p246 = scmp.ne.s32.totalorder %s229, %s245
      %p247 = scmp.eq.s32.totalorder %s38, 0
      %p248 = por %p246, %p247
      %s249 = ssub.s32 %s32, %s39
      %p250 = scmp.eq.s32.totalorder %s249, 0
      %s252 = sadd.s32 %s251, 1
      %s253 = scalar_select %p250, %s251, %s252
      %p256 = pneg %p250
      %p257 = scmp.eq.s32.totalorder %s32, 3
      %p258 = por %p256, %p257
      %p259 = scmp.ne.s32.totalorder %s251, %s254
      %p260 = scmp.eq.s32.totalorder %s32, 0
      %p261 = por %p259, %p260
      %p262 = scmp.ne.s32.totalorder %s251, %s254
      %p263 = scmp.eq.s32.totalorder %s37, 3
      %p264 = por %p262, %p263
      %p265 = scmp.ne.s32.totalorder %s254, %s255
      %p266 = scmp.eq.s32.totalorder %s37, 0
      %p267 = por %p265, %p266
      %p268 = scmp.ne.s32.totalorder %s254, %s255
      %p269 = scmp.eq.s32.totalorder %s38, 3
      %p270 = por %p268, %p269
      %p272 = scmp.ne.s32.totalorder %s255, %s271
      %p273 = scmp.eq.s32.totalorder %s38, 0
      %p274 = por %p272, %p273
      %s276 = sadd.s32 %s275, 1
      %p279 = scmp.eq.s32.totalorder %s32, 3
      %p280 = scmp.ne.s32.totalorder %s275, %s277
      %p281 = scmp.eq.s32.totalorder %s32, 0
      %p282 = por %p280, %p281
      %p283 = scmp.ne.s32.totalorder %s275, %s277
      %p284 = scmp.eq.s32.totalorder %s37, 3
      %p285 = por %p283, %p284
      %p286 = scmp.ne.s32.totalorder %s277, %s278
      %p287 = scmp.eq.s32.totalorder %s37, 0
      %p288 = por %p286, %p287
      %p289 = scmp.ne.s32.totalorder %s277, %s278
      %p290 = scmp.eq.s32.totalorder %s38, 3
      %p291 = por %p289, %p290
      %p293 = scmp.ne.s32.totalorder %s278, %s292
      %p294 = scmp.eq.s32.totalorder %s38, 0
      %p295 = por %p293, %p294
      %s297 = sadd.s32 %s296, 1
      %p300 = scmp.eq.s32.totalorder %s32, 3
      %p301 = scmp.ne.s32.totalorder %s296, %s298
      %p302 = scmp.eq.s32.totalorder %s32, 0
      %p303 = por %p301, %p302
      %p304 = scmp.ne.s32.totalorder %s296, %s298
      %p305 = scmp.eq.s32.totalorder %s37, 3
      %p306 = por %p304, %p305
      %p307 = scmp.ne.s32.totalorder %s298, %s299
      %p308 = scmp.eq.s32.totalorder %s37, 0
      %p309 = por %p307, %p308
      %p310 = scmp.ne.s32.totalorder %s298, %s299
      %p311 = scmp.eq.s32.totalorder %s38, 3
      %p312 = por %p310, %p311
      %p314 = scmp.ne.s32.totalorder %s299, %s313
      %p315 = scmp.eq.s32.totalorder %s38, 0
      %p316 = por %p314, %p315
      %s318 = sadd.s32 %s317, 1
      %p321 = scmp.eq.s32.totalorder %s32, 3
      %p322 = scmp.ne.s32.totalorder %s317, %s319
      %p323 = scmp.eq.s32.totalorder %s32, 0
      %p324 = por %p322, %p323
      %p325 = scmp.ne.s32.totalorder %s317, %s319
      %p326 = scmp.eq.s32.totalorder %s37, 3
      %p327 = por %p325, %p326
      %p328 = scmp.ne.s32.totalorder %s319, %s320
      %p329 = scmp.eq.s32.totalorder %s37, 0
      %p330 = por %p328, %p329
      %p331 = scmp.ne.s32.totalorder %s319, %s320
      %p332 = scmp.eq.s32.totalorder %s38, 3
      %p333 = por %p331, %p332
      %p335 = scmp.ne.s32.totalorder %s320, %s334
      %p336 = scmp.eq.s32.totalorder %s38, 0
      %p337 = por %p335, %p336
      %s339 = sadd.s32 %s338, 1
      %p342 = scmp.eq.s32.totalorder %s32, 3
      %p343 = scmp.ne.s32.totalorder %s338, %s340
      %p344 = scmp.eq.s32.totalorder %s32, 0
      %p345 = por %p343, %p344
      %p346 = scmp.ne.s32.totalorder %s338, %s340
      %p347 = scmp.eq.s32.totalorder %s37, 3
      %p348 = por %p346, %p347
      %p349 = scmp.ne.s32.totalorder %s340, %s341
      %p350 = scmp.eq.s32.totalorder %s37, 0
      %p351 = por %p349, %p350
      %p352 = scmp.ne.s32.totalorder %s340, %s341
      %p353 = scmp.eq.s32.totalorder %s38, 3
      %p354 = por %p352, %p353
      %p356 = scmp.ne.s32.totalorder %s341, %s355
      %p357 = scmp.eq.s32.totalorder %s38, 0
      %p358 = por %p356, %p357
      %s360 = sadd.s32 %s359, 1
      %p363 = scmp.eq.s32.totalorder %s32, 3
      %p364 = scmp.ne.s32.totalorder %s359, %s361
      %p365 = scmp.eq.s32.totalorder %s32, 0
      %p366 = por %p364, %p365
      %p367 = scmp.ne.s32.totalorder %s359, %s361
      %p368 = scmp.eq.s32.totalorder %s37, 3
      %p369 = por %p367, %p368
      %p370 = scmp.ne.s32.totalorder %s361, %s362
      %p371 = scmp.eq.s32.totalorder %s37, 0
      %p372 = por %p370, %p371
      %p373 = scmp.ne.s32.totalorder %s361, %s362
      %p374 = scmp.eq.s32.totalorder %s38, 3
      %p375 = por %p373, %p374
      %p377 = scmp.ne.s32.totalorder %s362, %s376
      %p378 = scmp.eq.s32.totalorder %s38, 0
      %p379 = por %p377, %p378
      %p380 = scmp.le.s32.totalorder 1, %s32
      %p381 = scmp.lt.s32.totalorder %s32, 5
      %p382 = pnand %p380, %p381
      %p383 = pneg %p382
      // Predicated region
      $region9: #{simple_block1d_pallas.1} parent=5 // pred_check
        _
      $region10: #{simple_block1d_pallas.1} parent=5 // pred_check_branch
        %385 = sbr.rel (%p382) target = $region12
      $region11: #{simple_block1d_pallas.1} parent=5 // pred_region
        %s386 = ssub.s32 %s32, 1
        // Predicated region
        $region13: #{simple_block1d_pallas.1} parent=11 // pred_check
          %p387 = pneg %p53
        $region14: #{simple_block1d_pallas.1} parent=11 // pred_check_branch
          %389 = sbr.rel (%p387) target = $region16
        $region15: #{simple_block1d_pallas.1} parent=11 // pred_region
          _
        $region16: #{simple_block1d_pallas.1} parent=11 // pred_fallthru
          _
        // Predicated region
        $region17: #{simple_block1d_pallas.1} parent=11 // pred_check
          %p390 = pneg %p74
        $region18: #{simple_block1d_pallas.1} parent=11 // pred_check_branch
          %392 = sbr.rel (%p390) target = $region20
        $region19: #{simple_block1d_pallas.1} parent=11 // pred_region
          %s394 = ssub.s32 64, 64
          %395 = vsyncadd [#allocation4], %s394
          %s397 = sshll.u32 [#allocation3], 4
          %s398 = int_to_ptr.vmem [resolvable:$true] %s397
          %400 = dma.hbm_to_vmem [thread:$0]  %s1, 64, %s398, [#allocation4]
        $region20: #{simple_block1d_pallas.1} parent=11 // pred_fallthru
          _
        // Predicated region
        $region21: #{simple_block1d_pallas.1} parent=11 // pred_check
          %p401 = pneg %p95
        $region22: #{simple_block1d_pallas.1} parent=11 // pred_check_branch
          %403 = sbr.rel (%p401) target = $region24
        $region23: #{simple_block1d_pallas.1} parent=11 // pred_region
          %s405 = ssub.s32 16, 16
          %406 = vsyncadd [#allocation6], %s405
          %s408 = sshll.u32 [#allocation5], 4
          %s409 = int_to_ptr.vmem [resolvable:$true] %s408
          %411 = dma.hbm_to_vmem [thread:$0]  %s2, 16, %s409, [#allocation6]
        $region24: #{simple_block1d_pallas.1} parent=11 // pred_fallthru
          _
        // Predicated region
        $region25: #{simple_block1d_pallas.1} parent=11 // pred_check
          %p412 = pneg %p116
        $region26: #{simple_block1d_pallas.1} parent=11 // pred_check_branch
          %414 = sbr.rel (%p412) target = $region28
        $region27: #{simple_block1d_pallas.1} parent=11 // pred_region
          %s416 = ssub.s32 512, 512
          %417 = vsyncadd [#allocation6], %s416
          %s418 = sshll.u32 [#allocation7], 4
          %s419 = int_to_ptr.vmem [resolvable:$true] %s418
          %424 = dma.hbm_to_vmem [thread:$0]  %s3, 512, %s419, [#allocation6], 128, 128, 8
        $region28: #{simple_block1d_pallas.1} parent=11 // pred_fallthru
          _
        // Predicated region
        $region29: #{simple_block1d_pallas.1} parent=11 // pred_check
          %p425 = pneg %p137
        $region30: #{simple_block1d_pallas.1} parent=11 // pred_check_branch
          %427 = sbr.rel (%p425) target = $region32
        $region31: #{simple_block1d_pallas.1} parent=11 // pred_region
          _
        $region32: #{simple_block1d_pallas.1} parent=11 // pred_fallthru
          _
        // Predicated region
        $region33: #{simple_block1d_pallas.1} parent=11 // pred_check
          %p428 = pneg %p288
        $region34: #{simple_block1d_pallas.1} parent=11 // pred_check_branch
          %430 = sbr.rel (%p428) target = $region36
        $region35: #{simple_block1d_pallas.1} parent=11 // pred_region
          %s432 = ssub.s32 4096, 4096
          %433 = vsyncadd [#allocation15], %s432
          %s434 = sshll.u32 [#allocation16], 4
          %s435 = int_to_ptr.vmem [resolvable:$true] %s434
          %440 = dma.hbm_to_vmem [thread:$0]  %s10, 4096, %s435, [#allocation15], 256, 256, 16
        $region36: #{simple_block1d_pallas.1} parent=11 // pred_fallthru
          _
        // Predicated region
        $region37: #{simple_block1d_pallas.1} parent=11 // pred_check
          %p441 = pneg %p309
        $region38: #{simple_block1d_pallas.1} parent=11 // pred_check_branch
          %443 = sbr.rel (%p441) target = $region40
        $region39: #{simple_block1d_pallas.1} parent=11 // pred_region
          %s445 = ssub.s32 32, 32
          %446 = vsyncadd [#allocation18], %s445
          %s448 = sshll.u32 [#allocation17], 4
          %s449 = int_to_ptr.vmem [resolvable:$true] %s448
          %451 = dma.hbm_to_vmem [thread:$0]  %s11, 32, %s449, [#allocation18]
        $region40: #{simple_block1d_pallas.1} parent=11 // pred_fallthru
          _
        // Predicated region
        $region41: #{simple_block1d_pallas.1} parent=11 // pred_check
          %p452 = pneg %p330
        $region42: #{simple_block1d_pallas.1} parent=11 // pred_check_branch
          %454 = sbr.rel (%p452) target = $region44
        $region43: #{simple_block1d_pallas.1} parent=11 // pred_region
          _
        $region44: #{simple_block1d_pallas.1} parent=11 // pred_fallthru
          _
        // Predicated region
        $region45: #{simple_block1d_pallas.1} parent=11 // pred_check
          %p455 = pneg %p351
        $region46: #{simple_block1d_pallas.1} parent=11 // pred_check_branch
          %457 = sbr.rel (%p455) target = $region48
        $region47: #{simple_block1d_pallas.1} parent=11 // pred_region
          %s459 = ssub.s32 16, 16
          %460 = vsyncadd [#allocation18], %s459
          %s462 = sshll.u32 [#allocation19], 4
          %s463 = int_to_ptr.vmem [resolvable:$true] %s462
          %465 = dma.hbm_to_vmem [thread:$0]  %s13, 16, %s463, [#allocation18]
        $region48: #{simple_block1d_pallas.1} parent=11 // pred_fallthru
          _
      $region12: #{simple_block1d_pallas.1} parent=5 // pred_fallthru
        _
      %p466 = scmp.lt.s32.totalorder %s32, 4
      // Predicated region
      $region49: #{simple_block1d_pallas.1} parent=5 // pred_check
        %p467 = pneg %p466
      $region50: #{simple_block1d_pallas.1} parent=5 // pred_check_branch
        %469 = sbr.rel (%p467) target = $region52
      $region51: #{simple_block1d_pallas.1} parent=5 // pred_region
        // Predicated region
        $region53: #{simple_block1d_pallas.1} parent=51 // pred_check
          %p470 = pneg %p157
        $region54: #{simple_block1d_pallas.1} parent=51 // pred_check_branch
          %472 = sbr.rel (%p470) target = $region56
        $region55: #{simple_block1d_pallas.1} parent=51 // pred_region
          %s473 = sand.u32 %s32, 1
          %s474 = scalar_lea.sflag [#allocation9], %s473
          %s475 = sand.u32 %s147, 1
          %s476 = smul.addr %s475, 1024
          %s477 = scalar_lea.vmem [#allocation8], %s476
          %s479 = ssub.s32 16384, 16384
          %480 = vsyncadd %s474, %s479
          %s481 = smul.addr %s32, 256
          %s482 = smul.addr %s481, 64
          %s483 = scalar_lea.hbm %s5, %s482
          %s484 = sshll.u32 %s477, 4
          %s485 = int_to_ptr.vmem [resolvable:$true] %s484
          %490 = dma.hbm_to_vmem [thread:$0]  %s483, 16384, %s485, %s474, 64, 64, 4
        $region56: #{simple_block1d_pallas.1} parent=51 // pred_fallthru
          _
        // Predicated region
        $region57: #{simple_block1d_pallas.1} parent=51 // pred_check
          %p491 = pneg %p183
        $region58: #{simple_block1d_pallas.1} parent=51 // pred_check_branch
          %493 = sbr.rel (%p491) target = $region60
        $region59: #{simple_block1d_pallas.1} parent=51 // pred_region
          %s494 = sand.u32 %s32, 1
          %s495 = scalar_lea.sflag [#allocation9], %s494
          %s496 = sand.u32 %s173, 1
          %s497 = smul.addr %s496, 128
          %s498 = scalar_lea.vmem [#allocation10], %s497
          %s500 = ssub.s32 2048, 2048
          %501 = vsyncadd %s495, %s500
          %s502 = smul.addr %s32, 16
          %s503 = smul.addr %s502, 128
          %s504 = scalar_lea.hbm %s6, %s503
          %s505 = sshll.u32 %s498, 4
          %s506 = int_to_ptr.vmem [resolvable:$true] %s505
          %511 = dma.hbm_to_vmem [thread:$0]  %s504, 2048, %s506, %s495, 128, 128, 8
        $region60: #{simple_block1d_pallas.1} parent=51 // pred_fallthru
          _
        // Predicated region
        $region61: #{simple_block1d_pallas.1} parent=51 // pred_check
          %p512 = pneg %p209
        $region62: #{simple_block1d_pallas.1} parent=51 // pred_check_branch
          %514 = sbr.rel (%p512) target = $region64
        $region63: #{simple_block1d_pallas.1} parent=51 // pred_region
          %s515 = sand.u32 %s32, 1
          %s516 = scalar_lea.sflag [#allocation12], %s515
          %s517 = sand.u32 %s199, 1
          %s518 = scalar_lea.vmem [#allocation11], %s517
          %s520 = ssub.s32 16, 16
          %521 = vsyncadd %s516, %s520
          %s522 = smul.addr %s32, 16
          %s523 = scalar_lea.hbm %s7, %s522
          %s525 = sshll.u32 %s518, 4
          %s526 = int_to_ptr.vmem [resolvable:$true] %s525
          %528 = dma.hbm_to_vmem [thread:$0]  %s523, 16, %s526, %s516
        $region64: #{simple_block1d_pallas.1} parent=51 // pred_fallthru
          _
        // Predicated region
        $region65: #{simple_block1d_pallas.1} parent=51 // pred_check
          %p529 = pneg %p235
        $region66: #{simple_block1d_pallas.1} parent=51 // pred_check_branch
          %531 = sbr.rel (%p529) target = $region68
        $region67: #{simple_block1d_pallas.1} parent=51 // pred_region
          %s532 = sand.u32 %s32, 1
          %s533 = scalar_lea.sflag [#allocation12], %s532
          %s534 = sand.u32 %s225, 1
          %s535 = scalar_lea.vmem [#allocation13], %s534
          %s537 = ssub.s32 16, 16
          %538 = vsyncadd %s533, %s537
          %s539 = smul.addr %s32, 16
          %s540 = scalar_lea.hbm %s8, %s539
          %s542 = sshll.u32 %s535, 4
          %s543 = int_to_ptr.vmem [resolvable:$true] %s542
          %545 = dma.hbm_to_vmem [thread:$0]  %s540, 16, %s543, %s533
        $region68: #{simple_block1d_pallas.1} parent=51 // pred_fallthru
          _
        // Predicated region
        $region69: #{simple_block1d_pallas.1} parent=51 // pred_check
          %p546 = pneg %p261
        $region70: #{simple_block1d_pallas.1} parent=51 // pred_check_branch
          %548 = sbr.rel (%p546) target = $region72
        $region71: #{simple_block1d_pallas.1} parent=51 // pred_region
          %s549 = sand.u32 %s32, 1
          %s550 = scalar_lea.sflag [#allocation15], %s549
          %s551 = sand.u32 %s251, 1
          %s552 = scalar_lea.vmem [#allocation14], %s551
          %s554 = ssub.s32 16, 16
          %555 = vsyncadd %s550, %s554
          %s556 = smul.addr %s32, 16
          %s557 = scalar_lea.hbm %s9, %s556
          %s559 = sshll.u32 %s552, 4
          %s560 = int_to_ptr.vmem [resolvable:$true] %s559
          %562 = dma.hbm_to_vmem [thread:$0]  %s557, 16, %s560, %s550
        $region72: #{simple_block1d_pallas.1} parent=51 // pred_fallthru
          _
      $region52: #{simple_block1d_pallas.1} parent=5 // pred_fallthru
        _
      %p563 = scmp.le.s32.totalorder 1, %s32
      %p564 = scmp.lt.s32.totalorder %s32, 5
      %p565 = pnand %p563, %p564
      %p566 = pneg %p565
      // Predicated region
      $region73: #{simple_block1d_pallas.1} parent=5 // pred_check
        _
      $region74: #{simple_block1d_pallas.1} parent=5 // pred_check_branch
        %568 = sbr.rel (%p565) target = $region76
      $region75: #{simple_block1d_pallas.1} parent=5 // pred_region
        %s569 = ssub.s32 %s32, 1
        // Predicated region
        $region77: #{simple_block1d_pallas.1} parent=75 // pred_check
          %p570 = pneg %p74
        $region78: #{simple_block1d_pallas.1} parent=75 // pred_check_branch
          %572 = sbr.rel (%p570) target = $region80
        $region79: #{simple_block1d_pallas.1} parent=75 // pred_region
          %573 = dma.done [#allocation4], 64
        $region80: #{simple_block1d_pallas.1} parent=75 // pred_fallthru
          _
        // Predicated region
        $region81: #{simple_block1d_pallas.1} parent=75 // pred_check
          %p574 = pneg %p95
        $region82: #{simple_block1d_pallas.1} parent=75 // pred_check_branch
          %576 = sbr.rel (%p574) target = $region84
        $region83: #{simple_block1d_pallas.1} parent=75 // pred_region
          %577 = dma.done [#allocation6], 16
        $region84: #{simple_block1d_pallas.1} parent=75 // pred_fallthru
          _
        // Predicated region
        $region85: #{simple_block1d_pallas.1} parent=75 // pred_check
          %p578 = pneg %p116
        $region86: #{simple_block1d_pallas.1} parent=75 // pred_check_branch
          %580 = sbr.rel (%p578) target = $region88
        $region87: #{simple_block1d_pallas.1} parent=75 // pred_region
          %581 = dma.done [#allocation6], 512
        $region88: #{simple_block1d_pallas.1} parent=75 // pred_fallthru
          _
        %s582 = sand.u32 %s37, 1
        %s583 = scalar_lea.sflag [#allocation9], %s582
        %s584 = sand.u32 %s150, 1
        %s585 = smul.addr %s584, 1024
        %s586 = scalar_lea.vmem [#allocation8], %s585
        // Predicated region
        $region89: #{simple_block1d_pallas.1} parent=75 // pred_check
          %p587 = pneg %p163
        $region90: #{simple_block1d_pallas.1} parent=75 // pred_check_branch
          %589 = sbr.rel (%p587) target = $region92
        $region91: #{simple_block1d_pallas.1} parent=75 // pred_region
          %590 = dma.done %s583, 16384
        $region92: #{simple_block1d_pallas.1} parent=75 // pred_fallthru
          _
        %s591 = sand.u32 %s37, 1
        %s592 = scalar_lea.sflag [#allocation9], %s591
        %s593 = sand.u32 %s176, 1
        %s594 = smul.addr %s593, 128
        %s595 = scalar_lea.vmem [#allocation10], %s594
        // Predicated region
        $region93: #{simple_block1d_pallas.1} parent=75 // pred_check
          %p596 = pneg %p189
        $region94: #{simple_block1d_pallas.1} parent=75 // pred_check_branch
          %598 = sbr.rel (%p596) target = $region96
        $region95: #{simple_block1d_pallas.1} parent=75 // pred_region
          %599 = dma.done %s592, 2048
        $region96: #{simple_block1d_pallas.1} parent=75 // pred_fallthru
          _
        %s600 = sand.u32 %s37, 1
        %s601 = scalar_lea.sflag [#allocation12], %s600
        %s602 = sand.u32 %s202, 1
        %s603 = scalar_lea.vmem [#allocation11], %s602
        // Predicated region
        $region97: #{simple_block1d_pallas.1} parent=75 // pred_check
          %p604 = pneg %p215
        $region98: #{simple_block1d_pallas.1} parent=75 // pred_check_branch
          %606 = sbr.rel (%p604) target = $region100
        $region99: #{simple_block1d_pallas.1} parent=75 // pred_region
          %607 = dma.done %s601, 16
        $region100: #{simple_block1d_pallas.1} parent=75 // pred_fallthru
          _
        %s608 = sand.u32 %s37, 1
        %s609 = scalar_lea.sflag [#allocation12], %s608
        %s610 = sand.u32 %s228, 1
        %s611 = scalar_lea.vmem [#allocation13], %s610
        // Predicated region
        $region101: #{simple_block1d_pallas.1} parent=75 // pred_check
          %p612 = pneg %p241
        $region102: #{simple_block1d_pallas.1} parent=75 // pred_check_branch
          %614 = sbr.rel (%p612) target = $region104
        $region103: #{simple_block1d_pallas.1} parent=75 // pred_region
          %615 = dma.done %s609, 16
        $region104: #{simple_block1d_pallas.1} parent=75 // pred_fallthru
          _
        %s616 = sand.u32 %s37, 1
        %s617 = scalar_lea.sflag [#allocation15], %s616
        %s618 = sand.u32 %s254, 1
        %s619 = scalar_lea.vmem [#allocation14], %s618
        // Predicated region
        $region105: #{simple_block1d_pallas.1} parent=75 // pred_check
          %p620 = pneg %p267
        $region106: #{simple_block1d_pallas.1} parent=75 // pred_check_branch
          %622 = sbr.rel (%p620) target = $region108
        $region107: #{simple_block1d_pallas.1} parent=75 // pred_region
          %623 = dma.done %s617, 16
        $region108: #{simple_block1d_pallas.1} parent=75 // pred_fallthru
          _
        // Predicated region
        $region109: #{simple_block1d_pallas.1} parent=75 // pred_check
          %p624 = pneg %p288
        $region110: #{simple_block1d_pallas.1} parent=75 // pred_check_branch
          %626 = sbr.rel (%p624) target = $region112
        $region111: #{simple_block1d_pallas.1} parent=75 // pred_region
          %627 = dma.done [#allocation15], 4096
        $region112: #{simple_block1d_pallas.1} parent=75 // pred_fallthru
          _
        // Predicated region
        $region113: #{simple_block1d_pallas.1} parent=75 // pred_check
          %p628 = pneg %p309
        $region114: #{simple_block1d_pallas.1} parent=75 // pred_check_branch
          %630 = sbr.rel (%p628) target = $region116
        $region115: #{simple_block1d_pallas.1} parent=75 // pred_region
          %631 = dma.done [#allocation18], 32
        $region116: #{simple_block1d_pallas.1} parent=75 // pred_fallthru
          _
        // Predicated region
        $region117: #{simple_block1d_pallas.1} parent=75 // pred_check
          %p632 = pneg %p351
        $region118: #{simple_block1d_pallas.1} parent=75 // pred_check_branch
          %634 = sbr.rel (%p632) target = $region120
        $region119: #{simple_block1d_pallas.1} parent=75 // pred_region
          %635 = dma.done [#allocation18], 16
        $region120: #{simple_block1d_pallas.1} parent=75 // pred_fallthru
          _
        %p636 = pneg %p53
        %p637 = pneg %p50
        %p638 = pneg %p74
        %p639 = pneg %p71
        %p640 = pneg %p95
        %p641 = pneg %p92
        %p642 = pneg %p116
        %p643 = pneg %p113
        %p644 = pneg %p137
        %p645 = pneg %p134
        %s646 = sand.u32 %s37, 1
        %s647 = scalar_lea.sflag [#allocation9], %s646
        %s648 = sand.u32 %s150, 1
        %s649 = smul.addr %s648, 1024
        %s650 = scalar_lea.vmem [#allocation8], %s649
        %p651 = pneg %p163
        %p652 = pneg %p160
        %s653 = sand.u32 %s37, 1
        %s654 = scalar_lea.sflag [#allocation9], %s653
        %s655 = sand.u32 %s176, 1
        %s656 = smul.addr %s655, 128
        %s657 = scalar_lea.vmem [#allocation10], %s656
        %p658 = pneg %p189
        %p659 = pneg %p186
        %s660 = sand.u32 %s37, 1
        %s661 = scalar_lea.sflag [#allocation12], %s660
        %s662 = sand.u32 %s202, 1
        %s663 = scalar_lea.vmem [#allocation11], %s662
        %p664 = pneg %p215
        %p665 = pneg %p212
        %s666 = sand.u32 %s37, 1
        %s667 = scalar_lea.sflag [#allocation12], %s666
        %s668 = sand.u32 %s228, 1
        %s669 = scalar_lea.vmem [#allocation13], %s668
        %p670 = pneg %p241
        %p671 = pneg %p238
        %s672 = sand.u32 %s37, 1
        %s673 = scalar_lea.sflag [#allocation15], %s672
        %s674 = sand.u32 %s254, 1
        %s675 = scalar_lea.vmem [#allocation14], %s674
        %p676 = pneg %p267
        %p677 = pneg %p264
        %p678 = pneg %p288
        %p679 = pneg %p285
        %p680 = pneg %p309
        %p681 = pneg %p306
        %p682 = pneg %p330
        %p683 = pneg %p327
        %p684 = pneg %p351
        %p685 = pneg %p348
        %p686 = pneg %p372
        %p687 = pneg %p369
        %p689 = scmp.eq.s32.totalorder %s37, 0
        // Predicated region
        $region121: #{simple_block1d_pallas.1} parent=75 // pred_check
          %p690 = pneg %p689
        $region122: #{simple_block1d_pallas.1} parent=75 // pred_check_branch
          %692 = sbr.rel (%p690) target = $region124
        $region123: #{simple_block1d_pallas.1} parent=75 // pred_region
          %v693 = vld [vmem:[%s0] sm:$0xff]
          %v694 = vld [vmem:[%s0 + $0x8] sm:$0xff]
          %v695 = vld [vmem:[%s0 + $0x10] sm:$0xff]
          %v696 = vld [vmem:[%s0 + $0x18] sm:$0xff]
          %v697 = vld [vmem:[%s0 + $0x20] sm:$0xff]
          %v698 = vld [vmem:[%s0 + $0x28] sm:$0xff]
          %v699 = vld [vmem:[%s0 + $0x30] sm:$0xff]
          %v700 = vld [vmem:[%s0 + $0x38] sm:$0xff]
          %v701 = vld [vmem:[#allocation3] sm:$0xf]
          %v702 = vld [vmem:[#allocation5] sm:$0x1]
          %v704 = vlaneseq
          %v705 = vshrl.u32 %v704, 7
          %v706 = vsub.s32 0, %v705
          %v707 = vrot.slane %v702, %v706
          %vm709 = vcmask 31744
          %v711 = vsel %vm709, %v693, 0
          %v714 = vsel %vm709, %v694, 0
          %v717 = vsel %vm709, %v695, 0
          %v720 = vsel %vm709, %v696, 0
          %v723 = vsel %vm709, %v697, 0
          %v726 = vsel %vm709, %v698, 0
          %v729 = vsel %vm709, %v699, 0
          %v732 = vsel %vm709, %v700, 0
          %vm734 = vcmask 1043456
          %v736 = vsel %vm734, %v701, 0
          %738 = vmatprep.subr.mxu0 0.0
          %739 = vmatpush1.msra.mxu0 0.0
          %740 = vmatprep.subr.mxu0 0.0
          %741 = vmatpush1.msra.mxu0 0.0
          %742 = vmatprep.subr.mxu0 0.0
          %743 = vmatpush1.msra.mxu0 0.0
          %744 = vmatprep.subr.mxu0 0.0
          %745 = vmatpush1.msra.mxu0 0.0
          %746 = vmatprep.subr.mxu0 0.0
          %747 = vmatpush1.msra.mxu0 0.0
          %748 = vmatprep.subr.mxu0 0.0
          %749 = vmatpush1.msra.mxu0 0.0
          %750 = vmatprep.subr.mxu0 0.0
          %751 = vmatpush1.msra.mxu0 0.0
          %752 = vmatprep.subr.mxu0 0.0
          %753 = vmatpush1.msra.mxu0 0.0
          %754 = vmatprep.subr.mxu0 0.0
          %755 = vmatpush1.msra.mxu0 0.0
          %756 = vmatprep.subr.mxu0 0.0
          %757 = vmatpush1.msra.mxu0 0.0
          %758 = vmatprep.subr.mxu0 0.0
          %759 = vmatpush1.msra.mxu0 0.0
          %760 = vmatprep.subr.mxu0 0.0
          %761 = vmatpush1.msra.mxu0 0.0
          %762 = vmatprep.subr.mxu0 0.0
          %763 = vmatpush1.msra.mxu0 0.0
          %764 = vmatprep.subr.mxu0 0.0
          %765 = vmatpush1.msra.mxu0 0.0
          %766 = vmatprep.subr.mxu0 0.0
          %767 = vmatpush1.msra.mxu0 0.0
          %768 = vmatprep.subr.mxu0 0.0
          %769 = vmatpush1.msra.mxu0 %v736
          %770 = vmatprep.subr.mxu0 0.0
          %771 = vmatpush2.msra.mxu0 0.0
          %772 = vmatprep.subr.mxu0 0.0
          %773 = vmatpush2.msra.mxu0 0.0
          %774 = vmatprep.subr.mxu0 0.0
          %775 = vmatpush2.msra.mxu0 0.0
          %776 = vmatprep.subr.mxu0 0.0
          %777 = vmatpush2.msra.mxu0 0.0
          %778 = vmatprep.subr.mxu0 0.0
          %779 = vmatpush2.msra.mxu0 0.0
          %780 = vmatprep.subr.mxu0 0.0
          %781 = vmatpush2.msra.mxu0 0.0
          %782 = vmatprep.subr.mxu0 0.0
          %783 = vmatpush2.msra.mxu0 0.0
          %784 = vmatprep.subr.mxu0 0.0
          %785 = vmatpush2.msra.mxu0 0.0
          %786 = vmatprep.subr.mxu0 0.0
          %787 = vmatpush2.msra.mxu0 0.0
          %788 = vmatprep.subr.mxu0 0.0
          %789 = vmatpush2.msra.mxu0 0.0
          %790 = vmatprep.subr.mxu0 0.0
          %791 = vmatpush2.msra.mxu0 0.0
          %792 = vmatprep.subr.mxu0 0.0
          %793 = vmatpush2.msra.mxu0 0.0
          %794 = vmatprep.subr.mxu0 0.0
          %795 = vmatpush2.msra.mxu0 0.0
          %796 = vmatprep.subr.mxu0 0.0
          %797 = vmatpush2.msra.mxu0 0.0
          %798 = vmatprep.subr.mxu0 0.0
          %799 = vmatpush2.msra.mxu0 0.0
          %800 = vmatprep.subr.mxu0 0.0
          %801 = vmatpush2.msra.mxu0 0.0
          %802 = vmatprep.mubr.f32.mxu0 0.0
          %803 = vmatmul.mubr.f32.gmra.mxu0 %v711
          %v804 = vpop.f32.mrf.mxu0
          %v805 = vadd.f32 %v707, %v804
          %v806 = vpop.f32.mrf.mxu0
          %807 = vmatprep.mubr.f32.mxu0 0.0
          %808 = vmatmul.mubr.f32.gmra.mxu0 %v714
          %v809 = vpop.f32.mrf.mxu0
          %v810 = vadd.f32 %v707, %v809
          %v811 = vpop.f32.mrf.mxu0
          %812 = vmatprep.mubr.f32.mxu0 0.0
          %813 = vmatmul.mubr.f32.gmra.mxu0 %v717
          %v814 = vpop.f32.mrf.mxu0
          %v815 = vadd.f32 %v707, %v814
          %v816 = vpop.f32.mrf.mxu0
          %817 = vmatprep.mubr.f32.mxu0 0.0
          %818 = vmatmul.mubr.f32.gmra.mxu0 %v720
          %v819 = vpop.f32.mrf.mxu0
          %v820 = vadd.f32 %v707, %v819
          %v821 = vpop.f32.mrf.mxu0
          %822 = vmatprep.mubr.f32.mxu0 0.0
          %823 = vmatmul.mubr.f32.gmra.mxu0 %v723
          %v824 = vpop.f32.mrf.mxu0
          %v825 = vadd.f32 %v707, %v824
          %v826 = vpop.f32.mrf.mxu0
          %827 = vmatprep.mubr.f32.mxu0 0.0
          %828 = vmatmul.mubr.f32.gmra.mxu0 %v726
          %v829 = vpop.f32.mrf.mxu0
          %v830 = vadd.f32 %v707, %v829
          %v831 = vpop.f32.mrf.mxu0
          %832 = vmatprep.mubr.f32.mxu0 0.0
          %833 = vmatmul.mubr.f32.gmra.mxu0 %v729
          %v834 = vpop.f32.mrf.mxu0
          %v835 = vadd.f32 %v707, %v834
          %v836 = vpop.f32.mrf.mxu0
          %837 = vmatprep.mubr.f32.mxu0 0.0
          %838 = vmatmul.mubr.f32.gmra.mxu0 %v732
          %v839 = vpop.f32.mrf.mxu0
          %v840 = vadd.f32 %v707, %v839
          %v841 = vpop.f32.mrf.mxu0
          %842 = vdwg.mxu0
          %843 = vst [vmem:[#allocation2] sm:$0xff] %v805
          %844 = vst [vmem:[#allocation2 + $0x8] sm:$0xff] %v810
          %845 = vst [vmem:[#allocation2 + $0x10] sm:$0xff] %v815
          %846 = vst [vmem:[#allocation2 + $0x18] sm:$0xff] %v820
          %847 = vst [vmem:[#allocation2 + $0x20] sm:$0xff] %v825
          %848 = vst [vmem:[#allocation2 + $0x28] sm:$0xff] %v830
          %849 = vst [vmem:[#allocation2 + $0x30] sm:$0xff] %v835
          %850 = vst [vmem:[#allocation2 + $0x38] sm:$0xff] %v840
        $region124: #{simple_block1d_pallas.1} parent=75 // pred_fallthru
          _
        %v851 = vld [vmem:[#allocation2] sm:$0xff]
        %v852 = vld [vmem:[#allocation2 + $0x8] sm:$0xff]
        %v853 = vld [vmem:[#allocation2 + $0x10] sm:$0xff]
        %v854 = vld [vmem:[#allocation2 + $0x18] sm:$0xff]
        %v855 = vld [vmem:[#allocation2 + $0x20] sm:$0xff]
        %v856 = vld [vmem:[#allocation2 + $0x28] sm:$0xff]
        %v857 = vld [vmem:[#allocation2 + $0x30] sm:$0xff]
        %v858 = vld [vmem:[#allocation2 + $0x38] sm:$0xff]
        %v859 = vld [vmem:[#allocation7] sm:$0xff]
        %v860 = vld [vmem:[#allocation7 + $0x8] sm:$0xff]
        %v861 = vld [vmem:[#allocation7 + $0x10] sm:$0xff]
        %v862 = vld [vmem:[#allocation7 + $0x18] sm:$0xff]
        %vm863 = vcmask 523264
        %v865 = vsel %vm863, %v859, 0
        %v868 = vsel %vm863, %v860, 0
        %v871 = vsel %vm863, %v861, 0
        %v874 = vsel %vm863, %v862, 0
        %876 = vmatprep.subr.mxu0 0.0
        %877 = vmatpush1.msra.mxu0 0.0
        %878 = vmatprep.subr.mxu0 0.0
        %879 = vmatpush1.msra.mxu0 0.0
        %880 = vmatprep.subr.mxu0 0.0
        %881 = vmatpush1.msra.mxu0 0.0
        %882 = vmatprep.subr.mxu0 0.0
        %883 = vmatpush1.msra.mxu0 0.0
        %884 = vmatprep.subr.mxu0 0.0
        %885 = vmatpush1.msra.mxu0 0.0
        %886 = vmatprep.subr.mxu0 0.0
        %887 = vmatpush1.msra.mxu0 0.0
        %888 = vmatprep.subr.mxu0 0.0
        %889 = vmatpush1.msra.mxu0 0.0
        %890 = vmatprep.subr.mxu0 0.0
        %891 = vmatpush1.msra.mxu0 0.0
        %892 = vmatprep.subr.mxu0 0.0
        %893 = vmatpush1.msra.mxu0 %v858
        %894 = vmatprep.subr.mxu0 0.0
        %895 = vmatpush1.msra.mxu0 %v857
        %896 = vmatprep.subr.mxu0 0.0
        %897 = vmatpush1.msra.mxu0 %v856
        %898 = vmatprep.subr.mxu0 0.0
        %899 = vmatpush1.msra.mxu0 %v855
        %900 = vmatprep.subr.mxu0 0.0
        %901 = vmatpush1.msra.mxu0 %v854
        %902 = vmatprep.subr.mxu0 0.0
        %903 = vmatpush1.msra.mxu0 %v853
        %904 = vmatprep.subr.mxu0 0.0
        %905 = vmatpush1.msra.mxu0 %v852
        %906 = vmatprep.subr.mxu0 0.0
        %907 = vmatpush1.msra.mxu0 %v851
        %908 = vmatprep.subr.mxu0 0.0
        %909 = vmatpush2.msra.mxu0 0.0
        %910 = vmatprep.subr.mxu0 0.0
        %911 = vmatpush2.msra.mxu0 0.0
        %912 = vmatprep.subr.mxu0 0.0
        %913 = vmatpush2.msra.mxu0 0.0
        %914 = vmatprep.subr.mxu0 0.0
        %915 = vmatpush2.msra.mxu0 0.0
        %916 = vmatprep.subr.mxu0 0.0
        %917 = vmatpush2.msra.mxu0 0.0
        %918 = vmatprep.subr.mxu0 0.0
        %919 = vmatpush2.msra.mxu0 0.0
        %920 = vmatprep.subr.mxu0 0.0
        %921 = vmatpush2.msra.mxu0 0.0
        %922 = vmatprep.subr.mxu0 0.0
        %923 = vmatpush2.msra.mxu0 0.0
        %924 = vmatprep.subr.mxu0 0.0
        %925 = vmatpush2.msra.mxu0 0.0
        %926 = vmatprep.subr.mxu0 0.0
        %927 = vmatpush2.msra.mxu0 0.0
        %928 = vmatprep.subr.mxu0 0.0
        %929 = vmatpush2.msra.mxu0 0.0
        %930 = vmatprep.subr.mxu0 0.0
        %931 = vmatpush2.msra.mxu0 0.0
        %932 = vmatprep.subr.mxu0 0.0
        %933 = vmatpush2.msra.mxu0 0.0
        %934 = vmatprep.subr.mxu0 0.0
        %935 = vmatpush2.msra.mxu0 0.0
        %936 = vmatprep.subr.mxu0 0.0
        %937 = vmatpush2.msra.mxu0 0.0
        %938 = vmatprep.subr.mxu0 0.0
        %939 = vmatpush2.msra.mxu0 0.0
        %940 = vmatprep.mubr.f32.mxu0 0.0
        %941 = vmatmul.mubr.f32.gmra.mxu0 %v865
        %v942 = vpop.f32.mrf.mxu0
        %v943 = vadd.f32 0.0, %v942
        %v944 = vpop.f32.mrf.mxu0
        %945 = vmatprep.mubr.f32.mxu0 0.0
        %946 = vmatmul.mubr.f32.gmra.mxu0 %v868
        %v947 = vpop.f32.mrf.mxu0
        %v948 = vadd.f32 0.0, %v947
        %v949 = vpop.f32.mrf.mxu0
        %950 = vmatprep.mubr.f32.mxu0 0.0
        %951 = vmatmul.mubr.f32.gmra.mxu0 %v871
        %v952 = vpop.f32.mrf.mxu0
        %v953 = vadd.f32 0.0, %v952
        %v954 = vpop.f32.mrf.mxu0
        %955 = vmatprep.mubr.f32.mxu0 0.0
        %956 = vmatmul.mubr.f32.gmra.mxu0 %v874
        %v957 = vpop.f32.mrf.mxu0
        %v958 = vadd.f32 0.0, %v957
        %v959 = vpop.f32.mrf.mxu0
        %960 = vdwg.mxu0
        %963 = vrot.lane.b32.xlu0 %v943, 64
        %v964 = vpop.permute.xlu0 %963
        %965 = vrot.lane.b32.xlu0 %v948, 64
        %v966 = vpop.permute.xlu0 %965
        %v969 = vcombine.high %v943, 0.0
        %v971 = vunpack.c.l.s4 1983009808
        %v972 = vunpack.c.0.s8 %v971
        %v973 = vlaneseq
        %v974 = vshrl.u32 %v973, 7
        %v975 = vsub.s32 %v972, %v974
        %v976 = vrot.slane %v943, %v975
        %v978 = vunpack.c.l.s4 1983009808
        %v979 = vunpack.c.0.s8 %v978
        %v980 = vlaneseq
        %v981 = vshrl.u32 %v980, 7
        %v982 = vsub.s32 %v979, %v981
        %v983 = vrot.slane %v969, %v982
        %v984 = vcombine.high %v964, 0.0
        %v986 = vunpack.c.l.s4 1983009808
        %v987 = vunpack.c.0.s8 %v986
        %v988 = vlaneseq
        %v989 = vshrl.u32 %v988, 7
        %v990 = vsub.s32 %v987, %v989
        %v991 = vrot.slane %v964, %v990
        %v993 = vunpack.c.l.s4 1983009808
        %v994 = vunpack.c.0.s8 %v993
        %v995 = vlaneseq
        %v996 = vshrl.u32 %v995, 7
        %v997 = vsub.s32 %v994, %v996
        %v998 = vrot.slane %v984, %v997
        %v999 = vcombine.low %v976, %v991
        %v1000 = vcombine.high %v976, %v991
        %v1002 = vunpack.c.l.s4 1934713408
        %v1003 = vunpack.c.0.s8 %v1002
        %v1004 = vlaneseq
        %v1005 = vshrl.u32 %v1004, 7
        %v1006 = vsub.s32 %v1003, %v1005
        %v1007 = vrot.slane %v999, %v1006
        %v1009 = vunpack.c.l.s4 1934713408
        %v1010 = vunpack.c.0.s8 %v1009
        %v1011 = vlaneseq
        %v1012 = vshrl.u32 %v1011, 7
        %v1013 = vsub.s32 %v1010, %v1012
        %v1014 = vrot.slane %v1000, %v1013
        %v1015 = vcombine.low %v983, %v998
        %v1016 = vcombine.high %v983, %v998
        %v1018 = vunpack.c.l.s4 1934713408
        %v1019 = vunpack.c.0.s8 %v1018
        %v1020 = vlaneseq
        %v1021 = vshrl.u32 %v1020, 7
        %v1022 = vsub.s32 %v1019, %v1021
        %v1023 = vrot.slane %v1015, %v1022
        %v1025 = vunpack.c.l.s4 1934713408
        %v1026 = vunpack.c.0.s8 %v1025
        %v1027 = vlaneseq
        %v1028 = vshrl.u32 %v1027, 7
        %v1029 = vsub.s32 %v1026, %v1028
        %v1030 = vrot.slane %v1016, %v1029
        %v1031 = vcombine.high %v1007, 0.0
        %v1032 = vcombine.high %v1014, 0.0
        %v1033 = vcombine.high %v1023, 0.0
        %v1034 = vcombine.high %v1030, 0.0
        %v1035 = vcombine.high %v948, 0.0
        %v1037 = vunpack.c.l.s4 1983009808
        %v1038 = vunpack.c.0.s8 %v1037
        %v1039 = vlaneseq
        %v1040 = vshrl.u32 %v1039, 7
        %v1041 = vsub.s32 %v1038, %v1040
        %v1042 = vrot.slane %v948, %v1041
        %v1044 = vunpack.c.l.s4 1983009808
        %v1045 = vunpack.c.0.s8 %v1044
        %v1046 = vlaneseq
        %v1047 = vshrl.u32 %v1046, 7
        %v1048 = vsub.s32 %v1045, %v1047
        %v1049 = vrot.slane %v1035, %v1048
        %v1050 = vcombine.high %v966, 0.0
        %v1052 = vunpack.c.l.s4 1983009808
        %v1053 = vunpack.c.0.s8 %v1052
        %v1054 = vlaneseq
        %v1055 = vshrl.u32 %v1054, 7
        %v1056 = vsub.s32 %v1053, %v1055
        %v1057 = vrot.slane %v966, %v1056
        %v1059 = vunpack.c.l.s4 1983009808
        %v1060 = vunpack.c.0.s8 %v1059
        %v1061 = vlaneseq
        %v1062 = vshrl.u32 %v1061, 7
        %v1063 = vsub.s32 %v1060, %v1062
        %v1064 = vrot.slane %v1050, %v1063
        %v1065 = vcombine.low %v1042, %v1057
        %v1066 = vcombine.high %v1042, %v1057
        %v1068 = vunpack.c.l.s4 1934713408
        %v1069 = vunpack.c.0.s8 %v1068
        %v1070 = vlaneseq
        %v1071 = vshrl.u32 %v1070, 7
        %v1072 = vsub.s32 %v1069, %v1071
        %v1073 = vrot.slane %v1065, %v1072
        %v1075 = vunpack.c.l.s4 1934713408
        %v1076 = vunpack.c.0.s8 %v1075
        %v1077 = vlaneseq
        %v1078 = vshrl.u32 %v1077, 7
        %v1079 = vsub.s32 %v1076, %v1078
        %v1080 = vrot.slane %v1066, %v1079
        %v1081 = vcombine.low %v1049, %v1064
        %v1082 = vcombine.high %v1049, %v1064
        %v1084 = vunpack.c.l.s4 1934713408
        %v1085 = vunpack.c.0.s8 %v1084
        %v1086 = vlaneseq
        %v1087 = vshrl.u32 %v1086, 7
        %v1088 = vsub.s32 %v1085, %v1087
        %v1089 = vrot.slane %v1081, %v1088
        %v1091 = vunpack.c.l.s4 1934713408
        %v1092 = vunpack.c.0.s8 %v1091
        %v1093 = vlaneseq
        %v1094 = vshrl.u32 %v1093, 7
        %v1095 = vsub.s32 %v1092, %v1094
        %v1096 = vrot.slane %v1082, %v1095
        %v1097 = vcombine.high %v1073, 0.0
        %v1098 = vcombine.high %v1080, 0.0
        %v1099 = vcombine.high %v1089, 0.0
        %v1100 = vcombine.high %v1096, 0.0
        %1103 = vrot.lane.b32.xlu0 %v953, 64
        %v1104 = vpop.permute.xlu0 %1103
        %1105 = vrot.lane.b32.xlu0 %v958, 64
        %v1106 = vpop.permute.xlu0 %1105
        %v1109 = vcombine.high %v953, 0.0
        %v1111 = vunpack.c.l.s4 1983009808
        %v1112 = vunpack.c.0.s8 %v1111
        %v1113 = vlaneseq
        %v1114 = vshrl.u32 %v1113, 7
        %v1115 = vsub.s32 %v1112, %v1114
        %v1116 = vrot.slane %v953, %v1115
        %v1118 = vunpack.c.l.s4 1983009808
        %v1119 = vunpack.c.0.s8 %v1118
        %v1120 = vlaneseq
        %v1121 = vshrl.u32 %v1120, 7
        %v1122 = vsub.s32 %v1119, %v1121
        %v1123 = vrot.slane %v1109, %v1122
        %v1124 = vcombine.high %v1104, 0.0
        %v1126 = vunpack.c.l.s4 1983009808
        %v1127 = vunpack.c.0.s8 %v1126
        %v1128 = vlaneseq
        %v1129 = vshrl.u32 %v1128, 7
        %v1130 = vsub.s32 %v1127, %v1129
        %v1131 = vrot.slane %v1104, %v1130
        %v1133 = vunpack.c.l.s4 1983009808
        %v1134 = vunpack.c.0.s8 %v1133
        %v1135 = vlaneseq
        %v1136 = vshrl.u32 %v1135, 7
        %v1137 = vsub.s32 %v1134, %v1136
        %v1138 = vrot.slane %v1124, %v1137
        %v1139 = vcombine.low %v1116, %v1131
        %v1140 = vcombine.high %v1116, %v1131
        %v1142 = vunpack.c.l.s4 1934713408
        %v1143 = vunpack.c.0.s8 %v1142
        %v1144 = vlaneseq
        %v1145 = vshrl.u32 %v1144, 7
        %v1146 = vsub.s32 %v1143, %v1145
        %v1147 = vrot.slane %v1139, %v1146
        %v1149 = vunpack.c.l.s4 1934713408
        %v1150 = vunpack.c.0.s8 %v1149
        %v1151 = vlaneseq
        %v1152 = vshrl.u32 %v1151, 7
        %v1153 = vsub.s32 %v1150, %v1152
        %v1154 = vrot.slane %v1140, %v1153
        %v1155 = vcombine.low %v1123, %v1138
        %v1156 = vcombine.high %v1123, %v1138
        %v1158 = vunpack.c.l.s4 1934713408
        %v1159 = vunpack.c.0.s8 %v1158
        %v1160 = vlaneseq
        %v1161 = vshrl.u32 %v1160, 7
        %v1162 = vsub.s32 %v1159, %v1161
        %v1163 = vrot.slane %v1155, %v1162
        %v1165 = vunpack.c.l.s4 1934713408
        %v1166 = vunpack.c.0.s8 %v1165
        %v1167 = vlaneseq
        %v1168 = vshrl.u32 %v1167, 7
        %v1169 = vsub.s32 %v1166, %v1168
        %v1170 = vrot.slane %v1156, %v1169
        %v1171 = vcombine.high %v1147, 0.0
        %v1172 = vcombine.high %v1154, 0.0
        %v1173 = vcombine.high %v1163, 0.0
        %v1174 = vcombine.high %v1170, 0.0
        %v1175 = vcombine.high %v958, 0.0
        %v1177 = vunpack.c.l.s4 1983009808
        %v1178 = vunpack.c.0.s8 %v1177
        %v1179 = vlaneseq
        %v1180 = vshrl.u32 %v1179, 7
        %v1181 = vsub.s32 %v1178, %v1180
        %v1182 = vrot.slane %v958, %v1181
        %v1184 = vunpack.c.l.s4 1983009808
        %v1185 = vunpack.c.0.s8 %v1184
        %v1186 = vlaneseq
        %v1187 = vshrl.u32 %v1186, 7
        %v1188 = vsub.s32 %v1185, %v1187
        %v1189 = vrot.slane %v1175, %v1188
        %v1190 = vcombine.high %v1106, 0.0
        %v1192 = vunpack.c.l.s4 1983009808
        %v1193 = vunpack.c.0.s8 %v1192
        %v1194 = vlaneseq
        %v1195 = vshrl.u32 %v1194, 7
        %v1196 = vsub.s32 %v1193, %v1195
        %v1197 = vrot.slane %v1106, %v1196
        %v1199 = vunpack.c.l.s4 1983009808
        %v1200 = vunpack.c.0.s8 %v1199
        %v1201 = vlaneseq
        %v1202 = vshrl.u32 %v1201, 7
        %v1203 = vsub.s32 %v1200, %v1202
        %v1204 = vrot.slane %v1190, %v1203
        %v1205 = vcombine.low %v1182, %v1197
        %v1206 = vcombine.high %v1182, %v1197
        %v1208 = vunpack.c.l.s4 1934713408
        %v1209 = vunpack.c.0.s8 %v1208
        %v1210 = vlaneseq
        %v1211 = vshrl.u32 %v1210, 7
        %v1212 = vsub.s32 %v1209, %v1211
        %v1213 = vrot.slane %v1205, %v1212
        %v1215 = vunpack.c.l.s4 1934713408
        %v1216 = vunpack.c.0.s8 %v1215
        %v1217 = vlaneseq
        %v1218 = vshrl.u32 %v1217, 7
        %v1219 = vsub.s32 %v1216, %v1218
        %v1220 = vrot.slane %v1206, %v1219
        %v1221 = vcombine.low %v1189, %v1204
        %v1222 = vcombine.high %v1189, %v1204
        %v1224 = vunpack.c.l.s4 1934713408
        %v1225 = vunpack.c.0.s8 %v1224
        %v1226 = vlaneseq
        %v1227 = vshrl.u32 %v1226, 7
        %v1228 = vsub.s32 %v1225, %v1227
        %v1229 = vrot.slane %v1221, %v1228
        %v1231 = vunpack.c.l.s4 1934713408
        %v1232 = vunpack.c.0.s8 %v1231
        %v1233 = vlaneseq
        %v1234 = vshrl.u32 %v1233, 7
        %v1235 = vsub.s32 %v1232, %v1234
        %v1236 = vrot.slane %v1222, %v1235
        %v1237 = vcombine.high %v1213, 0.0
        %v1238 = vcombine.high %v1220, 0.0
        %v1239 = vcombine.high %v1229, 0.0
        %v1240 = vcombine.high %v1236, 0.0
        %1257 = vrot.lane.b32.xlu0 %v1147, 64
        %v1258 = vpop.permute.xlu0 %1257
        %1259 = vrot.lane.b32.xlu0 %v1171, 64
        %v1260 = vpop.permute.xlu0 %1259
        %1261 = vrot.lane.b32.xlu0 %v1154, 64
        %v1262 = vpop.permute.xlu0 %1261
        %1263 = vrot.lane.b32.xlu0 %v1172, 64
        %v1264 = vpop.permute.xlu0 %1263
        %1265 = vrot.lane.b32.xlu0 %v1163, 64
        %v1266 = vpop.permute.xlu0 %1265
        %1267 = vrot.lane.b32.xlu0 %v1173, 64
        %v1268 = vpop.permute.xlu0 %1267
        %1269 = vrot.lane.b32.xlu0 %v1170, 64
        %v1270 = vpop.permute.xlu0 %1269
        %1271 = vrot.lane.b32.xlu0 %v1174, 64
        %v1272 = vpop.permute.xlu0 %1271
        %1273 = vrot.lane.b32.xlu0 %v1213, 64
        %v1274 = vpop.permute.xlu0 %1273
        %1275 = vrot.lane.b32.xlu0 %v1237, 64
        %v1276 = vpop.permute.xlu0 %1275
        %1277 = vrot.lane.b32.xlu0 %v1220, 64
        %v1278 = vpop.permute.xlu0 %1277
        %1279 = vrot.lane.b32.xlu0 %v1238, 64
        %v1280 = vpop.permute.xlu0 %1279
        %1281 = vrot.lane.b32.xlu0 %v1229, 64
        %v1282 = vpop.permute.xlu0 %1281
        %1283 = vrot.lane.b32.xlu0 %v1239, 64
        %v1284 = vpop.permute.xlu0 %1283
        %1285 = vrot.lane.b32.xlu0 %v1236, 64
        %v1286 = vpop.permute.xlu0 %1285
        %1287 = vrot.lane.b32.xlu0 %v1240, 64
        %v1288 = vpop.permute.xlu0 %1287
        %v1305 = vsel %vm863, %v1007, %v1258
        %v1306 = vsel %vm863, %v1031, %v1260
        %v1307 = vsel %vm863, %v1014, %v1262
        %v1308 = vsel %vm863, %v1032, %v1264
        %v1309 = vsel %vm863, %v1023, %v1266
        %v1310 = vsel %vm863, %v1033, %v1268
        %v1311 = vsel %vm863, %v1030, %v1270
        %v1312 = vsel %vm863, %v1034, %v1272
        %v1313 = vsel %vm863, %v1073, %v1274
        %v1314 = vsel %vm863, %v1097, %v1276
        %v1315 = vsel %vm863, %v1080, %v1278
        %v1316 = vsel %vm863, %v1098, %v1280
        %v1317 = vsel %vm863, %v1089, %v1282
        %v1318 = vsel %vm863, %v1099, %v1284
        %v1319 = vsel %vm863, %v1096, %v1286
        %v1320 = vsel %vm863, %v1100, %v1288
        %v1321 = vpack.c.bf16 %v1305, %v1305
        %v1322 = vpack.c.bf16 %v1306, %v1306
        %v1323 = vpack.c.bf16 %v1307, %v1307
        %v1324 = vpack.c.bf16 %v1308, %v1308
        %v1325 = vpack.c.bf16 %v1309, %v1309
        %v1326 = vpack.c.bf16 %v1310, %v1310
        %v1327 = vpack.c.bf16 %v1311, %v1311
        %v1328 = vpack.c.bf16 %v1312, %v1312
        %v1329 = vpack.c.bf16 %v1313, %v1313
        %v1330 = vpack.c.bf16 %v1314, %v1314
        %v1331 = vpack.c.bf16 %v1315, %v1315
        %v1332 = vpack.c.bf16 %v1316, %v1316
        %v1333 = vpack.c.bf16 %v1317, %v1317
        %v1334 = vpack.c.bf16 %v1318, %v1318
        %v1335 = vpack.c.bf16 %v1319, %v1319
        %v1336 = vpack.c.bf16 %v1320, %v1320
        %v1337 = vld [vmem:[%s586] sm:$0xf]
        %v1338 = vld [vmem:[%s586 + $0x4] sm:$0xf]
        %v1339 = vld [vmem:[%s586 + $0x8] sm:$0xf]
        %v1340 = vld [vmem:[%s586 + $0xc] sm:$0xf]
        %v1341 = vld [vmem:[%s586 + $0x10] sm:$0xf]
        %v1342 = vld [vmem:[%s586 + $0x14] sm:$0xf]
        %v1343 = vld [vmem:[%s586 + $0x18] sm:$0xf]
        %v1344 = vld [vmem:[%s586 + $0x1c] sm:$0xf]
        %v1345 = vld [vmem:[%s586 + $0x20] sm:$0xf]
        %v1346 = vld [vmem:[%s586 + $0x24] sm:$0xf]
        %v1347 = vld [vmem:[%s586 + $0x28] sm:$0xf]
        %v1348 = vld [vmem:[%s586 + $0x2c] sm:$0xf]
        %v1349 = vld [vmem:[%s586 + $0x30] sm:$0xf]
        %v1350 = vld [vmem:[%s586 + $0x34] sm:$0xf]
        %v1351 = vld [vmem:[%s586 + $0x38] sm:$0xf]
        %v1352 = vld [vmem:[%s586 + $0x3c] sm:$0xf]
        %v1353 = vld [vmem:[%s586 + $0x40] sm:$0xf]
        %v1354 = vld [vmem:[%s586 + $0x44] sm:$0xf]
        %v1355 = vld [vmem:[%s586 + $0x48] sm:$0xf]
        %v1356 = vld [vmem:[%s586 + $0x4c] sm:$0xf]
        %v1357 = vld [vmem:[%s586 + $0x50] sm:$0xf]
        %v1358 = vld [vmem:[%s586 + $0x54] sm:$0xf]
        %v1359 = vld [vmem:[%s586 + $0x58] sm:$0xf]
        %v1360 = vld [vmem:[%s586 + $0x5c] sm:$0xf]
        %v1361 = vld [vmem:[%s586 + $0x60] sm:$0xf]
        %v1362 = vld [vmem:[%s586 + $0x64] sm:$0xf]
        %v1363 = vld [vmem:[%s586 + $0x68] sm:$0xf]
        %v1364 = vld [vmem:[%s586 + $0x6c] sm:$0xf]
        %v1365 = vld [vmem:[%s586 + $0x70] sm:$0xf]
        %v1366 = vld [vmem:[%s586 + $0x74] sm:$0xf]
        %v1367 = vld [vmem:[%s586 + $0x78] sm:$0xf]
        %v1368 = vld [vmem:[%s586 + $0x7c] sm:$0xf]
        %v1369 = vld [vmem:[%s586 + $0x80] sm:$0xf]
        %v1370 = vld [vmem:[%s586 + $0x84] sm:$0xf]
        %v1371 = vld [vmem:[%s586 + $0x88] sm:$0xf]
        %v1372 = vld [vmem:[%s586 + $0x8c] sm:$0xf]
        %v1373 = vld [vmem:[%s586 + $0x90] sm:$0xf]
        %v1374 = vld [vmem:[%s586 + $0x94] sm:$0xf]
        %v1375 = vld [vmem:[%s586 + $0x98] sm:$0xf]
        %v1376 = vld [vmem:[%s586 + $0x9c] sm:$0xf]
        %v1377 = vld [vmem:[%s586 + $0xa0] sm:$0xf]
        %v1378 = vld [vmem:[%s586 + $0xa4] sm:$0xf]
        %v1379 = vld [vmem:[%s586 + $0xa8] sm:$0xf]
        %v1380 = vld [vmem:[%s586 + $0xac] sm:$0xf]
        %v1381 = vld [vmem:[%s586 + $0xb0] sm:$0xf]
        %v1382 = vld [vmem:[%s586 + $0xb4] sm:$0xf]
        %v1383 = vld [vmem:[%s586 + $0xb8] sm:$0xf]
        %v1384 = vld [vmem:[%s586 + $0xbc] sm:$0xf]
        %v1385 = vld [vmem:[%s586 + $0xc0] sm:$0xf]
        %v1386 = vld [vmem:[%s586 + $0xc4] sm:$0xf]
        %v1387 = vld [vmem:[%s586 + $0xc8] sm:$0xf]
        %v1388 = vld [vmem:[%s586 + $0xcc] sm:$0xf]
        %v1389 = vld [vmem:[%s586 + $0xd0] sm:$0xf]
        %v1390 = vld [vmem:[%s586 + $0xd4] sm:$0xf]
        %v1391 = vld [vmem:[%s586 + $0xd8] sm:$0xf]
        %v1392 = vld [vmem:[%s586 + $0xdc] sm:$0xf]
        %v1393 = vld [vmem:[%s586 + $0xe0] sm:$0xf]
        %v1394 = vld [vmem:[%s586 + $0xe4] sm:$0xf]
        %v1395 = vld [vmem:[%s586 + $0xe8] sm:$0xf]
        %v1396 = vld [vmem:[%s586 + $0xec] sm:$0xf]
        %v1397 = vld [vmem:[%s586 + $0xf0] sm:$0xf]
        %v1398 = vld [vmem:[%s586 + $0xf4] sm:$0xf]
        %v1399 = vld [vmem:[%s586 + $0xf8] sm:$0xf]
        %v1400 = vld [vmem:[%s586 + $0xfc] sm:$0xf]
        %v1401 = vld [vmem:[%s586 + $0x100] sm:$0xf]
        %v1402 = vld [vmem:[%s586 + $0x104] sm:$0xf]
        %v1403 = vld [vmem:[%s586 + $0x108] sm:$0xf]
        %v1404 = vld [vmem:[%s586 + $0x10c] sm:$0xf]
        %v1405 = vld [vmem:[%s586 + $0x110] sm:$0xf]
        %v1406 = vld [vmem:[%s586 + $0x114] sm:$0xf]
        %v1407 = vld [vmem:[%s586 + $0x118] sm:$0xf]
        %v1408 = vld [vmem:[%s586 + $0x11c] sm:$0xf]
        %v1409 = vld [vmem:[%s586 + $0x120] sm:$0xf]
        %v1410 = vld [vmem:[%s586 + $0x124] sm:$0xf]
        %v1411 = vld [vmem:[%s586 + $0x128] sm:$0xf]
        %v1412 = vld [vmem:[%s586 + $0x12c] sm:$0xf]
        %v1413 = vld [vmem:[%s586 + $0x130] sm:$0xf]
        %v1414 = vld [vmem:[%s586 + $0x134] sm:$0xf]
        %v1415 = vld [vmem:[%s586 + $0x138] sm:$0xf]
        %v1416 = vld [vmem:[%s586 + $0x13c] sm:$0xf]
        %v1417 = vld [vmem:[%s586 + $0x140] sm:$0xf]
        %v1418 = vld [vmem:[%s586 + $0x144] sm:$0xf]
        %v1419 = vld [vmem:[%s586 + $0x148] sm:$0xf]
        %v1420 = vld [vmem:[%s586 + $0x14c] sm:$0xf]
        %v1421 = vld [vmem:[%s586 + $0x150] sm:$0xf]
        %v1422 = vld [vmem:[%s586 + $0x154] sm:$0xf]
        %v1423 = vld [vmem:[%s586 + $0x158] sm:$0xf]
        %v1424 = vld [vmem:[%s586 + $0x15c] sm:$0xf]
        %v1425 = vld [vmem:[%s586 + $0x160] sm:$0xf]
        %v1426 = vld [vmem:[%s586 + $0x164] sm:$0xf]
        %v1427 = vld [vmem:[%s586 + $0x168] sm:$0xf]
        %v1428 = vld [vmem:[%s586 + $0x16c] sm:$0xf]
        %v1429 = vld [vmem:[%s586 + $0x170] sm:$0xf]
        %v1430 = vld [vmem:[%s586 + $0x174] sm:$0xf]
        %v1431 = vld [vmem:[%s586 + $0x178] sm:$0xf]
        %v1432 = vld [vmem:[%s586 + $0x17c] sm:$0xf]
        %v1433 = vld [vmem:[%s586 + $0x180] sm:$0xf]
        %v1434 = vld [vmem:[%s586 + $0x184] sm:$0xf]
        %v1435 = vld [vmem:[%s586 + $0x188] sm:$0xf]
        %v1436 = vld [vmem:[%s586 + $0x18c] sm:$0xf]
        %v1437 = vld [vmem:[%s586 + $0x190] sm:$0xf]
        %v1438 = vld [vmem:[%s586 + $0x194] sm:$0xf]
        %v1439 = vld [vmem:[%s586 + $0x198] sm:$0xf]
        %v1440 = vld [vmem:[%s586 + $0x19c] sm:$0xf]
        %v1441 = vld [vmem:[%s586 + $0x1a0] sm:$0xf]
        %v1442 = vld [vmem:[%s586 + $0x1a4] sm:$0xf]
        %v1443 = vld [vmem:[%s586 + $0x1a8] sm:$0xf]
        %v1444 = vld [vmem:[%s586 + $0x1ac] sm:$0xf]
        %v1445 = vld [vmem:[%s586 + $0x1b0] sm:$0xf]
        %v1446 = vld [vmem:[%s586 + $0x1b4] sm:$0xf]
        %v1447 = vld [vmem:[%s586 + $0x1b8] sm:$0xf]
        %v1448 = vld [vmem:[%s586 + $0x1bc] sm:$0xf]
        %v1449 = vld [vmem:[%s586 + $0x1c0] sm:$0xf]
        %v1450 = vld [vmem:[%s586 + $0x1c4] sm:$0xf]
        %v1451 = vld [vmem:[%s586 + $0x1c8] sm:$0xf]
        %v1452 = vld [vmem:[%s586 + $0x1cc] sm:$0xf]
        %v1453 = vld [vmem:[%s586 + $0x1d0] sm:$0xf]
        %v1454 = vld [vmem:[%s586 + $0x1d4] sm:$0xf]
        %v1455 = vld [vmem:[%s586 + $0x1d8] sm:$0xf]
        %v1456 = vld [vmem:[%s586 + $0x1dc] sm:$0xf]
        %v1457 = vld [vmem:[%s586 + $0x1e0] sm:$0xf]
        %v1458 = vld [vmem:[%s586 + $0x1e4] sm:$0xf]
        %v1459 = vld [vmem:[%s586 + $0x1e8] sm:$0xf]
        %v1460 = vld [vmem:[%s586 + $0x1ec] sm:$0xf]
        %v1461 = vld [vmem:[%s586 + $0x1f0] sm:$0xf]
        %v1462 = vld [vmem:[%s586 + $0x1f4] sm:$0xf]
        %v1463 = vld [vmem:[%s586 + $0x1f8] sm:$0xf]
        %v1464 = vld [vmem:[%s586 + $0x1fc] sm:$0xf]
        %v1465 = vld [vmem:[%s586 + $0x200] sm:$0xf]
        %v1466 = vld [vmem:[%s586 + $0x204] sm:$0xf]
        %v1467 = vld [vmem:[%s586 + $0x208] sm:$0xf]
        %v1468 = vld [vmem:[%s586 + $0x20c] sm:$0xf]
        %v1469 = vld [vmem:[%s586 + $0x210] sm:$0xf]
        %v1470 = vld [vmem:[%s586 + $0x214] sm:$0xf]
        %v1471 = vld [vmem:[%s586 + $0x218] sm:$0xf]
        %v1472 = vld [vmem:[%s586 + $0x21c] sm:$0xf]
        %v1473 = vld [vmem:[%s586 + $0x220] sm:$0xf]
        %v1474 = vld [vmem:[%s586 + $0x224] sm:$0xf]
        %v1475 = vld [vmem:[%s586 + $0x228] sm:$0xf]
        %v1476 = vld [vmem:[%s586 + $0x22c] sm:$0xf]
        %v1477 = vld [vmem:[%s586 + $0x230] sm:$0xf]
        %v1478 = vld [vmem:[%s586 + $0x234] sm:$0xf]
        %v1479 = vld [vmem:[%s586 + $0x238] sm:$0xf]
        %v1480 = vld [vmem:[%s586 + $0x23c] sm:$0xf]
        %v1481 = vld [vmem:[%s586 + $0x240] sm:$0xf]
        %v1482 = vld [vmem:[%s586 + $0x244] sm:$0xf]
        %v1483 = vld [vmem:[%s586 + $0x248] sm:$0xf]
        %v1484 = vld [vmem:[%s586 + $0x24c] sm:$0xf]
        %v1485 = vld [vmem:[%s586 + $0x250] sm:$0xf]
        %v1486 = vld [vmem:[%s586 + $0x254] sm:$0xf]
        %v1487 = vld [vmem:[%s586 + $0x258] sm:$0xf]
        %v1488 = vld [vmem:[%s586 + $0x25c] sm:$0xf]
        %v1489 = vld [vmem:[%s586 + $0x260] sm:$0xf]
        %v1490 = vld [vmem:[%s586 + $0x264] sm:$0xf]
        %v1491 = vld [vmem:[%s586 + $0x268] sm:$0xf]
        %v1492 = vld [vmem:[%s586 + $0x26c] sm:$0xf]
        %v1493 = vld [vmem:[%s586 + $0x270] sm:$0xf]
        %v1494 = vld [vmem:[%s586 + $0x274] sm:$0xf]
        %v1495 = vld [vmem:[%s586 + $0x278] sm:$0xf]
        %v1496 = vld [vmem:[%s586 + $0x27c] sm:$0xf]
        %v1497 = vld [vmem:[%s586 + $0x280] sm:$0xf]
        %v1498 = vld [vmem:[%s586 + $0x284] sm:$0xf]
        %v1499 = vld [vmem:[%s586 + $0x288] sm:$0xf]
        %v1500 = vld [vmem:[%s586 + $0x28c] sm:$0xf]
        %v1501 = vld [vmem:[%s586 + $0x290] sm:$0xf]
        %v1502 = vld [vmem:[%s586 + $0x294] sm:$0xf]
        %v1503 = vld [vmem:[%s586 + $0x298] sm:$0xf]
        %v1504 = vld [vmem:[%s586 + $0x29c] sm:$0xf]
        %v1505 = vld [vmem:[%s586 + $0x2a0] sm:$0xf]
        %v1506 = vld [vmem:[%s586 + $0x2a4] sm:$0xf]
        %v1507 = vld [vmem:[%s586 + $0x2a8] sm:$0xf]
        %v1508 = vld [vmem:[%s586 + $0x2ac] sm:$0xf]
        %v1509 = vld [vmem:[%s586 + $0x2b0] sm:$0xf]
        %v1510 = vld [vmem:[%s586 + $0x2b4] sm:$0xf]
        %v1511 = vld [vmem:[%s586 + $0x2b8] sm:$0xf]
        %v1512 = vld [vmem:[%s586 + $0x2bc] sm:$0xf]
        %v1513 = vld [vmem:[%s586 + $0x2c0] sm:$0xf]
        %v1514 = vld [vmem:[%s586 + $0x2c4] sm:$0xf]
        %v1515 = vld [vmem:[%s586 + $0x2c8] sm:$0xf]
        %v1516 = vld [vmem:[%s586 + $0x2cc] sm:$0xf]
        %v1517 = vld [vmem:[%s586 + $0x2d0] sm:$0xf]
        %v1518 = vld [vmem:[%s586 + $0x2d4] sm:$0xf]
        %v1519 = vld [vmem:[%s586 + $0x2d8] sm:$0xf]
        %v1520 = vld [vmem:[%s586 + $0x2dc] sm:$0xf]
        %v1521 = vld [vmem:[%s586 + $0x2e0] sm:$0xf]
        %v1522 = vld [vmem:[%s586 + $0x2e4] sm:$0xf]
        %v1523 = vld [vmem:[%s586 + $0x2e8] sm:$0xf]
        %v1524 = vld [vmem:[%s586 + $0x2ec] sm:$0xf]
        %v1525 = vld [vmem:[%s586 + $0x2f0] sm:$0xf]
        %v1526 = vld [vmem:[%s586 + $0x2f4] sm:$0xf]
        %v1527 = vld [vmem:[%s586 + $0x2f8] sm:$0xf]
        %v1528 = vld [vmem:[%s586 + $0x2fc] sm:$0xf]
        %v1529 = vld [vmem:[%s586 + $0x300] sm:$0xf]
        %v1530 = vld [vmem:[%s586 + $0x304] sm:$0xf]
        %v1531 = vld [vmem:[%s586 + $0x308] sm:$0xf]
        %v1532 = vld [vmem:[%s586 + $0x30c] sm:$0xf]
        %v1533 = vld [vmem:[%s586 + $0x310] sm:$0xf]
        %v1534 = vld [vmem:[%s586 + $0x314] sm:$0xf]
        %v1535 = vld [vmem:[%s586 + $0x318] sm:$0xf]
        %v1536 = vld [vmem:[%s586 + $0x31c] sm:$0xf]
        %v1537 = vld [vmem:[%s586 + $0x320] sm:$0xf]
        %v1538 = vld [vmem:[%s586 + $0x324] sm:$0xf]
        %v1539 = vld [vmem:[%s586 + $0x328] sm:$0xf]
        %v1540 = vld [vmem:[%s586 + $0x32c] sm:$0xf]
        %v1541 = vld [vmem:[%s586 + $0x330] sm:$0xf]
        %v1542 = vld [vmem:[%s586 + $0x334] sm:$0xf]
        %v1543 = vld [vmem:[%s586 + $0x338] sm:$0xf]
        %v1544 = vld [vmem:[%s586 + $0x33c] sm:$0xf]
        %v1545 = vld [vmem:[%s586 + $0x340] sm:$0xf]
        %v1546 = vld [vmem:[%s586 + $0x344] sm:$0xf]
        %v1547 = vld [vmem:[%s586 + $0x348] sm:$0xf]
        %v1548 = vld [vmem:[%s586 + $0x34c] sm:$0xf]
        %v1549 = vld [vmem:[%s586 + $0x350] sm:$0xf]
        %v1550 = vld [vmem:[%s586 + $0x354] sm:$0xf]
        %v1551 = vld [vmem:[%s586 + $0x358] sm:$0xf]
        %v1552 = vld [vmem:[%s586 + $0x35c] sm:$0xf]
        %v1553 = vld [vmem:[%s586 + $0x360] sm:$0xf]
        %v1554 = vld [vmem:[%s586 + $0x364] sm:$0xf]
        %v1555 = vld [vmem:[%s586 + $0x368] sm:$0xf]
        %v1556 = vld [vmem:[%s586 + $0x36c] sm:$0xf]
        %v1557 = vld [vmem:[%s586 + $0x370] sm:$0xf]
        %v1558 = vld [vmem:[%s586 + $0x374] sm:$0xf]
        %v1559 = vld [vmem:[%s586 + $0x378] sm:$0xf]
        %v1560 = vld [vmem:[%s586 + $0x37c] sm:$0xf]
        %v1561 = vld [vmem:[%s586 + $0x380] sm:$0xf]
        %v1562 = vld [vmem:[%s586 + $0x384] sm:$0xf]
        %v1563 = vld [vmem:[%s586 + $0x388] sm:$0xf]
        %v1564 = vld [vmem:[%s586 + $0x38c] sm:$0xf]
        %v1565 = vld [vmem:[%s586 + $0x390] sm:$0xf]
        %v1566 = vld [vmem:[%s586 + $0x394] sm:$0xf]
        %v1567 = vld [vmem:[%s586 + $0x398] sm:$0xf]
        %v1568 = vld [vmem:[%s586 + $0x39c] sm:$0xf]
        %v1569 = vld [vmem:[%s586 + $0x3a0] sm:$0xf]
        %v1570 = vld [vmem:[%s586 + $0x3a4] sm:$0xf]
        %v1571 = vld [vmem:[%s586 + $0x3a8] sm:$0xf]
        %v1572 = vld [vmem:[%s586 + $0x3ac] sm:$0xf]
        %v1573 = vld [vmem:[%s586 + $0x3b0] sm:$0xf]
        %v1574 = vld [vmem:[%s586 + $0x3b4] sm:$0xf]
        %v1575 = vld [vmem:[%s586 + $0x3b8] sm:$0xf]
        %v1576 = vld [vmem:[%s586 + $0x3bc] sm:$0xf]
        %v1577 = vld [vmem:[%s586 + $0x3c0] sm:$0xf]
        %v1578 = vld [vmem:[%s586 + $0x3c4] sm:$0xf]
        %v1579 = vld [vmem:[%s586 + $0x3c8] sm:$0xf]
        %v1580 = vld [vmem:[%s586 + $0x3cc] sm:$0xf]
        %v1581 = vld [vmem:[%s586 + $0x3d0] sm:$0xf]
        %v1582 = vld [vmem:[%s586 + $0x3d4] sm:$0xf]
        %v1583 = vld [vmem:[%s586 + $0x3d8] sm:$0xf]
        %v1584 = vld [vmem:[%s586 + $0x3dc] sm:$0xf]
        %v1585 = vld [vmem:[%s586 + $0x3e0] sm:$0xf]
        %v1586 = vld [vmem:[%s586 + $0x3e4] sm:$0xf]
        %v1587 = vld [vmem:[%s586 + $0x3e8] sm:$0xf]
        %v1588 = vld [vmem:[%s586 + $0x3ec] sm:$0xf]
        %v1589 = vld [vmem:[%s586 + $0x3f0] sm:$0xf]
        %v1590 = vld [vmem:[%s586 + $0x3f4] sm:$0xf]
        %v1591 = vld [vmem:[%s586 + $0x3f8] sm:$0xf]
        %v1592 = vld [vmem:[%s586 + $0x3fc] sm:$0xf]
        %v1609 = vunpack.c.l.b16 %v1337
        %v1610 = vunpack.c.l.b16 %v1338
        %v1611 = vunpack.c.l.b16 %v1339
        %v1612 = vunpack.c.l.b16 %v1340
        %v1613 = vunpack.c.l.b16 %v1341
        %v1614 = vunpack.c.l.b16 %v1342
        %v1615 = vunpack.c.l.b16 %v1343
        %v1616 = vunpack.c.l.b16 %v1344
        %v1617 = vunpack.c.l.b16 %v1345
        %v1618 = vunpack.c.l.b16 %v1346
        %v1619 = vunpack.c.l.b16 %v1347
        %v1620 = vunpack.c.l.b16 %v1348
        %v1621 = vunpack.c.l.b16 %v1349
        %v1622 = vunpack.c.l.b16 %v1350
        %v1623 = vunpack.c.l.b16 %v1351
        %v1624 = vunpack.c.l.b16 %v1352
        %v1625 = vpack.c.b16 %v1610, %v1609
        %v1626 = vpack.c.b16 %v1612, %v1611
        %v1627 = vpack.c.b16 %v1614, %v1613
        %v1628 = vpack.c.b16 %v1616, %v1615
        %v1629 = vpack.c.b16 %v1618, %v1617
        %v1630 = vpack.c.b16 %v1620, %v1619
        %v1631 = vpack.c.b16 %v1622, %v1621
        %v1632 = vpack.c.b16 %v1624, %v1623
        %1641 = vmatprep.subr.bf16.mxu0 0
        %1642 = vmatpush1.bf16.msra.mxu0 %v1632
        %1643 = vmatprep.subr.bf16.mxu0 0
        %1644 = vmatpush1.bf16.msra.mxu0 %v1631
        %1645 = vmatprep.subr.bf16.mxu0 0
        %1646 = vmatpush1.bf16.msra.mxu0 %v1630
        %1647 = vmatprep.subr.bf16.mxu0 0
        %1648 = vmatpush1.bf16.msra.mxu0 %v1629
        %1649 = vmatprep.subr.bf16.mxu0 0
        %1650 = vmatpush1.bf16.msra.mxu0 %v1628
        %1651 = vmatprep.subr.bf16.mxu0 0
        %1652 = vmatpush1.bf16.msra.mxu0 %v1627
        %1653 = vmatprep.subr.bf16.mxu0 0
        %1654 = vmatpush1.bf16.msra.mxu0 %v1626
        %1655 = vmatprep.subr.bf16.mxu0 0
        %1656 = vmatpush1.bf16.msra.mxu0 %v1625
        %1657 = vmatprep.subr.bf16.mxu0 0
        %1658 = vmatpush2.bf16.msra.mxu0 0
        %1659 = vmatprep.subr.bf16.mxu0 0
        %1660 = vmatpush2.bf16.msra.mxu0 0
        %1661 = vmatprep.subr.bf16.mxu0 0
        %1662 = vmatpush2.bf16.msra.mxu0 0
        %1663 = vmatprep.subr.bf16.mxu0 0
        %1664 = vmatpush2.bf16.msra.mxu0 0
        %1665 = vmatprep.subr.bf16.mxu0 0
        %1666 = vmatpush2.bf16.msra.mxu0 0
        %1667 = vmatprep.subr.bf16.mxu0 0
        %1668 = vmatpush2.bf16.msra.mxu0 0
        %1669 = vmatprep.subr.bf16.mxu0 0
        %1670 = vmatpush2.bf16.msra.mxu0 0
        %1671 = vmatprep.subr.bf16.mxu0 0
        %1672 = vmatpush2.bf16.msra.mxu0 0
        %1673 = vmatprep.mubr.bf16.mxu0 0
        %1674 = vmatmul.mubr.bf16.gmra.mxu0 %v1321
        %v1675 = vpop.f32.mrf.mxu0
        %v1676 = vadd.f32 0.0, %v1675
        %v1677 = vpop.f32.mrf.mxu0
        %v1678 = vpop.f32.mrf.mxu0
        %v1679 = vpop.f32.mrf.mxu0
        %1680 = vdwg.mxu0
        %v1697 = vunpack.c.l.b16 %v1353
        %v1698 = vunpack.c.l.b16 %v1354
        %v1699 = vunpack.c.l.b16 %v1355
        %v1700 = vunpack.c.l.b16 %v1356
        %v1701 = vunpack.c.l.b16 %v1357
        %v1702 = vunpack.c.l.b16 %v1358
        %v1703 = vunpack.c.l.b16 %v1359
        %v1704 = vunpack.c.l.b16 %v1360
        %v1705 = vunpack.c.l.b16 %v1361
        %v1706 = vunpack.c.l.b16 %v1362
        %v1707 = vunpack.c.l.b16 %v1363
        %v1708 = vunpack.c.l.b16 %v1364
        %v1709 = vunpack.c.l.b16 %v1365
        %v1710 = vunpack.c.l.b16 %v1366
        %v1711 = vunpack.c.l.b16 %v1367
        %v1712 = vunpack.c.l.b16 %v1368
        %v1713 = vpack.c.b16 %v1698, %v1697
        %v1714 = vpack.c.b16 %v1700, %v1699
        %v1715 = vpack.c.b16 %v1702, %v1701
        %v1716 = vpack.c.b16 %v1704, %v1703
        %v1717 = vpack.c.b16 %v1706, %v1705
        %v1718 = vpack.c.b16 %v1708, %v1707
        %v1719 = vpack.c.b16 %v1710, %v1709
        %v1720 = vpack.c.b16 %v1712, %v1711
        %1729 = vmatprep.subr.bf16.mxu0 0
        %1730 = vmatpush1.bf16.msra.mxu0 %v1720
        %1731 = vmatprep.subr.bf16.mxu0 0
        %1732 = vmatpush1.bf16.msra.mxu0 %v1719
        %1733 = vmatprep.subr.bf16.mxu0 0
        %1734 = vmatpush1.bf16.msra.mxu0 %v1718
        %1735 = vmatprep.subr.bf16.mxu0 0
        %1736 = vmatpush1.bf16.msra.mxu0 %v1717
        %1737 = vmatprep.subr.bf16.mxu0 0
        %1738 = vmatpush1.bf16.msra.mxu0 %v1716
        %1739 = vmatprep.subr.bf16.mxu0 0
        %1740 = vmatpush1.bf16.msra.mxu0 %v1715
        %1741 = vmatprep.subr.bf16.mxu0 0
        %1742 = vmatpush1.bf16.msra.mxu0 %v1714
        %1743 = vmatprep.subr.bf16.mxu0 0
        %1744 = vmatpush1.bf16.msra.mxu0 %v1713
        %1745 = vmatprep.subr.bf16.mxu0 0
        %1746 = vmatpush2.bf16.msra.mxu0 0
        %1747 = vmatprep.subr.bf16.mxu0 0
        %1748 = vmatpush2.bf16.msra.mxu0 0
        %1749 = vmatprep.subr.bf16.mxu0 0
        %1750 = vmatpush2.bf16.msra.mxu0 0
        %1751 = vmatprep.subr.bf16.mxu0 0
        %1752 = vmatpush2.bf16.msra.mxu0 0
        %1753 = vmatprep.subr.bf16.mxu0 0
        %1754 = vmatpush2.bf16.msra.mxu0 0
        %1755 = vmatprep.subr.bf16.mxu0 0
        %1756 = vmatpush2.bf16.msra.mxu0 0
        %1757 = vmatprep.subr.bf16.mxu0 0
        %1758 = vmatpush2.bf16.msra.mxu0 0
        %1759 = vmatprep.subr.bf16.mxu0 0
        %1760 = vmatpush2.bf16.msra.mxu0 0
        %1761 = vmatprep.mubr.bf16.mxu0 0
        %1762 = vmatmul.mubr.bf16.gmra.mxu0 %v1322
        %v1763 = vpop.f32.mrf.mxu0
        %v1764 = vadd.f32 0.0, %v1763
        %v1765 = vpop.f32.mrf.mxu0
        %v1766 = vpop.f32.mrf.mxu0
        %v1767 = vpop.f32.mrf.mxu0
        %1768 = vdwg.mxu0
        %v1785 = vunpack.c.l.b16 %v1369
        %v1786 = vunpack.c.l.b16 %v1370
        %v1787 = vunpack.c.l.b16 %v1371
        %v1788 = vunpack.c.l.b16 %v1372
        %v1789 = vunpack.c.l.b16 %v1373
        %v1790 = vunpack.c.l.b16 %v1374
        %v1791 = vunpack.c.l.b16 %v1375
        %v1792 = vunpack.c.l.b16 %v1376
        %v1793 = vunpack.c.l.b16 %v1377
        %v1794 = vunpack.c.l.b16 %v1378
        %v1795 = vunpack.c.l.b16 %v1379
        %v1796 = vunpack.c.l.b16 %v1380
        %v1797 = vunpack.c.l.b16 %v1381
        %v1798 = vunpack.c.l.b16 %v1382
        %v1799 = vunpack.c.l.b16 %v1383
        %v1800 = vunpack.c.l.b16 %v1384
        %v1801 = vpack.c.b16 %v1786, %v1785
        %v1802 = vpack.c.b16 %v1788, %v1787
        %v1803 = vpack.c.b16 %v1790, %v1789
        %v1804 = vpack.c.b16 %v1792, %v1791
        %v1805 = vpack.c.b16 %v1794, %v1793
        %v1806 = vpack.c.b16 %v1796, %v1795
        %v1807 = vpack.c.b16 %v1798, %v1797
        %v1808 = vpack.c.b16 %v1800, %v1799
        %1817 = vmatprep.subr.bf16.mxu0 0
        %1818 = vmatpush1.bf16.msra.mxu0 %v1808
        %1819 = vmatprep.subr.bf16.mxu0 0
        %1820 = vmatpush1.bf16.msra.mxu0 %v1807
        %1821 = vmatprep.subr.bf16.mxu0 0
        %1822 = vmatpush1.bf16.msra.mxu0 %v1806
        %1823 = vmatprep.subr.bf16.mxu0 0
        %1824 = vmatpush1.bf16.msra.mxu0 %v1805
        %1825 = vmatprep.subr.bf16.mxu0 0
        %1826 = vmatpush1.bf16.msra.mxu0 %v1804
        %1827 = vmatprep.subr.bf16.mxu0 0
        %1828 = vmatpush1.bf16.msra.mxu0 %v1803
        %1829 = vmatprep.subr.bf16.mxu0 0
        %1830 = vmatpush1.bf16.msra.mxu0 %v1802
        %1831 = vmatprep.subr.bf16.mxu0 0
        %1832 = vmatpush1.bf16.msra.mxu0 %v1801
        %1833 = vmatprep.subr.bf16.mxu0 0
        %1834 = vmatpush2.bf16.msra.mxu0 0
        %1835 = vmatprep.subr.bf16.mxu0 0
        %1836 = vmatpush2.bf16.msra.mxu0 0
        %1837 = vmatprep.subr.bf16.mxu0 0
        %1838 = vmatpush2.bf16.msra.mxu0 0
        %1839 = vmatprep.subr.bf16.mxu0 0
        %1840 = vmatpush2.bf16.msra.mxu0 0
        %1841 = vmatprep.subr.bf16.mxu0 0
        %1842 = vmatpush2.bf16.msra.mxu0 0
        %1843 = vmatprep.subr.bf16.mxu0 0
        %1844 = vmatpush2.bf16.msra.mxu0 0
        %1845 = vmatprep.subr.bf16.mxu0 0
        %1846 = vmatpush2.bf16.msra.mxu0 0
        %1847 = vmatprep.subr.bf16.mxu0 0
        %1848 = vmatpush2.bf16.msra.mxu0 0
        %1849 = vmatprep.mubr.bf16.mxu0 0
        %1850 = vmatmul.mubr.bf16.gmra.mxu0 %v1323
        %v1851 = vpop.f32.mrf.mxu0
        %v1852 = vadd.f32 0.0, %v1851
        %v1853 = vpop.f32.mrf.mxu0
        %v1854 = vpop.f32.mrf.mxu0
        %v1855 = vpop.f32.mrf.mxu0
        %1856 = vdwg.mxu0
        %v1873 = vunpack.c.l.b16 %v1385
        %v1874 = vunpack.c.l.b16 %v1386
        %v1875 = vunpack.c.l.b16 %v1387
        %v1876 = vunpack.c.l.b16 %v1388
        %v1877 = vunpack.c.l.b16 %v1389
        %v1878 = vunpack.c.l.b16 %v1390
        %v1879 = vunpack.c.l.b16 %v1391
        %v1880 = vunpack.c.l.b16 %v1392
        %v1881 = vunpack.c.l.b16 %v1393
        %v1882 = vunpack.c.l.b16 %v1394
        %v1883 = vunpack.c.l.b16 %v1395
        %v1884 = vunpack.c.l.b16 %v1396
        %v1885 = vunpack.c.l.b16 %v1397
        %v1886 = vunpack.c.l.b16 %v1398
        %v1887 = vunpack.c.l.b16 %v1399
        %v1888 = vunpack.c.l.b16 %v1400
        %v1889 = vpack.c.b16 %v1874, %v1873
        %v1890 = vpack.c.b16 %v1876, %v1875
        %v1891 = vpack.c.b16 %v1878, %v1877
        %v1892 = vpack.c.b16 %v1880, %v1879
        %v1893 = vpack.c.b16 %v1882, %v1881
        %v1894 = vpack.c.b16 %v1884, %v1883
        %v1895 = vpack.c.b16 %v1886, %v1885
        %v1896 = vpack.c.b16 %v1888, %v1887
        %1905 = vmatprep.subr.bf16.mxu0 0
        %1906 = vmatpush1.bf16.msra.mxu0 %v1896
        %1907 = vmatprep.subr.bf16.mxu0 0
        %1908 = vmatpush1.bf16.msra.mxu0 %v1895
        %1909 = vmatprep.subr.bf16.mxu0 0
        %1910 = vmatpush1.bf16.msra.mxu0 %v1894
        %1911 = vmatprep.subr.bf16.mxu0 0
        %1912 = vmatpush1.bf16.msra.mxu0 %v1893
        %1913 = vmatprep.subr.bf16.mxu0 0
        %1914 = vmatpush1.bf16.msra.mxu0 %v1892
        %1915 = vmatprep.subr.bf16.mxu0 0
        %1916 = vmatpush1.bf16.msra.mxu0 %v1891
        %1917 = vmatprep.subr.bf16.mxu0 0
        %1918 = vmatpush1.bf16.msra.mxu0 %v1890
        %1919 = vmatprep.subr.bf16.mxu0 0
        %1920 = vmatpush1.bf16.msra.mxu0 %v1889
        %1921 = vmatprep.subr.bf16.mxu0 0
        %1922 = vmatpush2.bf16.msra.mxu0 0
        %1923 = vmatprep.subr.bf16.mxu0 0
        %1924 = vmatpush2.bf16.msra.mxu0 0
        %1925 = vmatprep.subr.bf16.mxu0 0
        %1926 = vmatpush2.bf16.msra.mxu0 0
        %1927 = vmatprep.subr.bf16.mxu0 0
        %1928 = vmatpush2.bf16.msra.mxu0 0
        %1929 = vmatprep.subr.bf16.mxu0 0
        %1930 = vmatpush2.bf16.msra.mxu0 0
        %1931 = vmatprep.subr.bf16.mxu0 0
        %1932 = vmatpush2.bf16.msra.mxu0 0
        %1933 = vmatprep.subr.bf16.mxu0 0
        %1934 = vmatpush2.bf16.msra.mxu0 0
        %1935 = vmatprep.subr.bf16.mxu0 0
        %1936 = vmatpush2.bf16.msra.mxu0 0
        %1937 = vmatprep.mubr.bf16.mxu0 0
        %1938 = vmatmul.mubr.bf16.gmra.mxu0 %v1324
        %v1939 = vpop.f32.mrf.mxu0
        %v1940 = vadd.f32 0.0, %v1939
        %v1941 = vpop.f32.mrf.mxu0
        %v1942 = vpop.f32.mrf.mxu0
        %v1943 = vpop.f32.mrf.mxu0
        %1944 = vdwg.mxu0
        %v1961 = vunpack.c.l.b16 %v1401
        %v1962 = vunpack.c.l.b16 %v1402
        %v1963 = vunpack.c.l.b16 %v1403
        %v1964 = vunpack.c.l.b16 %v1404
        %v1965 = vunpack.c.l.b16 %v1405
        %v1966 = vunpack.c.l.b16 %v1406
        %v1967 = vunpack.c.l.b16 %v1407
        %v1968 = vunpack.c.l.b16 %v1408
        %v1969 = vunpack.c.l.b16 %v1409
        %v1970 = vunpack.c.l.b16 %v1410
        %v1971 = vunpack.c.l.b16 %v1411
        %v1972 = vunpack.c.l.b16 %v1412
        %v1973 = vunpack.c.l.b16 %v1413
        %v1974 = vunpack.c.l.b16 %v1414
        %v1975 = vunpack.c.l.b16 %v1415
        %v1976 = vunpack.c.l.b16 %v1416
        %v1977 = vpack.c.b16 %v1962, %v1961
        %v1978 = vpack.c.b16 %v1964, %v1963
        %v1979 = vpack.c.b16 %v1966, %v1965
        %v1980 = vpack.c.b16 %v1968, %v1967
        %v1981 = vpack.c.b16 %v1970, %v1969
        %v1982 = vpack.c.b16 %v1972, %v1971
        %v1983 = vpack.c.b16 %v1974, %v1973
        %v1984 = vpack.c.b16 %v1976, %v1975
        %1993 = vmatprep.subr.bf16.mxu0 0
        %1994 = vmatpush1.bf16.msra.mxu0 %v1984
        %1995 = vmatprep.subr.bf16.mxu0 0
        %1996 = vmatpush1.bf16.msra.mxu0 %v1983
        %1997 = vmatprep.subr.bf16.mxu0 0
        %1998 = vmatpush1.bf16.msra.mxu0 %v1982
        %1999 = vmatprep.subr.bf16.mxu0 0
        %2000 = vmatpush1.bf16.msra.mxu0 %v1981
        %2001 = vmatprep.subr.bf16.mxu0 0
        %2002 = vmatpush1.bf16.msra.mxu0 %v1980
        %2003 = vmatprep.subr.bf16.mxu0 0
        %2004 = vmatpush1.bf16.msra.mxu0 %v1979
        %2005 = vmatprep.subr.bf16.mxu0 0
        %2006 = vmatpush1.bf16.msra.mxu0 %v1978
        %2007 = vmatprep.subr.bf16.mxu0 0
        %2008 = vmatpush1.bf16.msra.mxu0 %v1977
        %2009 = vmatprep.subr.bf16.mxu0 0
        %2010 = vmatpush2.bf16.msra.mxu0 0
        %2011 = vmatprep.subr.bf16.mxu0 0
        %2012 = vmatpush2.bf16.msra.mxu0 0
        %2013 = vmatprep.subr.bf16.mxu0 0
        %2014 = vmatpush2.bf16.msra.mxu0 0
        %2015 = vmatprep.subr.bf16.mxu0 0
        %2016 = vmatpush2.bf16.msra.mxu0 0
        %2017 = vmatprep.subr.bf16.mxu0 0
        %2018 = vmatpush2.bf16.msra.mxu0 0
        %2019 = vmatprep.subr.bf16.mxu0 0
        %2020 = vmatpush2.bf16.msra.mxu0 0
        %2021 = vmatprep.subr.bf16.mxu0 0
        %2022 = vmatpush2.bf16.msra.mxu0 0
        %2023 = vmatprep.subr.bf16.mxu0 0
        %2024 = vmatpush2.bf16.msra.mxu0 0
        %2025 = vmatprep.mubr.bf16.mxu0 0
        %2026 = vmatmul.mubr.bf16.gmra.mxu0 %v1325
        %v2027 = vpop.f32.mrf.mxu0
        %v2028 = vadd.f32 0.0, %v2027
        %v2029 = vpop.f32.mrf.mxu0
        %v2030 = vpop.f32.mrf.mxu0
        %v2031 = vpop.f32.mrf.mxu0
        %2032 = vdwg.mxu0
        %v2049 = vunpack.c.l.b16 %v1417
        %v2050 = vunpack.c.l.b16 %v1418
        %v2051 = vunpack.c.l.b16 %v1419
        %v2052 = vunpack.c.l.b16 %v1420
        %v2053 = vunpack.c.l.b16 %v1421
        %v2054 = vunpack.c.l.b16 %v1422
        %v2055 = vunpack.c.l.b16 %v1423
        %v2056 = vunpack.c.l.b16 %v1424
        %v2057 = vunpack.c.l.b16 %v1425
        %v2058 = vunpack.c.l.b16 %v1426
        %v2059 = vunpack.c.l.b16 %v1427
        %v2060 = vunpack.c.l.b16 %v1428
        %v2061 = vunpack.c.l.b16 %v1429
        %v2062 = vunpack.c.l.b16 %v1430
        %v2063 = vunpack.c.l.b16 %v1431
        %v2064 = vunpack.c.l.b16 %v1432
        %v2065 = vpack.c.b16 %v2050, %v2049
        %v2066 = vpack.c.b16 %v2052, %v2051
        %v2067 = vpack.c.b16 %v2054, %v2053
        %v2068 = vpack.c.b16 %v2056, %v2055
        %v2069 = vpack.c.b16 %v2058, %v2057
        %v2070 = vpack.c.b16 %v2060, %v2059
        %v2071 = vpack.c.b16 %v2062, %v2061
        %v2072 = vpack.c.b16 %v2064, %v2063
        %2081 = vmatprep.subr.bf16.mxu0 0
        %2082 = vmatpush1.bf16.msra.mxu0 %v2072
        %2083 = vmatprep.subr.bf16.mxu0 0
        %2084 = vmatpush1.bf16.msra.mxu0 %v2071
        %2085 = vmatprep.subr.bf16.mxu0 0
        %2086 = vmatpush1.bf16.msra.mxu0 %v2070
        %2087 = vmatprep.subr.bf16.mxu0 0
        %2088 = vmatpush1.bf16.msra.mxu0 %v2069
        %2089 = vmatprep.subr.bf16.mxu0 0
        %2090 = vmatpush1.bf16.msra.mxu0 %v2068
        %2091 = vmatprep.subr.bf16.mxu0 0
        %2092 = vmatpush1.bf16.msra.mxu0 %v2067
        %2093 = vmatprep.subr.bf16.mxu0 0
        %2094 = vmatpush1.bf16.msra.mxu0 %v2066
        %2095 = vmatprep.subr.bf16.mxu0 0
        %2096 = vmatpush1.bf16.msra.mxu0 %v2065
        %2097 = vmatprep.subr.bf16.mxu0 0
        %2098 = vmatpush2.bf16.msra.mxu0 0
        %2099 = vmatprep.subr.bf16.mxu0 0
        %2100 = vmatpush2.bf16.msra.mxu0 0
        %2101 = vmatprep.subr.bf16.mxu0 0
        %2102 = vmatpush2.bf16.msra.mxu0 0
        %2103 = vmatprep.subr.bf16.mxu0 0
        %2104 = vmatpush2.bf16.msra.mxu0 0
        %2105 = vmatprep.subr.bf16.mxu0 0
        %2106 = vmatpush2.bf16.msra.mxu0 0
        %2107 = vmatprep.subr.bf16.mxu0 0
        %2108 = vmatpush2.bf16.msra.mxu0 0
        %2109 = vmatprep.subr.bf16.mxu0 0
        %2110 = vmatpush2.bf16.msra.mxu0 0
        %2111 = vmatprep.subr.bf16.mxu0 0
        %2112 = vmatpush2.bf16.msra.mxu0 0
        %2113 = vmatprep.mubr.bf16.mxu0 0
        %2114 = vmatmul.mubr.bf16.gmra.mxu0 %v1326
        %v2115 = vpop.f32.mrf.mxu0
        %v2116 = vadd.f32 0.0, %v2115
        %v2117 = vpop.f32.mrf.mxu0
        %v2118 = vpop.f32.mrf.mxu0
        %v2119 = vpop.f32.mrf.mxu0
        %2120 = vdwg.mxu0
        %v2137 = vunpack.c.l.b16 %v1433
        %v2138 = vunpack.c.l.b16 %v1434
        %v2139 = vunpack.c.l.b16 %v1435
        %v2140 = vunpack.c.l.b16 %v1436
        %v2141 = vunpack.c.l.b16 %v1437
        %v2142 = vunpack.c.l.b16 %v1438
        %v2143 = vunpack.c.l.b16 %v1439
        %v2144 = vunpack.c.l.b16 %v1440
        %v2145 = vunpack.c.l.b16 %v1441
        %v2146 = vunpack.c.l.b16 %v1442
        %v2147 = vunpack.c.l.b16 %v1443
        %v2148 = vunpack.c.l.b16 %v1444
        %v2149 = vunpack.c.l.b16 %v1445
        %v2150 = vunpack.c.l.b16 %v1446
        %v2151 = vunpack.c.l.b16 %v1447
        %v2152 = vunpack.c.l.b16 %v1448
        %v2153 = vpack.c.b16 %v2138, %v2137
        %v2154 = vpack.c.b16 %v2140, %v2139
        %v2155 = vpack.c.b16 %v2142, %v2141
        %v2156 = vpack.c.b16 %v2144, %v2143
        %v2157 = vpack.c.b16 %v2146, %v2145
        %v2158 = vpack.c.b16 %v2148, %v2147
        %v2159 = vpack.c.b16 %v2150, %v2149
        %v2160 = vpack.c.b16 %v2152, %v2151
        %2169 = vmatprep.subr.bf16.mxu0 0
        %2170 = vmatpush1.bf16.msra.mxu0 %v2160
        %2171 = vmatprep.subr.bf16.mxu0 0
        %2172 = vmatpush1.bf16.msra.mxu0 %v2159
        %2173 = vmatprep.subr.bf16.mxu0 0
        %2174 = vmatpush1.bf16.msra.mxu0 %v2158
        %2175 = vmatprep.subr.bf16.mxu0 0
        %2176 = vmatpush1.bf16.msra.mxu0 %v2157
        %2177 = vmatprep.subr.bf16.mxu0 0
        %2178 = vmatpush1.bf16.msra.mxu0 %v2156
        %2179 = vmatprep.subr.bf16.mxu0 0
        %2180 = vmatpush1.bf16.msra.mxu0 %v2155
        %2181 = vmatprep.subr.bf16.mxu0 0
        %2182 = vmatpush1.bf16.msra.mxu0 %v2154
        %2183 = vmatprep.subr.bf16.mxu0 0
        %2184 = vmatpush1.bf16.msra.mxu0 %v2153
        %2185 = vmatprep.subr.bf16.mxu0 0
        %2186 = vmatpush2.bf16.msra.mxu0 0
        %2187 = vmatprep.subr.bf16.mxu0 0
        %2188 = vmatpush2.bf16.msra.mxu0 0
        %2189 = vmatprep.subr.bf16.mxu0 0
        %2190 = vmatpush2.bf16.msra.mxu0 0
        %2191 = vmatprep.subr.bf16.mxu0 0
        %2192 = vmatpush2.bf16.msra.mxu0 0
        %2193 = vmatprep.subr.bf16.mxu0 0
        %2194 = vmatpush2.bf16.msra.mxu0 0
        %2195 = vmatprep.subr.bf16.mxu0 0
        %2196 = vmatpush2.bf16.msra.mxu0 0
        %2197 = vmatprep.subr.bf16.mxu0 0
        %2198 = vmatpush2.bf16.msra.mxu0 0
        %2199 = vmatprep.subr.bf16.mxu0 0
        %2200 = vmatpush2.bf16.msra.mxu0 0
        %2201 = vmatprep.mubr.bf16.mxu0 0
        %2202 = vmatmul.mubr.bf16.gmra.mxu0 %v1327
        %v2203 = vpop.f32.mrf.mxu0
        %v2204 = vadd.f32 0.0, %v2203
        %v2205 = vpop.f32.mrf.mxu0
        %v2206 = vpop.f32.mrf.mxu0
        %v2207 = vpop.f32.mrf.mxu0
        %2208 = vdwg.mxu0
        %v2225 = vunpack.c.l.b16 %v1449
        %v2226 = vunpack.c.l.b16 %v1450
        %v2227 = vunpack.c.l.b16 %v1451
        %v2228 = vunpack.c.l.b16 %v1452
        %v2229 = vunpack.c.l.b16 %v1453
        %v2230 = vunpack.c.l.b16 %v1454
        %v2231 = vunpack.c.l.b16 %v1455
        %v2232 = vunpack.c.l.b16 %v1456
        %v2233 = vunpack.c.l.b16 %v1457
        %v2234 = vunpack.c.l.b16 %v1458
        %v2235 = vunpack.c.l.b16 %v1459
        %v2236 = vunpack.c.l.b16 %v1460
        %v2237 = vunpack.c.l.b16 %v1461
        %v2238 = vunpack.c.l.b16 %v1462
        %v2239 = vunpack.c.l.b16 %v1463
        %v2240 = vunpack.c.l.b16 %v1464
        %v2241 = vpack.c.b16 %v2226, %v2225
        %v2242 = vpack.c.b16 %v2228, %v2227
        %v2243 = vpack.c.b16 %v2230, %v2229
        %v2244 = vpack.c.b16 %v2232, %v2231
        %v2245 = vpack.c.b16 %v2234, %v2233
        %v2246 = vpack.c.b16 %v2236, %v2235
        %v2247 = vpack.c.b16 %v2238, %v2237
        %v2248 = vpack.c.b16 %v2240, %v2239
        %2257 = vmatprep.subr.bf16.mxu0 0
        %2258 = vmatpush1.bf16.msra.mxu0 %v2248
        %2259 = vmatprep.subr.bf16.mxu0 0
        %2260 = vmatpush1.bf16.msra.mxu0 %v2247
        %2261 = vmatprep.subr.bf16.mxu0 0
        %2262 = vmatpush1.bf16.msra.mxu0 %v2246
        %2263 = vmatprep.subr.bf16.mxu0 0
        %2264 = vmatpush1.bf16.msra.mxu0 %v2245
        %2265 = vmatprep.subr.bf16.mxu0 0
        %2266 = vmatpush1.bf16.msra.mxu0 %v2244
        %2267 = vmatprep.subr.bf16.mxu0 0
        %2268 = vmatpush1.bf16.msra.mxu0 %v2243
        %2269 = vmatprep.subr.bf16.mxu0 0
        %2270 = vmatpush1.bf16.msra.mxu0 %v2242
        %2271 = vmatprep.subr.bf16.mxu0 0
        %2272 = vmatpush1.bf16.msra.mxu0 %v2241
        %2273 = vmatprep.subr.bf16.mxu0 0
        %2274 = vmatpush2.bf16.msra.mxu0 0
        %2275 = vmatprep.subr.bf16.mxu0 0
        %2276 = vmatpush2.bf16.msra.mxu0 0
        %2277 = vmatprep.subr.bf16.mxu0 0
        %2278 = vmatpush2.bf16.msra.mxu0 0
        %2279 = vmatprep.subr.bf16.mxu0 0
        %2280 = vmatpush2.bf16.msra.mxu0 0
        %2281 = vmatprep.subr.bf16.mxu0 0
        %2282 = vmatpush2.bf16.msra.mxu0 0
        %2283 = vmatprep.subr.bf16.mxu0 0
        %2284 = vmatpush2.bf16.msra.mxu0 0
        %2285 = vmatprep.subr.bf16.mxu0 0
        %2286 = vmatpush2.bf16.msra.mxu0 0
        %2287 = vmatprep.subr.bf16.mxu0 0
        %2288 = vmatpush2.bf16.msra.mxu0 0
        %2289 = vmatprep.mubr.bf16.mxu0 0
        %2290 = vmatmul.mubr.bf16.gmra.mxu0 %v1328
        %v2291 = vpop.f32.mrf.mxu0
        %v2292 = vadd.f32 0.0, %v2291
        %v2293 = vpop.f32.mrf.mxu0
        %v2294 = vpop.f32.mrf.mxu0
        %v2295 = vpop.f32.mrf.mxu0
        %2296 = vdwg.mxu0
        %v2313 = vunpack.c.l.b16 %v1465
        %v2314 = vunpack.c.l.b16 %v1466
        %v2315 = vunpack.c.l.b16 %v1467
        %v2316 = vunpack.c.l.b16 %v1468
        %v2317 = vunpack.c.l.b16 %v1469
        %v2318 = vunpack.c.l.b16 %v1470
        %v2319 = vunpack.c.l.b16 %v1471
        %v2320 = vunpack.c.l.b16 %v1472
        %v2321 = vunpack.c.l.b16 %v1473
        %v2322 = vunpack.c.l.b16 %v1474
        %v2323 = vunpack.c.l.b16 %v1475
        %v2324 = vunpack.c.l.b16 %v1476
        %v2325 = vunpack.c.l.b16 %v1477
        %v2326 = vunpack.c.l.b16 %v1478
        %v2327 = vunpack.c.l.b16 %v1479
        %v2328 = vunpack.c.l.b16 %v1480
        %v2329 = vpack.c.b16 %v2314, %v2313
        %v2330 = vpack.c.b16 %v2316, %v2315
        %v2331 = vpack.c.b16 %v2318, %v2317
        %v2332 = vpack.c.b16 %v2320, %v2319
        %v2333 = vpack.c.b16 %v2322, %v2321
        %v2334 = vpack.c.b16 %v2324, %v2323
        %v2335 = vpack.c.b16 %v2326, %v2325
        %v2336 = vpack.c.b16 %v2328, %v2327
        %2345 = vmatprep.subr.bf16.mxu0 0
        %2346 = vmatpush1.bf16.msra.mxu0 %v2336
        %2347 = vmatprep.subr.bf16.mxu0 0
        %2348 = vmatpush1.bf16.msra.mxu0 %v2335
        %2349 = vmatprep.subr.bf16.mxu0 0
        %2350 = vmatpush1.bf16.msra.mxu0 %v2334
        %2351 = vmatprep.subr.bf16.mxu0 0
        %2352 = vmatpush1.bf16.msra.mxu0 %v2333
        %2353 = vmatprep.subr.bf16.mxu0 0
        %2354 = vmatpush1.bf16.msra.mxu0 %v2332
        %2355 = vmatprep.subr.bf16.mxu0 0
        %2356 = vmatpush1.bf16.msra.mxu0 %v2331
        %2357 = vmatprep.subr.bf16.mxu0 0
        %2358 = vmatpush1.bf16.msra.mxu0 %v2330
        %2359 = vmatprep.subr.bf16.mxu0 0
        %2360 = vmatpush1.bf16.msra.mxu0 %v2329
        %2361 = vmatprep.subr.bf16.mxu0 0
        %2362 = vmatpush2.bf16.msra.mxu0 0
        %2363 = vmatprep.subr.bf16.mxu0 0
        %2364 = vmatpush2.bf16.msra.mxu0 0
        %2365 = vmatprep.subr.bf16.mxu0 0
        %2366 = vmatpush2.bf16.msra.mxu0 0
        %2367 = vmatprep.subr.bf16.mxu0 0
        %2368 = vmatpush2.bf16.msra.mxu0 0
        %2369 = vmatprep.subr.bf16.mxu0 0
        %2370 = vmatpush2.bf16.msra.mxu0 0
        %2371 = vmatprep.subr.bf16.mxu0 0
        %2372 = vmatpush2.bf16.msra.mxu0 0
        %2373 = vmatprep.subr.bf16.mxu0 0
        %2374 = vmatpush2.bf16.msra.mxu0 0
        %2375 = vmatprep.subr.bf16.mxu0 0
        %2376 = vmatpush2.bf16.msra.mxu0 0
        %2377 = vmatprep.mubr.bf16.mxu0 0
        %2378 = vmatmul.mubr.bf16.gmra.mxu0 %v1329
        %v2379 = vpop.f32.mrf.mxu0
        %v2380 = vadd.f32 0.0, %v2379
        %v2381 = vpop.f32.mrf.mxu0
        %v2382 = vpop.f32.mrf.mxu0
        %v2383 = vpop.f32.mrf.mxu0
        %2384 = vdwg.mxu0
        %v2401 = vunpack.c.l.b16 %v1481
        %v2402 = vunpack.c.l.b16 %v1482
        %v2403 = vunpack.c.l.b16 %v1483
        %v2404 = vunpack.c.l.b16 %v1484
        %v2405 = vunpack.c.l.b16 %v1485
        %v2406 = vunpack.c.l.b16 %v1486
        %v2407 = vunpack.c.l.b16 %v1487
        %v2408 = vunpack.c.l.b16 %v1488
        %v2409 = vunpack.c.l.b16 %v1489
        %v2410 = vunpack.c.l.b16 %v1490
        %v2411 = vunpack.c.l.b16 %v1491
        %v2412 = vunpack.c.l.b16 %v1492
        %v2413 = vunpack.c.l.b16 %v1493
        %v2414 = vunpack.c.l.b16 %v1494
        %v2415 = vunpack.c.l.b16 %v1495
        %v2416 = vunpack.c.l.b16 %v1496
        %v2417 = vpack.c.b16 %v2402, %v2401
        %v2418 = vpack.c.b16 %v2404, %v2403
        %v2419 = vpack.c.b16 %v2406, %v2405
        %v2420 = vpack.c.b16 %v2408, %v2407
        %v2421 = vpack.c.b16 %v2410, %v2409
        %v2422 = vpack.c.b16 %v2412, %v2411
        %v2423 = vpack.c.b16 %v2414, %v2413
        %v2424 = vpack.c.b16 %v2416, %v2415
        %2433 = vmatprep.subr.bf16.mxu0 0
        %2434 = vmatpush1.bf16.msra.mxu0 %v2424
        %2435 = vmatprep.subr.bf16.mxu0 0
        %2436 = vmatpush1.bf16.msra.mxu0 %v2423
        %2437 = vmatprep.subr.bf16.mxu0 0
        %2438 = vmatpush1.bf16.msra.mxu0 %v2422
        %2439 = vmatprep.subr.bf16.mxu0 0
        %2440 = vmatpush1.bf16.msra.mxu0 %v2421
        %2441 = vmatprep.subr.bf16.mxu0 0
        %2442 = vmatpush1.bf16.msra.mxu0 %v2420
        %2443 = vmatprep.subr.bf16.mxu0 0
        %2444 = vmatpush1.bf16.msra.mxu0 %v2419
        %2445 = vmatprep.subr.bf16.mxu0 0
        %2446 = vmatpush1.bf16.msra.mxu0 %v2418
        %2447 = vmatprep.subr.bf16.mxu0 0
        %2448 = vmatpush1.bf16.msra.mxu0 %v2417
        %2449 = vmatprep.subr.bf16.mxu0 0
        %2450 = vmatpush2.bf16.msra.mxu0 0
        %2451 = vmatprep.subr.bf16.mxu0 0
        %2452 = vmatpush2.bf16.msra.mxu0 0
        %2453 = vmatprep.subr.bf16.mxu0 0
        %2454 = vmatpush2.bf16.msra.mxu0 0
        %2455 = vmatprep.subr.bf16.mxu0 0
        %2456 = vmatpush2.bf16.msra.mxu0 0
        %2457 = vmatprep.subr.bf16.mxu0 0
        %2458 = vmatpush2.bf16.msra.mxu0 0
        %2459 = vmatprep.subr.bf16.mxu0 0
        %2460 = vmatpush2.bf16.msra.mxu0 0
        %2461 = vmatprep.subr.bf16.mxu0 0
        %2462 = vmatpush2.bf16.msra.mxu0 0
        %2463 = vmatprep.subr.bf16.mxu0 0
        %2464 = vmatpush2.bf16.msra.mxu0 0
        %2465 = vmatprep.mubr.bf16.mxu0 0
        %2466 = vmatmul.mubr.bf16.gmra.mxu0 %v1330
        %v2467 = vpop.f32.mrf.mxu0
        %v2468 = vadd.f32 0.0, %v2467
        %v2469 = vpop.f32.mrf.mxu0
        %v2470 = vpop.f32.mrf.mxu0
        %v2471 = vpop.f32.mrf.mxu0
        %2472 = vdwg.mxu0
        %v2489 = vunpack.c.l.b16 %v1497
        %v2490 = vunpack.c.l.b16 %v1498
        %v2491 = vunpack.c.l.b16 %v1499
        %v2492 = vunpack.c.l.b16 %v1500
        %v2493 = vunpack.c.l.b16 %v1501
        %v2494 = vunpack.c.l.b16 %v1502
        %v2495 = vunpack.c.l.b16 %v1503
        %v2496 = vunpack.c.l.b16 %v1504
        %v2497 = vunpack.c.l.b16 %v1505
        %v2498 = vunpack.c.l.b16 %v1506
        %v2499 = vunpack.c.l.b16 %v1507
        %v2500 = vunpack.c.l.b16 %v1508
        %v2501 = vunpack.c.l.b16 %v1509
        %v2502 = vunpack.c.l.b16 %v1510
        %v2503 = vunpack.c.l.b16 %v1511
        %v2504 = vunpack.c.l.b16 %v1512
        %v2505 = vpack.c.b16 %v2490, %v2489
        %v2506 = vpack.c.b16 %v2492, %v2491
        %v2507 = vpack.c.b16 %v2494, %v2493
        %v2508 = vpack.c.b16 %v2496, %v2495
        %v2509 = vpack.c.b16 %v2498, %v2497
        %v2510 = vpack.c.b16 %v2500, %v2499
        %v2511 = vpack.c.b16 %v2502, %v2501
        %v2512 = vpack.c.b16 %v2504, %v2503
        %2521 = vmatprep.subr.bf16.mxu0 0
        %2522 = vmatpush1.bf16.msra.mxu0 %v2512
        %2523 = vmatprep.subr.bf16.mxu0 0
        %2524 = vmatpush1.bf16.msra.mxu0 %v2511
        %2525 = vmatprep.subr.bf16.mxu0 0
        %2526 = vmatpush1.bf16.msra.mxu0 %v2510
        %2527 = vmatprep.subr.bf16.mxu0 0
        %2528 = vmatpush1.bf16.msra.mxu0 %v2509
        %2529 = vmatprep.subr.bf16.mxu0 0
        %2530 = vmatpush1.bf16.msra.mxu0 %v2508
        %2531 = vmatprep.subr.bf16.mxu0 0
        %2532 = vmatpush1.bf16.msra.mxu0 %v2507
        %2533 = vmatprep.subr.bf16.mxu0 0
        %2534 = vmatpush1.bf16.msra.mxu0 %v2506
        %2535 = vmatprep.subr.bf16.mxu0 0
        %2536 = vmatpush1.bf16.msra.mxu0 %v2505
        %2537 = vmatprep.subr.bf16.mxu0 0
        %2538 = vmatpush2.bf16.msra.mxu0 0
        %2539 = vmatprep.subr.bf16.mxu0 0
        %2540 = vmatpush2.bf16.msra.mxu0 0
        %2541 = vmatprep.subr.bf16.mxu0 0
        %2542 = vmatpush2.bf16.msra.mxu0 0
        %2543 = vmatprep.subr.bf16.mxu0 0
        %2544 = vmatpush2.bf16.msra.mxu0 0
        %2545 = vmatprep.subr.bf16.mxu0 0
        %2546 = vmatpush2.bf16.msra.mxu0 0
        %2547 = vmatprep.subr.bf16.mxu0 0
        %2548 = vmatpush2.bf16.msra.mxu0 0
        %2549 = vmatprep.subr.bf16.mxu0 0
        %2550 = vmatpush2.bf16.msra.mxu0 0
        %2551 = vmatprep.subr.bf16.mxu0 0
        %2552 = vmatpush2.bf16.msra.mxu0 0
        %2553 = vmatprep.mubr.bf16.mxu0 0
        %2554 = vmatmul.mubr.bf16.gmra.mxu0 %v1331
        %v2555 = vpop.f32.mrf.mxu0
        %v2556 = vadd.f32 0.0, %v2555
        %v2557 = vpop.f32.mrf.mxu0
        %v2558 = vpop.f32.mrf.mxu0
        %v2559 = vpop.f32.mrf.mxu0
        %2560 = vdwg.mxu0
        %v2577 = vunpack.c.l.b16 %v1513
        %v2578 = vunpack.c.l.b16 %v1514
        %v2579 = vunpack.c.l.b16 %v1515
        %v2580 = vunpack.c.l.b16 %v1516
        %v2581 = vunpack.c.l.b16 %v1517
        %v2582 = vunpack.c.l.b16 %v1518
        %v2583 = vunpack.c.l.b16 %v1519
        %v2584 = vunpack.c.l.b16 %v1520
        %v2585 = vunpack.c.l.b16 %v1521
        %v2586 = vunpack.c.l.b16 %v1522
        %v2587 = vunpack.c.l.b16 %v1523
        %v2588 = vunpack.c.l.b16 %v1524
        %v2589 = vunpack.c.l.b16 %v1525
        %v2590 = vunpack.c.l.b16 %v1526
        %v2591 = vunpack.c.l.b16 %v1527
        %v2592 = vunpack.c.l.b16 %v1528
        %v2593 = vpack.c.b16 %v2578, %v2577
        %v2594 = vpack.c.b16 %v2580, %v2579
        %v2595 = vpack.c.b16 %v2582, %v2581
        %v2596 = vpack.c.b16 %v2584, %v2583
        %v2597 = vpack.c.b16 %v2586, %v2585
        %v2598 = vpack.c.b16 %v2588, %v2587
        %v2599 = vpack.c.b16 %v2590, %v2589
        %v2600 = vpack.c.b16 %v2592, %v2591
        %2609 = vmatprep.subr.bf16.mxu0 0
        %2610 = vmatpush1.bf16.msra.mxu0 %v2600
        %2611 = vmatprep.subr.bf16.mxu0 0
        %2612 = vmatpush1.bf16.msra.mxu0 %v2599
        %2613 = vmatprep.subr.bf16.mxu0 0
        %2614 = vmatpush1.bf16.msra.mxu0 %v2598
        %2615 = vmatprep.subr.bf16.mxu0 0
        %2616 = vmatpush1.bf16.msra.mxu0 %v2597
        %2617 = vmatprep.subr.bf16.mxu0 0
        %2618 = vmatpush1.bf16.msra.mxu0 %v2596
        %2619 = vmatprep.subr.bf16.mxu0 0
        %2620 = vmatpush1.bf16.msra.mxu0 %v2595
        %2621 = vmatprep.subr.bf16.mxu0 0
        %2622 = vmatpush1.bf16.msra.mxu0 %v2594
        %2623 = vmatprep.subr.bf16.mxu0 0
        %2624 = vmatpush1.bf16.msra.mxu0 %v2593
        %2625 = vmatprep.subr.bf16.mxu0 0
        %2626 = vmatpush2.bf16.msra.mxu0 0
        %2627 = vmatprep.subr.bf16.mxu0 0
        %2628 = vmatpush2.bf16.msra.mxu0 0
        %2629 = vmatprep.subr.bf16.mxu0 0
        %2630 = vmatpush2.bf16.msra.mxu0 0
        %2631 = vmatprep.subr.bf16.mxu0 0
        %2632 = vmatpush2.bf16.msra.mxu0 0
        %2633 = vmatprep.subr.bf16.mxu0 0
        %2634 = vmatpush2.bf16.msra.mxu0 0
        %2635 = vmatprep.subr.bf16.mxu0 0
        %2636 = vmatpush2.bf16.msra.mxu0 0
        %2637 = vmatprep.subr.bf16.mxu0 0
        %2638 = vmatpush2.bf16.msra.mxu0 0
        %2639 = vmatprep.subr.bf16.mxu0 0
        %2640 = vmatpush2.bf16.msra.mxu0 0
        %2641 = vmatprep.mubr.bf16.mxu0 0
        %2642 = vmatmul.mubr.bf16.gmra.mxu0 %v1332
        %v2643 = vpop.f32.mrf.mxu0
        %v2644 = vadd.f32 0.0, %v2643
        %v2645 = vpop.f32.mrf.mxu0
        %v2646 = vpop.f32.mrf.mxu0
        %v2647 = vpop.f32.mrf.mxu0
        %2648 = vdwg.mxu0
        %v2665 = vunpack.c.l.b16 %v1529
        %v2666 = vunpack.c.l.b16 %v1530
        %v2667 = vunpack.c.l.b16 %v1531
        %v2668 = vunpack.c.l.b16 %v1532
        %v2669 = vunpack.c.l.b16 %v1533
        %v2670 = vunpack.c.l.b16 %v1534
        %v2671 = vunpack.c.l.b16 %v1535
        %v2672 = vunpack.c.l.b16 %v1536
        %v2673 = vunpack.c.l.b16 %v1537
        %v2674 = vunpack.c.l.b16 %v1538
        %v2675 = vunpack.c.l.b16 %v1539
        %v2676 = vunpack.c.l.b16 %v1540
        %v2677 = vunpack.c.l.b16 %v1541
        %v2678 = vunpack.c.l.b16 %v1542
        %v2679 = vunpack.c.l.b16 %v1543
        %v2680 = vunpack.c.l.b16 %v1544
        %v2681 = vpack.c.b16 %v2666, %v2665
        %v2682 = vpack.c.b16 %v2668, %v2667
        %v2683 = vpack.c.b16 %v2670, %v2669
        %v2684 = vpack.c.b16 %v2672, %v2671
        %v2685 = vpack.c.b16 %v2674, %v2673
        %v2686 = vpack.c.b16 %v2676, %v2675
        %v2687 = vpack.c.b16 %v2678, %v2677
        %v2688 = vpack.c.b16 %v2680, %v2679
        %2697 = vmatprep.subr.bf16.mxu0 0
        %2698 = vmatpush1.bf16.msra.mxu0 %v2688
        %2699 = vmatprep.subr.bf16.mxu0 0
        %2700 = vmatpush1.bf16.msra.mxu0 %v2687
        %2701 = vmatprep.subr.bf16.mxu0 0
        %2702 = vmatpush1.bf16.msra.mxu0 %v2686
        %2703 = vmatprep.subr.bf16.mxu0 0
        %2704 = vmatpush1.bf16.msra.mxu0 %v2685
        %2705 = vmatprep.subr.bf16.mxu0 0
        %2706 = vmatpush1.bf16.msra.mxu0 %v2684
        %2707 = vmatprep.subr.bf16.mxu0 0
        %2708 = vmatpush1.bf16.msra.mxu0 %v2683
        %2709 = vmatprep.subr.bf16.mxu0 0
        %2710 = vmatpush1.bf16.msra.mxu0 %v2682
        %2711 = vmatprep.subr.bf16.mxu0 0
        %2712 = vmatpush1.bf16.msra.mxu0 %v2681
        %2713 = vmatprep.subr.bf16.mxu0 0
        %2714 = vmatpush2.bf16.msra.mxu0 0
        %2715 = vmatprep.subr.bf16.mxu0 0
        %2716 = vmatpush2.bf16.msra.mxu0 0
        %2717 = vmatprep.subr.bf16.mxu0 0
        %2718 = vmatpush2.bf16.msra.mxu0 0
        %2719 = vmatprep.subr.bf16.mxu0 0
        %2720 = vmatpush2.bf16.msra.mxu0 0
        %2721 = vmatprep.subr.bf16.mxu0 0
        %2722 = vmatpush2.bf16.msra.mxu0 0
        %2723 = vmatprep.subr.bf16.mxu0 0
        %2724 = vmatpush2.bf16.msra.mxu0 0
        %2725 = vmatprep.subr.bf16.mxu0 0
        %2726 = vmatpush2.bf16.msra.mxu0 0
        %2727 = vmatprep.subr.bf16.mxu0 0
        %2728 = vmatpush2.bf16.msra.mxu0 0
        %2729 = vmatprep.mubr.bf16.mxu0 0
        %2730 = vmatmul.mubr.bf16.gmra.mxu0 %v1333
        %v2731 = vpop.f32.mrf.mxu0
        %v2732 = vadd.f32 0.0, %v2731
        %v2733 = vpop.f32.mrf.mxu0
        %v2734 = vpop.f32.mrf.mxu0
        %v2735 = vpop.f32.mrf.mxu0
        %2736 = vdwg.mxu0
        %v2753 = vunpack.c.l.b16 %v1545
        %v2754 = vunpack.c.l.b16 %v1546
        %v2755 = vunpack.c.l.b16 %v1547
        %v2756 = vunpack.c.l.b16 %v1548
        %v2757 = vunpack.c.l.b16 %v1549
        %v2758 = vunpack.c.l.b16 %v1550
        %v2759 = vunpack.c.l.b16 %v1551
        %v2760 = vunpack.c.l.b16 %v1552
        %v2761 = vunpack.c.l.b16 %v1553
        %v2762 = vunpack.c.l.b16 %v1554
        %v2763 = vunpack.c.l.b16 %v1555
        %v2764 = vunpack.c.l.b16 %v1556
        %v2765 = vunpack.c.l.b16 %v1557
        %v2766 = vunpack.c.l.b16 %v1558
        %v2767 = vunpack.c.l.b16 %v1559
        %v2768 = vunpack.c.l.b16 %v1560
        %v2769 = vpack.c.b16 %v2754, %v2753
        %v2770 = vpack.c.b16 %v2756, %v2755
        %v2771 = vpack.c.b16 %v2758, %v2757
        %v2772 = vpack.c.b16 %v2760, %v2759
        %v2773 = vpack.c.b16 %v2762, %v2761
        %v2774 = vpack.c.b16 %v2764, %v2763
        %v2775 = vpack.c.b16 %v2766, %v2765
        %v2776 = vpack.c.b16 %v2768, %v2767
        %2785 = vmatprep.subr.bf16.mxu0 0
        %2786 = vmatpush1.bf16.msra.mxu0 %v2776
        %2787 = vmatprep.subr.bf16.mxu0 0
        %2788 = vmatpush1.bf16.msra.mxu0 %v2775
        %2789 = vmatprep.subr.bf16.mxu0 0
        %2790 = vmatpush1.bf16.msra.mxu0 %v2774
        %2791 = vmatprep.subr.bf16.mxu0 0
        %2792 = vmatpush1.bf16.msra.mxu0 %v2773
        %2793 = vmatprep.subr.bf16.mxu0 0
        %2794 = vmatpush1.bf16.msra.mxu0 %v2772
        %2795 = vmatprep.subr.bf16.mxu0 0
        %2796 = vmatpush1.bf16.msra.mxu0 %v2771
        %2797 = vmatprep.subr.bf16.mxu0 0
        %2798 = vmatpush1.bf16.msra.mxu0 %v2770
        %2799 = vmatprep.subr.bf16.mxu0 0
        %2800 = vmatpush1.bf16.msra.mxu0 %v2769
        %2801 = vmatprep.subr.bf16.mxu0 0
        %2802 = vmatpush2.bf16.msra.mxu0 0
        %2803 = vmatprep.subr.bf16.mxu0 0
        %2804 = vmatpush2.bf16.msra.mxu0 0
        %2805 = vmatprep.subr.bf16.mxu0 0
        %2806 = vmatpush2.bf16.msra.mxu0 0
        %2807 = vmatprep.subr.bf16.mxu0 0
        %2808 = vmatpush2.bf16.msra.mxu0 0
        %2809 = vmatprep.subr.bf16.mxu0 0
        %2810 = vmatpush2.bf16.msra.mxu0 0
        %2811 = vmatprep.subr.bf16.mxu0 0
        %2812 = vmatpush2.bf16.msra.mxu0 0
        %2813 = vmatprep.subr.bf16.mxu0 0
        %2814 = vmatpush2.bf16.msra.mxu0 0
        %2815 = vmatprep.subr.bf16.mxu0 0
        %2816 = vmatpush2.bf16.msra.mxu0 0
        %2817 = vmatprep.mubr.bf16.mxu0 0
        %2818 = vmatmul.mubr.bf16.gmra.mxu0 %v1334
        %v2819 = vpop.f32.mrf.mxu0
        %v2820 = vadd.f32 0.0, %v2819
        %v2821 = vpop.f32.mrf.mxu0
        %v2822 = vpop.f32.mrf.mxu0
        %v2823 = vpop.f32.mrf.mxu0
        %2824 = vdwg.mxu0
        %v2841 = vunpack.c.l.b16 %v1561
        %v2842 = vunpack.c.l.b16 %v1562
        %v2843 = vunpack.c.l.b16 %v1563
        %v2844 = vunpack.c.l.b16 %v1564
        %v2845 = vunpack.c.l.b16 %v1565
        %v2846 = vunpack.c.l.b16 %v1566
        %v2847 = vunpack.c.l.b16 %v1567
        %v2848 = vunpack.c.l.b16 %v1568
        %v2849 = vunpack.c.l.b16 %v1569
        %v2850 = vunpack.c.l.b16 %v1570
        %v2851 = vunpack.c.l.b16 %v1571
        %v2852 = vunpack.c.l.b16 %v1572
        %v2853 = vunpack.c.l.b16 %v1573
        %v2854 = vunpack.c.l.b16 %v1574
        %v2855 = vunpack.c.l.b16 %v1575
        %v2856 = vunpack.c.l.b16 %v1576
        %v2857 = vpack.c.b16 %v2842, %v2841
        %v2858 = vpack.c.b16 %v2844, %v2843
        %v2859 = vpack.c.b16 %v2846, %v2845
        %v2860 = vpack.c.b16 %v2848, %v2847
        %v2861 = vpack.c.b16 %v2850, %v2849
        %v2862 = vpack.c.b16 %v2852, %v2851
        %v2863 = vpack.c.b16 %v2854, %v2853
        %v2864 = vpack.c.b16 %v2856, %v2855
        %2873 = vmatprep.subr.bf16.mxu0 0
        %2874 = vmatpush1.bf16.msra.mxu0 %v2864
        %2875 = vmatprep.subr.bf16.mxu0 0
        %2876 = vmatpush1.bf16.msra.mxu0 %v2863
        %2877 = vmatprep.subr.bf16.mxu0 0
        %2878 = vmatpush1.bf16.msra.mxu0 %v2862
        %2879 = vmatprep.subr.bf16.mxu0 0
        %2880 = vmatpush1.bf16.msra.mxu0 %v2861
        %2881 = vmatprep.subr.bf16.mxu0 0
        %2882 = vmatpush1.bf16.msra.mxu0 %v2860
        %2883 = vmatprep.subr.bf16.mxu0 0
        %2884 = vmatpush1.bf16.msra.mxu0 %v2859
        %2885 = vmatprep.subr.bf16.mxu0 0
        %2886 = vmatpush1.bf16.msra.mxu0 %v2858
        %2887 = vmatprep.subr.bf16.mxu0 0
        %2888 = vmatpush1.bf16.msra.mxu0 %v2857
        %2889 = vmatprep.subr.bf16.mxu0 0
        %2890 = vmatpush2.bf16.msra.mxu0 0
        %2891 = vmatprep.subr.bf16.mxu0 0
        %2892 = vmatpush2.bf16.msra.mxu0 0
        %2893 = vmatprep.subr.bf16.mxu0 0
        %2894 = vmatpush2.bf16.msra.mxu0 0
        %2895 = vmatprep.subr.bf16.mxu0 0
        %2896 = vmatpush2.bf16.msra.mxu0 0
        %2897 = vmatprep.subr.bf16.mxu0 0
        %2898 = vmatpush2.bf16.msra.mxu0 0
        %2899 = vmatprep.subr.bf16.mxu0 0
        %2900 = vmatpush2.bf16.msra.mxu0 0
        %2901 = vmatprep.subr.bf16.mxu0 0
        %2902 = vmatpush2.bf16.msra.mxu0 0
        %2903 = vmatprep.subr.bf16.mxu0 0
        %2904 = vmatpush2.bf16.msra.mxu0 0
        %2905 = vmatprep.mubr.bf16.mxu0 0
        %2906 = vmatmul.mubr.bf16.gmra.mxu0 %v1335
        %v2907 = vpop.f32.mrf.mxu0
        %v2908 = vadd.f32 0.0, %v2907
        %v2909 = vpop.f32.mrf.mxu0
        %v2910 = vpop.f32.mrf.mxu0
        %v2911 = vpop.f32.mrf.mxu0
        %2912 = vdwg.mxu0
        %v2929 = vunpack.c.l.b16 %v1577
        %v2930 = vunpack.c.l.b16 %v1578
        %v2931 = vunpack.c.l.b16 %v1579
        %v2932 = vunpack.c.l.b16 %v1580
        %v2933 = vunpack.c.l.b16 %v1581
        %v2934 = vunpack.c.l.b16 %v1582
        %v2935 = vunpack.c.l.b16 %v1583
        %v2936 = vunpack.c.l.b16 %v1584
        %v2937 = vunpack.c.l.b16 %v1585
        %v2938 = vunpack.c.l.b16 %v1586
        %v2939 = vunpack.c.l.b16 %v1587
        %v2940 = vunpack.c.l.b16 %v1588
        %v2941 = vunpack.c.l.b16 %v1589
        %v2942 = vunpack.c.l.b16 %v1590
        %v2943 = vunpack.c.l.b16 %v1591
        %v2944 = vunpack.c.l.b16 %v1592
        %v2945 = vpack.c.b16 %v2930, %v2929
        %v2946 = vpack.c.b16 %v2932, %v2931
        %v2947 = vpack.c.b16 %v2934, %v2933
        %v2948 = vpack.c.b16 %v2936, %v2935
        %v2949 = vpack.c.b16 %v2938, %v2937
        %v2950 = vpack.c.b16 %v2940, %v2939
        %v2951 = vpack.c.b16 %v2942, %v2941
        %v2952 = vpack.c.b16 %v2944, %v2943
        %2961 = vmatprep.subr.bf16.mxu0 0
        %2962 = vmatpush1.bf16.msra.mxu0 %v2952
        %2963 = vmatprep.subr.bf16.mxu0 0
        %2964 = vmatpush1.bf16.msra.mxu0 %v2951
        %2965 = vmatprep.subr.bf16.mxu0 0
        %2966 = vmatpush1.bf16.msra.mxu0 %v2950
        %2967 = vmatprep.subr.bf16.mxu0 0
        %2968 = vmatpush1.bf16.msra.mxu0 %v2949
        %2969 = vmatprep.subr.bf16.mxu0 0
        %2970 = vmatpush1.bf16.msra.mxu0 %v2948
        %2971 = vmatprep.subr.bf16.mxu0 0
        %2972 = vmatpush1.bf16.msra.mxu0 %v2947
        %2973 = vmatprep.subr.bf16.mxu0 0
        %2974 = vmatpush1.bf16.msra.mxu0 %v2946
        %2975 = vmatprep.subr.bf16.mxu0 0
        %2976 = vmatpush1.bf16.msra.mxu0 %v2945
        %2977 = vmatprep.subr.bf16.mxu0 0
        %2978 = vmatpush2.bf16.msra.mxu0 0
        %2979 = vmatprep.subr.bf16.mxu0 0
        %2980 = vmatpush2.bf16.msra.mxu0 0
        %2981 = vmatprep.subr.bf16.mxu0 0
        %2982 = vmatpush2.bf16.msra.mxu0 0
        %2983 = vmatprep.subr.bf16.mxu0 0
        %2984 = vmatpush2.bf16.msra.mxu0 0
        %2985 = vmatprep.subr.bf16.mxu0 0
        %2986 = vmatpush2.bf16.msra.mxu0 0
        %2987 = vmatprep.subr.bf16.mxu0 0
        %2988 = vmatpush2.bf16.msra.mxu0 0
        %2989 = vmatprep.subr.bf16.mxu0 0
        %2990 = vmatpush2.bf16.msra.mxu0 0
        %2991 = vmatprep.subr.bf16.mxu0 0
        %2992 = vmatpush2.bf16.msra.mxu0 0
        %2993 = vmatprep.mubr.bf16.mxu0 0
        %2994 = vmatmul.mubr.bf16.gmra.mxu0 %v1336
        %v2995 = vpop.f32.mrf.mxu0
        %v2996 = vadd.f32 0.0, %v2995
        %v2997 = vpop.f32.mrf.mxu0
        %v2998 = vpop.f32.mrf.mxu0
        %v2999 = vpop.f32.mrf.mxu0
        %3000 = vdwg.mxu0
        %v3001 = vcombine.low %v1676, %v1852
        %v3003 = vunpack.c.l.s4 1983009808
        %v3004 = vunpack.c.0.s8 %v3003
        %v3005 = vlaneseq
        %v3006 = vshrl.u32 %v3005, 7
        %v3007 = vsub.s32 %v3004, %v3006
        %v3008 = vrot.slane %v3001, %v3007
        %v3009 = vcombine.low %v1764, %v1940
        %v3011 = vunpack.c.l.s4 1983009808
        %v3012 = vunpack.c.0.s8 %v3011
        %v3013 = vlaneseq
        %v3014 = vshrl.u32 %v3013, 7
        %v3015 = vsub.s32 %v3012, %v3014
        %v3016 = vrot.slane %v3009, %v3015
        %v3017 = vcombine.low %v2028, %v2204
        %v3019 = vunpack.c.l.s4 1983009808
        %v3020 = vunpack.c.0.s8 %v3019
        %v3021 = vlaneseq
        %v3022 = vshrl.u32 %v3021, 7
        %v3023 = vsub.s32 %v3020, %v3022
        %v3024 = vrot.slane %v3017, %v3023
        %v3025 = vcombine.low %v2116, %v2292
        %v3027 = vunpack.c.l.s4 1983009808
        %v3028 = vunpack.c.0.s8 %v3027
        %v3029 = vlaneseq
        %v3030 = vshrl.u32 %v3029, 7
        %v3031 = vsub.s32 %v3028, %v3030
        %v3032 = vrot.slane %v3025, %v3031
        %v3033 = vcombine.low %v3008, %v3016
        %v3035 = vunpack.c.l.s4 1934713408
        %v3036 = vunpack.c.0.s8 %v3035
        %v3037 = vlaneseq
        %v3038 = vshrl.u32 %v3037, 7
        %v3039 = vsub.s32 %v3036, %v3038
        %v3040 = vrot.slane %v3033, %v3039
        %v3041 = vcombine.low %v3024, %v3032
        %v3043 = vunpack.c.l.s4 1934713408
        %v3044 = vunpack.c.0.s8 %v3043
        %v3045 = vlaneseq
        %v3046 = vshrl.u32 %v3045, 7
        %v3047 = vsub.s32 %v3044, %v3046
        %v3048 = vrot.slane %v3041, %v3047
        %v3049 = vcombine.low %v3040, %v3048
        %v3050 = vcombine.high %v3040, %v3048
        %v3051 = vcombine.low %v2380, %v2556
        %v3053 = vunpack.c.l.s4 1983009808
        %v3054 = vunpack.c.0.s8 %v3053
        %v3055 = vlaneseq
        %v3056 = vshrl.u32 %v3055, 7
        %v3057 = vsub.s32 %v3054, %v3056
        %v3058 = vrot.slane %v3051, %v3057
        %v3059 = vcombine.low %v2468, %v2644
        %v3061 = vunpack.c.l.s4 1983009808
        %v3062 = vunpack.c.0.s8 %v3061
        %v3063 = vlaneseq
        %v3064 = vshrl.u32 %v3063, 7
        %v3065 = vsub.s32 %v3062, %v3064
        %v3066 = vrot.slane %v3059, %v3065
        %v3067 = vcombine.low %v2732, %v2908
        %v3069 = vunpack.c.l.s4 1983009808
        %v3070 = vunpack.c.0.s8 %v3069
        %v3071 = vlaneseq
        %v3072 = vshrl.u32 %v3071, 7
        %v3073 = vsub.s32 %v3070, %v3072
        %v3074 = vrot.slane %v3067, %v3073
        %v3075 = vcombine.low %v2820, %v2996
        %v3077 = vunpack.c.l.s4 1983009808
        %v3078 = vunpack.c.0.s8 %v3077
        %v3079 = vlaneseq
        %v3080 = vshrl.u32 %v3079, 7
        %v3081 = vsub.s32 %v3078, %v3080
        %v3082 = vrot.slane %v3075, %v3081
        %v3083 = vcombine.low %v3058, %v3066
        %v3085 = vunpack.c.l.s4 1934713408
        %v3086 = vunpack.c.0.s8 %v3085
        %v3087 = vlaneseq
        %v3088 = vshrl.u32 %v3087, 7
        %v3089 = vsub.s32 %v3086, %v3088
        %v3090 = vrot.slane %v3083, %v3089
        %v3091 = vcombine.low %v3074, %v3082
        %v3093 = vunpack.c.l.s4 1934713408
        %v3094 = vunpack.c.0.s8 %v3093
        %v3095 = vlaneseq
        %v3096 = vshrl.u32 %v3095, 7
        %v3097 = vsub.s32 %v3094, %v3096
        %v3098 = vrot.slane %v3091, %v3097
        %v3099 = vcombine.low %v3090, %v3098
        %v3100 = vcombine.high %v3090, %v3098
        %3103 = vrot.lane.b32.xlu0 %v3050, 64
        %v3104 = vpop.permute.xlu0 %3103
        %3105 = vrot.lane.b32.xlu0 %v3100, 64
        %v3106 = vpop.permute.xlu0 %3105
        %v3109 = vsel %vm863, %v3049, %v3104
        %v3110 = vsel %vm863, %v3099, %v3106
        %3127 = vrot.lane.b32.xlu0 %v1676, 64
        %v3128 = vpop.permute.xlu0 %3127
        %3129 = vrot.lane.b32.xlu0 %v1764, 64
        %v3130 = vpop.permute.xlu0 %3129
        %3131 = vrot.lane.b32.xlu0 %v1852, 64
        %v3132 = vpop.permute.xlu0 %3131
        %3133 = vrot.lane.b32.xlu0 %v1940, 64
        %v3134 = vpop.permute.xlu0 %3133
        %3135 = vrot.lane.b32.xlu0 %v2028, 64
        %v3136 = vpop.permute.xlu0 %3135
        %3137 = vrot.lane.b32.xlu0 %v2116, 64
        %v3138 = vpop.permute.xlu0 %3137
        %3139 = vrot.lane.b32.xlu0 %v2204, 64
        %v3140 = vpop.permute.xlu0 %3139
        %3141 = vrot.lane.b32.xlu0 %v2292, 64
        %v3142 = vpop.permute.xlu0 %3141
        %3143 = vrot.lane.b32.xlu0 %v2380, 64
        %v3144 = vpop.permute.xlu0 %3143
        %3145 = vrot.lane.b32.xlu0 %v2468, 64
        %v3146 = vpop.permute.xlu0 %3145
        %3147 = vrot.lane.b32.xlu0 %v2556, 64
        %v3148 = vpop.permute.xlu0 %3147
        %3149 = vrot.lane.b32.xlu0 %v2644, 64
        %v3150 = vpop.permute.xlu0 %3149
        %3151 = vrot.lane.b32.xlu0 %v2732, 64
        %v3152 = vpop.permute.xlu0 %3151
        %3153 = vrot.lane.b32.xlu0 %v2820, 64
        %v3154 = vpop.permute.xlu0 %3153
        %3155 = vrot.lane.b32.xlu0 %v2908, 64
        %v3156 = vpop.permute.xlu0 %3155
        %3157 = vrot.lane.b32.xlu0 %v2996, 64
        %v3158 = vpop.permute.xlu0 %3157
        %v3175 = vcombine.low %v3128, %v3132
        %v3177 = vunpack.c.l.s4 1983009808
        %v3178 = vunpack.c.0.s8 %v3177
        %v3179 = vlaneseq
        %v3180 = vshrl.u32 %v3179, 7
        %v3181 = vsub.s32 %v3178, %v3180
        %v3182 = vrot.slane %v3175, %v3181
        %v3183 = vcombine.low %v3130, %v3134
        %v3185 = vunpack.c.l.s4 1983009808
        %v3186 = vunpack.c.0.s8 %v3185
        %v3187 = vlaneseq
        %v3188 = vshrl.u32 %v3187, 7
        %v3189 = vsub.s32 %v3186, %v3188
        %v3190 = vrot.slane %v3183, %v3189
        %v3191 = vcombine.low %v3136, %v3140
        %v3193 = vunpack.c.l.s4 1983009808
        %v3194 = vunpack.c.0.s8 %v3193
        %v3195 = vlaneseq
        %v3196 = vshrl.u32 %v3195, 7
        %v3197 = vsub.s32 %v3194, %v3196
        %v3198 = vrot.slane %v3191, %v3197
        %v3199 = vcombine.low %v3138, %v3142
        %v3201 = vunpack.c.l.s4 1983009808
        %v3202 = vunpack.c.0.s8 %v3201
        %v3203 = vlaneseq
        %v3204 = vshrl.u32 %v3203, 7
        %v3205 = vsub.s32 %v3202, %v3204
        %v3206 = vrot.slane %v3199, %v3205
        %v3207 = vcombine.low %v3182, %v3190
        %v3209 = vunpack.c.l.s4 1934713408
        %v3210 = vunpack.c.0.s8 %v3209
        %v3211 = vlaneseq
        %v3212 = vshrl.u32 %v3211, 7
        %v3213 = vsub.s32 %v3210, %v3212
        %v3214 = vrot.slane %v3207, %v3213
        %v3215 = vcombine.low %v3198, %v3206
        %v3217 = vunpack.c.l.s4 1934713408
        %v3218 = vunpack.c.0.s8 %v3217
        %v3219 = vlaneseq
        %v3220 = vshrl.u32 %v3219, 7
        %v3221 = vsub.s32 %v3218, %v3220
        %v3222 = vrot.slane %v3215, %v3221
        %v3223 = vcombine.low %v3214, %v3222
        %v3224 = vcombine.high %v3214, %v3222
        %v3225 = vcombine.low %v3144, %v3148
        %v3227 = vunpack.c.l.s4 1983009808
        %v3228 = vunpack.c.0.s8 %v3227
        %v3229 = vlaneseq
        %v3230 = vshrl.u32 %v3229, 7
        %v3231 = vsub.s32 %v3228, %v3230
        %v3232 = vrot.slane %v3225, %v3231
        %v3233 = vcombine.low %v3146, %v3150
        %v3235 = vunpack.c.l.s4 1983009808
        %v3236 = vunpack.c.0.s8 %v3235
        %v3237 = vlaneseq
        %v3238 = vshrl.u32 %v3237, 7
        %v3239 = vsub.s32 %v3236, %v3238
        %v3240 = vrot.slane %v3233, %v3239
        %v3241 = vcombine.low %v3152, %v3156
        %v3243 = vunpack.c.l.s4 1983009808
        %v3244 = vunpack.c.0.s8 %v3243
        %v3245 = vlaneseq
        %v3246 = vshrl.u32 %v3245, 7
        %v3247 = vsub.s32 %v3244, %v3246
        %v3248 = vrot.slane %v3241, %v3247
        %v3249 = vcombine.low %v3154, %v3158
        %v3251 = vunpack.c.l.s4 1983009808
        %v3252 = vunpack.c.0.s8 %v3251
        %v3253 = vlaneseq
        %v3254 = vshrl.u32 %v3253, 7
        %v3255 = vsub.s32 %v3252, %v3254
        %v3256 = vrot.slane %v3249, %v3255
        %v3257 = vcombine.low %v3232, %v3240
        %v3259 = vunpack.c.l.s4 1934713408
        %v3260 = vunpack.c.0.s8 %v3259
        %v3261 = vlaneseq
        %v3262 = vshrl.u32 %v3261, 7
        %v3263 = vsub.s32 %v3260, %v3262
        %v3264 = vrot.slane %v3257, %v3263
        %v3265 = vcombine.low %v3248, %v3256
        %v3267 = vunpack.c.l.s4 1934713408
        %v3268 = vunpack.c.0.s8 %v3267
        %v3269 = vlaneseq
        %v3270 = vshrl.u32 %v3269, 7
        %v3271 = vsub.s32 %v3268, %v3270
        %v3272 = vrot.slane %v3265, %v3271
        %v3273 = vcombine.low %v3264, %v3272
        %v3274 = vcombine.high %v3264, %v3272
        %3277 = vrot.lane.b32.xlu0 %v3224, 64
        %v3278 = vpop.permute.xlu0 %3277
        %3279 = vrot.lane.b32.xlu0 %v3274, 64
        %v3280 = vpop.permute.xlu0 %3279
        %v3283 = vsel %vm863, %v3223, %v3278
        %v3284 = vsel %vm863, %v3273, %v3280
        %v3285 = vld [vmem:[%s4] sm:$0xff]
        %v3286 = vld [vmem:[%s4 + $0x8] sm:$0xff]
        %v3287 = vld [vmem:[%s4 + $0x10] sm:$0xff]
        %v3288 = vld [vmem:[%s4 + $0x18] sm:$0xff]
        %v3289 = vld [vmem:[%s4 + $0x20] sm:$0xff]
        %v3290 = vld [vmem:[%s4 + $0x28] sm:$0xff]
        %v3291 = vld [vmem:[%s4 + $0x30] sm:$0xff]
        %v3292 = vld [vmem:[%s4 + $0x38] sm:$0xff]
        %v3293 = vld [vmem:[%s595] sm:$0xff]
        %v3294 = vld [vmem:[%s595 + $0x8] sm:$0xff]
        %v3295 = vld [vmem:[%s595 + $0x10] sm:$0xff]
        %v3296 = vld [vmem:[%s595 + $0x18] sm:$0xff]
        %v3297 = vld [vmem:[%s595 + $0x20] sm:$0xff]
        %v3298 = vld [vmem:[%s595 + $0x28] sm:$0xff]
        %v3299 = vld [vmem:[%s595 + $0x30] sm:$0xff]
        %v3300 = vld [vmem:[%s595 + $0x38] sm:$0xff]
        %v3301 = vld [vmem:[%s595 + $0x40] sm:$0xff]
        %v3302 = vld [vmem:[%s595 + $0x48] sm:$0xff]
        %v3303 = vld [vmem:[%s595 + $0x50] sm:$0xff]
        %v3304 = vld [vmem:[%s595 + $0x58] sm:$0xff]
        %v3305 = vld [vmem:[%s595 + $0x60] sm:$0xff]
        %v3306 = vld [vmem:[%s595 + $0x68] sm:$0xff]
        %v3307 = vld [vmem:[%s595 + $0x70] sm:$0xff]
        %v3308 = vld [vmem:[%s595 + $0x78] sm:$0xff]
        %v3309 = vld [vmem:[%s603] sm:$0x1]
        %v3311 = vlaneseq
        %v3312 = vshrl.u32 %v3311, 7
        %v3313 = vsub.s32 0, %v3312
        %v3314 = vrot.slane %v3309, %v3313
        %3316 = vmatprep.subr.mxu0 0.0
        %3317 = vmatpush1.msra.mxu0 %v3308
        %3318 = vmatprep.subr.mxu0 0.0
        %3319 = vmatpush1.msra.mxu0 %v3307
        %3320 = vmatprep.subr.mxu0 0.0
        %3321 = vmatpush1.msra.mxu0 %v3306
        %3322 = vmatprep.subr.mxu0 0.0
        %3323 = vmatpush1.msra.mxu0 %v3305
        %3324 = vmatprep.subr.mxu0 0.0
        %3325 = vmatpush1.msra.mxu0 %v3304
        %3326 = vmatprep.subr.mxu0 0.0
        %3327 = vmatpush1.msra.mxu0 %v3303
        %3328 = vmatprep.subr.mxu0 0.0
        %3329 = vmatpush1.msra.mxu0 %v3302
        %3330 = vmatprep.subr.mxu0 0.0
        %3331 = vmatpush1.msra.mxu0 %v3301
        %3332 = vmatprep.subr.mxu0 0.0
        %3333 = vmatpush1.msra.mxu0 %v3300
        %3334 = vmatprep.subr.mxu0 0.0
        %3335 = vmatpush1.msra.mxu0 %v3299
        %3336 = vmatprep.subr.mxu0 0.0
        %3337 = vmatpush1.msra.mxu0 %v3298
        %3338 = vmatprep.subr.mxu0 0.0
        %3339 = vmatpush1.msra.mxu0 %v3297
        %3340 = vmatprep.subr.mxu0 0.0
        %3341 = vmatpush1.msra.mxu0 %v3296
        %3342 = vmatprep.subr.mxu0 0.0
        %3343 = vmatpush1.msra.mxu0 %v3295
        %3344 = vmatprep.subr.mxu0 0.0
        %3345 = vmatpush1.msra.mxu0 %v3294
        %3346 = vmatprep.subr.mxu0 0.0
        %3347 = vmatpush1.msra.mxu0 %v3293
        %3348 = vmatprep.subr.mxu0 0.0
        %3349 = vmatpush2.msra.mxu0 0.0
        %3350 = vmatprep.subr.mxu0 0.0
        %3351 = vmatpush2.msra.mxu0 0.0
        %3352 = vmatprep.subr.mxu0 0.0
        %3353 = vmatpush2.msra.mxu0 0.0
        %3354 = vmatprep.subr.mxu0 0.0
        %3355 = vmatpush2.msra.mxu0 0.0
        %3356 = vmatprep.subr.mxu0 0.0
        %3357 = vmatpush2.msra.mxu0 0.0
        %3358 = vmatprep.subr.mxu0 0.0
        %3359 = vmatpush2.msra.mxu0 0.0
        %3360 = vmatprep.subr.mxu0 0.0
        %3361 = vmatpush2.msra.mxu0 0.0
        %3362 = vmatprep.subr.mxu0 0.0
        %3363 = vmatpush2.msra.mxu0 0.0
        %3364 = vmatprep.subr.mxu0 0.0
        %3365 = vmatpush2.msra.mxu0 0.0
        %3366 = vmatprep.subr.mxu0 0.0
        %3367 = vmatpush2.msra.mxu0 0.0
        %3368 = vmatprep.subr.mxu0 0.0
        %3369 = vmatpush2.msra.mxu0 0.0
        %3370 = vmatprep.subr.mxu0 0.0
        %3371 = vmatpush2.msra.mxu0 0.0
        %3372 = vmatprep.subr.mxu0 0.0
        %3373 = vmatpush2.msra.mxu0 0.0
        %3374 = vmatprep.subr.mxu0 0.0
        %3375 = vmatpush2.msra.mxu0 0.0
        %3376 = vmatprep.subr.mxu0 0.0
        %3377 = vmatpush2.msra.mxu0 0.0
        %3378 = vmatprep.subr.mxu0 0.0
        %3379 = vmatpush2.msra.mxu0 0.0
        %3380 = vmatprep.mubr.f32.mxu0 0.0
        %3381 = vmatmul.mubr.f32.gmra.mxu0 %v851
        %v3382 = vpop.f32.mrf.mxu0
        %v3383 = vadd.f32 %v3314, %v3382
        %v3384 = vpop.f32.mrf.mxu0
        %3385 = vmatprep.mubr.f32.mxu0 0.0
        %3386 = vmatmul.mubr.f32.gmra.mxu0 %v852
        %v3387 = vpop.f32.mrf.mxu0
        %v3388 = vadd.f32 %v3314, %v3387
        %v3389 = vpop.f32.mrf.mxu0
        %3390 = vmatprep.mubr.f32.mxu0 0.0
        %3391 = vmatmul.mubr.f32.gmra.mxu0 %v853
        %v3392 = vpop.f32.mrf.mxu0
        %v3393 = vadd.f32 %v3314, %v3392
        %v3394 = vpop.f32.mrf.mxu0
        %3395 = vmatprep.mubr.f32.mxu0 0.0
        %3396 = vmatmul.mubr.f32.gmra.mxu0 %v854
        %v3397 = vpop.f32.mrf.mxu0
        %v3398 = vadd.f32 %v3314, %v3397
        %v3399 = vpop.f32.mrf.mxu0
        %3400 = vmatprep.mubr.f32.mxu0 0.0
        %3401 = vmatmul.mubr.f32.gmra.mxu0 %v855
        %v3402 = vpop.f32.mrf.mxu0
        %v3403 = vadd.f32 %v3314, %v3402
        %v3404 = vpop.f32.mrf.mxu0
        %3405 = vmatprep.mubr.f32.mxu0 0.0
        %3406 = vmatmul.mubr.f32.gmra.mxu0 %v856
        %v3407 = vpop.f32.mrf.mxu0
        %v3408 = vadd.f32 %v3314, %v3407
        %v3409 = vpop.f32.mrf.mxu0
        %3410 = vmatprep.mubr.f32.mxu0 0.0
        %3411 = vmatmul.mubr.f32.gmra.mxu0 %v857
        %v3412 = vpop.f32.mrf.mxu0
        %v3413 = vadd.f32 %v3314, %v3412
        %v3414 = vpop.f32.mrf.mxu0
        %3415 = vmatprep.mubr.f32.mxu0 0.0
        %3416 = vmatmul.mubr.f32.gmra.mxu0 %v858
        %v3417 = vpop.f32.mrf.mxu0
        %v3418 = vadd.f32 %v3314, %v3417
        %v3419 = vpop.f32.mrf.mxu0
        %3420 = vdwg.mxu0
        %vm3421 = vcmask 261120
        %v3423 = vsel %vm3421, %v3285, 0
        %v3426 = vsel %vm3421, %v3286, 0
        %v3429 = vsel %vm3421, %v3287, 0
        %v3432 = vsel %vm3421, %v3288, 0
        %v3435 = vsel %vm3421, %v3289, 0
        %v3438 = vsel %vm3421, %v3290, 0
        %v3441 = vsel %vm3421, %v3291, 0
        %v3444 = vsel %vm3421, %v3292, 0
        %3446 = vmatprep.subr.mxu0 0.0
        %3447 = vmatpush1.msra.mxu0 0.0
        %3448 = vmatprep.subr.mxu0 0.0
        %3449 = vmatpush1.msra.mxu0 0.0
        %3450 = vmatprep.subr.mxu0 0.0
        %3451 = vmatpush1.msra.mxu0 0.0
        %3452 = vmatprep.subr.mxu0 0.0
        %3453 = vmatpush1.msra.mxu0 0.0
        %3454 = vmatprep.subr.mxu0 0.0
        %3455 = vmatpush1.msra.mxu0 0.0
        %3456 = vmatprep.subr.mxu0 0.0
        %3457 = vmatpush1.msra.mxu0 0.0
        %3458 = vmatprep.subr.mxu0 0.0
        %3459 = vmatpush1.msra.mxu0 0.0
        %3460 = vmatprep.subr.mxu0 0.0
        %3461 = vmatpush1.msra.mxu0 0.0
        %3462 = vmatprep.subr.mxu0 0.0
        %3463 = vmatpush1.msra.mxu0 0.0
        %3464 = vmatprep.subr.mxu0 0.0
        %3465 = vmatpush1.msra.mxu0 0.0
        %3466 = vmatprep.subr.mxu0 0.0
        %3467 = vmatpush1.msra.mxu0 0.0
        %3468 = vmatprep.subr.mxu0 0.0
        %3469 = vmatpush1.msra.mxu0 0.0
        %3470 = vmatprep.subr.mxu0 0.0
        %3471 = vmatpush1.msra.mxu0 %v3284
        %3472 = vmatprep.subr.mxu0 0.0
        %3473 = vmatpush1.msra.mxu0 %v3283
        %3474 = vmatprep.subr.mxu0 0.0
        %3475 = vmatpush1.msra.mxu0 %v3110
        %3476 = vmatprep.subr.mxu0 0.0
        %3477 = vmatpush1.msra.mxu0 %v3109
        %3478 = vmatprep.subr.mxu0 0.0
        %3479 = vmatpush2.msra.mxu0 0.0
        %3480 = vmatprep.subr.mxu0 0.0
        %3481 = vmatpush2.msra.mxu0 0.0
        %3482 = vmatprep.subr.mxu0 0.0
        %3483 = vmatpush2.msra.mxu0 0.0
        %3484 = vmatprep.subr.mxu0 0.0
        %3485 = vmatpush2.msra.mxu0 0.0
        %3486 = vmatprep.subr.mxu0 0.0
        %3487 = vmatpush2.msra.mxu0 0.0
        %3488 = vmatprep.subr.mxu0 0.0
        %3489 = vmatpush2.msra.mxu0 0.0
        %3490 = vmatprep.subr.mxu0 0.0
        %3491 = vmatpush2.msra.mxu0 0.0
        %3492 = vmatprep.subr.mxu0 0.0
        %3493 = vmatpush2.msra.mxu0 0.0
        %3494 = vmatprep.subr.mxu0 0.0
        %3495 = vmatpush2.msra.mxu0 0.0
        %3496 = vmatprep.subr.mxu0 0.0
        %3497 = vmatpush2.msra.mxu0 0.0
        %3498 = vmatprep.subr.mxu0 0.0
        %3499 = vmatpush2.msra.mxu0 0.0
        %3500 = vmatprep.subr.mxu0 0.0
        %3501 = vmatpush2.msra.mxu0 0.0
        %3502 = vmatprep.subr.mxu0 0.0
        %3503 = vmatpush2.msra.mxu0 0.0
        %3504 = vmatprep.subr.mxu0 0.0
        %3505 = vmatpush2.msra.mxu0 0.0
        %3506 = vmatprep.subr.mxu0 0.0
        %3507 = vmatpush2.msra.mxu0 0.0
        %3508 = vmatprep.subr.mxu0 0.0
        %3509 = vmatpush2.msra.mxu0 0.0
        %3510 = vmatprep.mubr.f32.mxu0 0.0
        %3511 = vmatmul.mubr.f32.gmra.mxu0 %v3423
        %v3512 = vpop.f32.mrf.mxu0
        %v3513 = vadd.f32 %v3383, %v3512
        %v3514 = vpop.f32.mrf.mxu0
        %3515 = vmatprep.mubr.f32.mxu0 0.0
        %3516 = vmatmul.mubr.f32.gmra.mxu0 %v3426
        %v3517 = vpop.f32.mrf.mxu0
        %v3518 = vadd.f32 %v3388, %v3517
        %v3519 = vpop.f32.mrf.mxu0
        %3520 = vmatprep.mubr.f32.mxu0 0.0
        %3521 = vmatmul.mubr.f32.gmra.mxu0 %v3429
        %v3522 = vpop.f32.mrf.mxu0
        %v3523 = vadd.f32 %v3393, %v3522
        %v3524 = vpop.f32.mrf.mxu0
        %3525 = vmatprep.mubr.f32.mxu0 0.0
        %3526 = vmatmul.mubr.f32.gmra.mxu0 %v3432
        %v3527 = vpop.f32.mrf.mxu0
        %v3528 = vadd.f32 %v3398, %v3527
        %v3529 = vpop.f32.mrf.mxu0
        %3530 = vmatprep.mubr.f32.mxu0 0.0
        %3531 = vmatmul.mubr.f32.gmra.mxu0 %v3435
        %v3532 = vpop.f32.mrf.mxu0
        %v3533 = vadd.f32 %v3403, %v3532
        %v3534 = vpop.f32.mrf.mxu0
        %3535 = vmatprep.mubr.f32.mxu0 0.0
        %3536 = vmatmul.mubr.f32.gmra.mxu0 %v3438
        %v3537 = vpop.f32.mrf.mxu0
        %v3538 = vadd.f32 %v3408, %v3537
        %v3539 = vpop.f32.mrf.mxu0
        %3540 = vmatprep.mubr.f32.mxu0 0.0
        %3541 = vmatmul.mubr.f32.gmra.mxu0 %v3441
        %v3542 = vpop.f32.mrf.mxu0
        %v3543 = vadd.f32 %v3413, %v3542
        %v3544 = vpop.f32.mrf.mxu0
        %3545 = vmatprep.mubr.f32.mxu0 0.0
        %3546 = vmatmul.mubr.f32.gmra.mxu0 %v3444
        %v3547 = vpop.f32.mrf.mxu0
        %v3548 = vadd.f32 %v3418, %v3547
        %v3549 = vpop.f32.mrf.mxu0
        %3550 = vdwg.mxu0
        %v3551 = vadd.f32 %v3513, %v3518
        %v3552 = vadd.f32 %v3551, %v3523
        %v3553 = vadd.f32 %v3552, %v3528
        %v3554 = vadd.f32 %v3553, %v3533
        %v3555 = vadd.f32 %v3554, %v3538
        %v3556 = vadd.f32 %v3555, %v3543
        %v3557 = vadd.f32 %v3556, %v3548
        %v3558 = vrot.slane %v3557, 4
        %v3559 = vadd.f32 %v3557, %v3558
        %v3560 = vrot.slane %v3559, 2
        %v3561 = vadd.f32 %v3559, %v3560
        %v3562 = vrot.slane %v3561, 1
        %v3563 = vadd.f32 %v3561, %v3562
        %v3564 = vmul.f32 %v3513, %v3513
        %v3565 = vmul.f32 %v3518, %v3518
        %v3566 = vmul.f32 %v3523, %v3523
        %v3567 = vmul.f32 %v3528, %v3528
        %v3568 = vmul.f32 %v3533, %v3533
        %v3569 = vmul.f32 %v3538, %v3538
        %v3570 = vmul.f32 %v3543, %v3543
        %v3571 = vmul.f32 %v3548, %v3548
        %v3572 = vadd.f32 %v3564, %v3565
        %v3573 = vadd.f32 %v3572, %v3566
        %v3574 = vadd.f32 %v3573, %v3567
        %v3575 = vadd.f32 %v3574, %v3568
        %v3576 = vadd.f32 %v3575, %v3569
        %v3577 = vadd.f32 %v3576, %v3570
        %v3578 = vadd.f32 %v3577, %v3571
        %v3579 = vrot.slane %v3578, 4
        %v3580 = vadd.f32 %v3578, %v3579
        %v3581 = vrot.slane %v3580, 2
        %v3582 = vadd.f32 %v3580, %v3581
        %v3583 = vrot.slane %v3582, 1
        %v3584 = vadd.f32 %v3582, %v3583
        %3585 = vrot.lane.b32.xlu0 %v3563, 64
        %v3586 = vpop.permute.xlu0 %3585
        %v3587 = vadd.f32 %v3563, %v3586
        %3588 = vrot.lane.b32.xlu0 %v3584, 64
        %v3589 = vpop.permute.xlu0 %3588
        %v3590 = vadd.f32 %v3584, %v3589
        %v3591 = vmul.f32 %v3587, 0.0078125
        %v3592 = vmul.f32 %v3590, 0.0078125
        %v3593 = vmul.f32 %v3591, %v3591
        %v3594 = vsub.f32 %v3592, %v3593
        %v3595 = vld [vmem:[%s611] sm:$0x1]
        %v3596 = vadd.f32 %v3594, 1e-05
        %v3597 = vrsqrt.pop %v3596
        %v3598 = vmul.f32 %v3595, %v3597
        %v3599 = vlaneseq
        %v3600 = vshrl.u32 %v3599, 7
        %v3601 = vsub.s32 0, %v3600
        %v3602 = vrot.slane %v3591, %v3601
        %v3603 = vsub.f32 %v3513, %v3602
        %v3604 = vsub.f32 %v3518, %v3602
        %v3605 = vsub.f32 %v3523, %v3602
        %v3606 = vsub.f32 %v3528, %v3602
        %v3607 = vsub.f32 %v3533, %v3602
        %v3608 = vsub.f32 %v3538, %v3602
        %v3609 = vsub.f32 %v3543, %v3602
        %v3610 = vsub.f32 %v3548, %v3602
        %v3612 = vlaneseq
        %v3613 = vshrl.u32 %v3612, 7
        %v3614 = vsub.s32 0, %v3613
        %v3615 = vrot.slane %v3598, %v3614
        %v3617 = vmul.f32 %v3603, %v3615
        %v3618 = vmul.f32 %v3604, %v3615
        %v3619 = vmul.f32 %v3605, %v3615
        %v3620 = vmul.f32 %v3606, %v3615
        %v3621 = vmul.f32 %v3607, %v3615
        %v3622 = vmul.f32 %v3608, %v3615
        %v3623 = vmul.f32 %v3609, %v3615
        %v3624 = vmul.f32 %v3610, %v3615
        %v3625 = vld [vmem:[%s619] sm:$0x1]
        %v3627 = vlaneseq
        %v3628 = vshrl.u32 %v3627, 7
        %v3629 = vsub.s32 0, %v3628
        %v3630 = vrot.slane %v3625, %v3629
        %v3632 = vadd.f32 %v3617, %v3630
        %v3633 = vadd.f32 %v3618, %v3630
        %v3634 = vadd.f32 %v3619, %v3630
        %v3635 = vadd.f32 %v3620, %v3630
        %v3636 = vadd.f32 %v3621, %v3630
        %v3637 = vadd.f32 %v3622, %v3630
        %v3638 = vadd.f32 %v3623, %v3630
        %v3639 = vadd.f32 %v3624, %v3630
        %p3640 = scmp.lt.s32.totalorder %s37, 3
        // Predicated region
        $region125: #{simple_block1d_pallas.1} parent=75 // pred_check
          %p3641 = pneg %p3640
        $region126: #{simple_block1d_pallas.1} parent=75 // pred_check_branch
          %3643 = sbr.rel (%p3641) target = $region128
        $region127: #{simple_block1d_pallas.1} parent=75 // pred_region
          %v3644 = vmax.f32 %v3632, 0.0
          %v3645 = vmax.f32 %v3633, 0.0
          %v3646 = vmax.f32 %v3634, 0.0
          %v3647 = vmax.f32 %v3635, 0.0
          %v3648 = vmax.f32 %v3636, 0.0
          %v3649 = vmax.f32 %v3637, 0.0
          %v3650 = vmax.f32 %v3638, 0.0
          %v3651 = vmax.f32 %v3639, 0.0
          %3652 = vst [vmem:[#allocation2] sm:$0xff] %v3644
          %3653 = vst [vmem:[#allocation2 + $0x8] sm:$0xff] %v3645
          %3654 = vst [vmem:[#allocation2 + $0x10] sm:$0xff] %v3646
          %3655 = vst [vmem:[#allocation2 + $0x18] sm:$0xff] %v3647
          %3656 = vst [vmem:[#allocation2 + $0x20] sm:$0xff] %v3648
          %3657 = vst [vmem:[#allocation2 + $0x28] sm:$0xff] %v3649
          %3658 = vst [vmem:[#allocation2 + $0x30] sm:$0xff] %v3650
          %3659 = vst [vmem:[#allocation2 + $0x38] sm:$0xff] %v3651
        $region128: #{simple_block1d_pallas.1} parent=75 // pred_fallthru
          _
        %p3660 = scmp.eq.s32.totalorder %s37, 3
        // Predicated region
        $region129: #{simple_block1d_pallas.1} parent=75 // pred_check
          %p3661 = pneg %p3660
        $region130: #{simple_block1d_pallas.1} parent=75 // pred_check_branch
          %3663 = sbr.rel (%p3661) target = $region132
        $region131: #{simple_block1d_pallas.1} parent=75 // pred_region
          %v3664 = vld [vmem:[#allocation16] sm:$0xff]
          %v3665 = vld [vmem:[#allocation16 + $0x8] sm:$0xff]
          %v3666 = vld [vmem:[#allocation16 + $0x10] sm:$0xff]
          %v3667 = vld [vmem:[#allocation16 + $0x18] sm:$0xff]
          %v3668 = vld [vmem:[#allocation16 + $0x20] sm:$0xff]
          %v3669 = vld [vmem:[#allocation16 + $0x28] sm:$0xff]
          %v3670 = vld [vmem:[#allocation16 + $0x30] sm:$0xff]
          %v3671 = vld [vmem:[#allocation16 + $0x38] sm:$0xff]
          %v3672 = vld [vmem:[#allocation16 + $0x40] sm:$0xff]
          %v3673 = vld [vmem:[#allocation16 + $0x48] sm:$0xff]
          %v3674 = vld [vmem:[#allocation16 + $0x50] sm:$0xff]
          %v3675 = vld [vmem:[#allocation16 + $0x58] sm:$0xff]
          %v3676 = vld [vmem:[#allocation16 + $0x60] sm:$0xff]
          %v3677 = vld [vmem:[#allocation16 + $0x68] sm:$0xff]
          %v3678 = vld [vmem:[#allocation16 + $0x70] sm:$0xff]
          %v3679 = vld [vmem:[#allocation16 + $0x78] sm:$0xff]
          %v3680 = vld [vmem:[#allocation16 + $0x80] sm:$0xff]
          %v3681 = vld [vmem:[#allocation16 + $0x88] sm:$0xff]
          %v3682 = vld [vmem:[#allocation16 + $0x90] sm:$0xff]
          %v3683 = vld [vmem:[#allocation16 + $0x98] sm:$0xff]
          %v3684 = vld [vmem:[#allocation16 + $0xa0] sm:$0xff]
          %v3685 = vld [vmem:[#allocation16 + $0xa8] sm:$0xff]
          %v3686 = vld [vmem:[#allocation16 + $0xb0] sm:$0xff]
          %v3687 = vld [vmem:[#allocation16 + $0xb8] sm:$0xff]
          %v3688 = vld [vmem:[#allocation16 + $0xc0] sm:$0xff]
          %v3689 = vld [vmem:[#allocation16 + $0xc8] sm:$0xff]
          %v3690 = vld [vmem:[#allocation16 + $0xd0] sm:$0xff]
          %v3691 = vld [vmem:[#allocation16 + $0xd8] sm:$0xff]
          %v3692 = vld [vmem:[#allocation16 + $0xe0] sm:$0xff]
          %v3693 = vld [vmem:[#allocation16 + $0xe8] sm:$0xff]
          %v3694 = vld [vmem:[#allocation16 + $0xf0] sm:$0xff]
          %v3695 = vld [vmem:[#allocation16 + $0xf8] sm:$0xff]
          %v3696 = vld [vmem:[#allocation17] sm:$0x3]
          %v3698 = vlaneseq
          %v3699 = vshrl.u32 %v3698, 7
          %v3700 = vsub.s32 0, %v3699
          %v3701 = vrot.slane %v3696, %v3700
          %v3702 = vlaneseq
          %v3703 = vshrl.u32 %v3702, 7
          %v3704 = vsub.s32 1, %v3703
          %v3705 = vrot.slane %v3696, %v3704
          %3708 = vmatprep.subr.mxu0 %v3695
          %3709 = vmatpush1.msra.mxu0 %v3694
          %3710 = vmatprep.subr.mxu0 %v3693
          %3711 = vmatpush1.msra.mxu0 %v3692
          %3712 = vmatprep.subr.mxu0 %v3691
          %3713 = vmatpush1.msra.mxu0 %v3690
          %3714 = vmatprep.subr.mxu0 %v3689
          %3715 = vmatpush1.msra.mxu0 %v3688
          %3716 = vmatprep.subr.mxu0 %v3687
          %3717 = vmatpush1.msra.mxu0 %v3686
          %3718 = vmatprep.subr.mxu0 %v3685
          %3719 = vmatpush1.msra.mxu0 %v3684
          %3720 = vmatprep.subr.mxu0 %v3683
          %3721 = vmatpush1.msra.mxu0 %v3682
          %3722 = vmatprep.subr.mxu0 %v3681
          %3723 = vmatpush1.msra.mxu0 %v3680
          %3724 = vmatprep.subr.mxu0 %v3679
          %3725 = vmatpush1.msra.mxu0 %v3678
          %3726 = vmatprep.subr.mxu0 %v3677
          %3727 = vmatpush1.msra.mxu0 %v3676
          %3728 = vmatprep.subr.mxu0 %v3675
          %3729 = vmatpush1.msra.mxu0 %v3674
          %3730 = vmatprep.subr.mxu0 %v3673
          %3731 = vmatpush1.msra.mxu0 %v3672
          %3732 = vmatprep.subr.mxu0 %v3671
          %3733 = vmatpush1.msra.mxu0 %v3670
          %3734 = vmatprep.subr.mxu0 %v3669
          %3735 = vmatpush1.msra.mxu0 %v3668
          %3736 = vmatprep.subr.mxu0 %v3667
          %3737 = vmatpush1.msra.mxu0 %v3666
          %3738 = vmatprep.subr.mxu0 %v3665
          %3739 = vmatpush1.msra.mxu0 %v3664
          %3740 = vmatprep.subr.mxu0 0.0
          %3741 = vmatpush2.msra.mxu0 0.0
          %3742 = vmatprep.subr.mxu0 0.0
          %3743 = vmatpush2.msra.mxu0 0.0
          %3744 = vmatprep.subr.mxu0 0.0
          %3745 = vmatpush2.msra.mxu0 0.0
          %3746 = vmatprep.subr.mxu0 0.0
          %3747 = vmatpush2.msra.mxu0 0.0
          %3748 = vmatprep.subr.mxu0 0.0
          %3749 = vmatpush2.msra.mxu0 0.0
          %3750 = vmatprep.subr.mxu0 0.0
          %3751 = vmatpush2.msra.mxu0 0.0
          %3752 = vmatprep.subr.mxu0 0.0
          %3753 = vmatpush2.msra.mxu0 0.0
          %3754 = vmatprep.subr.mxu0 0.0
          %3755 = vmatpush2.msra.mxu0 0.0
          %3756 = vmatprep.subr.mxu0 0.0
          %3757 = vmatpush2.msra.mxu0 0.0
          %3758 = vmatprep.subr.mxu0 0.0
          %3759 = vmatpush2.msra.mxu0 0.0
          %3760 = vmatprep.subr.mxu0 0.0
          %3761 = vmatpush2.msra.mxu0 0.0
          %3762 = vmatprep.subr.mxu0 0.0
          %3763 = vmatpush2.msra.mxu0 0.0
          %3764 = vmatprep.subr.mxu0 0.0
          %3765 = vmatpush2.msra.mxu0 0.0
          %3766 = vmatprep.subr.mxu0 0.0
          %3767 = vmatpush2.msra.mxu0 0.0
          %3768 = vmatprep.subr.mxu0 0.0
          %3769 = vmatpush2.msra.mxu0 0.0
          %3770 = vmatprep.subr.mxu0 0.0
          %3771 = vmatpush2.msra.mxu0 0.0
          %3772 = vmatprep.mubr.f32.mxu0 0.0
          %3773 = vmatmul.mubr.f32.gmra.mxu0 %v3632
          %v3774 = vpop.f32.mrf.mxu0
          %v3775 = vadd.f32 %v3701, %v3774
          %v3776 = vpop.f32.mrf.mxu0
          %v3777 = vadd.f32 %v3705, %v3776
          %3778 = vmatprep.mubr.f32.mxu0 0.0
          %3779 = vmatmul.mubr.f32.gmra.mxu0 %v3633
          %v3780 = vpop.f32.mrf.mxu0
          %v3781 = vadd.f32 %v3701, %v3780
          %v3782 = vpop.f32.mrf.mxu0
          %v3783 = vadd.f32 %v3705, %v3782
          %3784 = vmatprep.mubr.f32.mxu0 0.0
          %3785 = vmatmul.mubr.f32.gmra.mxu0 %v3634
          %v3786 = vpop.f32.mrf.mxu0
          %v3787 = vadd.f32 %v3701, %v3786
          %v3788 = vpop.f32.mrf.mxu0
          %v3789 = vadd.f32 %v3705, %v3788
          %3790 = vmatprep.mubr.f32.mxu0 0.0
          %3791 = vmatmul.mubr.f32.gmra.mxu0 %v3635
          %v3792 = vpop.f32.mrf.mxu0
          %v3793 = vadd.f32 %v3701, %v3792
          %v3794 = vpop.f32.mrf.mxu0
          %v3795 = vadd.f32 %v3705, %v3794
          %3796 = vmatprep.mubr.f32.mxu0 0.0
          %3797 = vmatmul.mubr.f32.gmra.mxu0 %v3636
          %v3798 = vpop.f32.mrf.mxu0
          %v3799 = vadd.f32 %v3701, %v3798
          %v3800 = vpop.f32.mrf.mxu0
          %v3801 = vadd.f32 %v3705, %v3800
          %3802 = vmatprep.mubr.f32.mxu0 0.0
          %3803 = vmatmul.mubr.f32.gmra.mxu0 %v3637
          %v3804 = vpop.f32.mrf.mxu0
          %v3805 = vadd.f32 %v3701, %v3804
          %v3806 = vpop.f32.mrf.mxu0
          %v3807 = vadd.f32 %v3705, %v3806
          %3808 = vmatprep.mubr.f32.mxu0 0.0
          %3809 = vmatmul.mubr.f32.gmra.mxu0 %v3638
          %v3810 = vpop.f32.mrf.mxu0
          %v3811 = vadd.f32 %v3701, %v3810
          %v3812 = vpop.f32.mrf.mxu0
          %v3813 = vadd.f32 %v3705, %v3812
          %3814 = vmatprep.mubr.f32.mxu0 0.0
          %3815 = vmatmul.mubr.f32.gmra.mxu0 %v3639
          %v3816 = vpop.f32.mrf.mxu0
          %v3817 = vadd.f32 %v3701, %v3816
          %v3818 = vpop.f32.mrf.mxu0
          %v3819 = vadd.f32 %v3705, %v3818
          %3820 = vdwg.mxu0
          %v3821 = vmax.f32 %v3775, 0.0
          %v3822 = vmax.f32 %v3777, 0.0
          %v3823 = vmax.f32 %v3781, 0.0
          %v3824 = vmax.f32 %v3783, 0.0
          %v3825 = vmax.f32 %v3787, 0.0
          %v3826 = vmax.f32 %v3789, 0.0
          %v3827 = vmax.f32 %v3793, 0.0
          %v3828 = vmax.f32 %v3795, 0.0
          %v3829 = vmax.f32 %v3799, 0.0
          %v3830 = vmax.f32 %v3801, 0.0
          %v3831 = vmax.f32 %v3805, 0.0
          %v3832 = vmax.f32 %v3807, 0.0
          %v3833 = vmax.f32 %v3811, 0.0
          %v3834 = vmax.f32 %v3813, 0.0
          %v3835 = vmax.f32 %v3817, 0.0
          %v3836 = vmax.f32 %v3819, 0.0
          %v3837 = vld [vmem:[%s12] sm:$0xff]
          %v3838 = vld [vmem:[%s12 + $0x8] sm:$0xff]
          %v3839 = vld [vmem:[%s12 + $0x10] sm:$0xff]
          %v3840 = vld [vmem:[%s12 + $0x18] sm:$0xff]
          %v3841 = vld [vmem:[%s12 + $0x20] sm:$0xff]
          %v3842 = vld [vmem:[%s12 + $0x28] sm:$0xff]
          %v3843 = vld [vmem:[%s12 + $0x30] sm:$0xff]
          %v3844 = vld [vmem:[%s12 + $0x38] sm:$0xff]
          %v3845 = vld [vmem:[%s12 + $0x40] sm:$0xff]
          %v3846 = vld [vmem:[%s12 + $0x48] sm:$0xff]
          %v3847 = vld [vmem:[%s12 + $0x50] sm:$0xff]
          %v3848 = vld [vmem:[%s12 + $0x58] sm:$0xff]
          %v3849 = vld [vmem:[%s12 + $0x60] sm:$0xff]
          %v3850 = vld [vmem:[%s12 + $0x68] sm:$0xff]
          %v3851 = vld [vmem:[%s12 + $0x70] sm:$0xff]
          %v3852 = vld [vmem:[%s12 + $0x78] sm:$0xff]
          %v3853 = vld [vmem:[%s12 + $0x80] sm:$0xff]
          %v3854 = vld [vmem:[%s12 + $0x88] sm:$0xff]
          %v3855 = vld [vmem:[%s12 + $0x90] sm:$0xff]
          %v3856 = vld [vmem:[%s12 + $0x98] sm:$0xff]
          %v3857 = vld [vmem:[%s12 + $0xa0] sm:$0xff]
          %v3858 = vld [vmem:[%s12 + $0xa8] sm:$0xff]
          %v3859 = vld [vmem:[%s12 + $0xb0] sm:$0xff]
          %v3860 = vld [vmem:[%s12 + $0xb8] sm:$0xff]
          %v3861 = vld [vmem:[%s12 + $0xc0] sm:$0xff]
          %v3862 = vld [vmem:[%s12 + $0xc8] sm:$0xff]
          %v3863 = vld [vmem:[%s12 + $0xd0] sm:$0xff]
          %v3864 = vld [vmem:[%s12 + $0xd8] sm:$0xff]
          %v3865 = vld [vmem:[%s12 + $0xe0] sm:$0xff]
          %v3866 = vld [vmem:[%s12 + $0xe8] sm:$0xff]
          %v3867 = vld [vmem:[%s12 + $0xf0] sm:$0xff]
          %v3868 = vld [vmem:[%s12 + $0xf8] sm:$0xff]
          %v3869 = vld [vmem:[#allocation19] sm:$0x1]
          %v3871 = vlaneseq
          %v3872 = vshrl.u32 %v3871, 7
          %v3873 = vsub.s32 0, %v3872
          %v3874 = vrot.slane %v3869, %v3873
          %3876 = vmatprep.subr.mxu0 0.0
          %3877 = vmatpush1.msra.mxu0 %v3852
          %3878 = vmatprep.subr.mxu0 0.0
          %3879 = vmatpush1.msra.mxu0 %v3851
          %3880 = vmatprep.subr.mxu0 0.0
          %3881 = vmatpush1.msra.mxu0 %v3850
          %3882 = vmatprep.subr.mxu0 0.0
          %3883 = vmatpush1.msra.mxu0 %v3849
          %3884 = vmatprep.subr.mxu0 0.0
          %3885 = vmatpush1.msra.mxu0 %v3848
          %3886 = vmatprep.subr.mxu0 0.0
          %3887 = vmatpush1.msra.mxu0 %v3847
          %3888 = vmatprep.subr.mxu0 0.0
          %3889 = vmatpush1.msra.mxu0 %v3846
          %3890 = vmatprep.subr.mxu0 0.0
          %3891 = vmatpush1.msra.mxu0 %v3845
          %3892 = vmatprep.subr.mxu0 0.0
          %3893 = vmatpush1.msra.mxu0 %v3844
          %3894 = vmatprep.subr.mxu0 0.0
          %3895 = vmatpush1.msra.mxu0 %v3843
          %3896 = vmatprep.subr.mxu0 0.0
          %3897 = vmatpush1.msra.mxu0 %v3842
          %3898 = vmatprep.subr.mxu0 0.0
          %3899 = vmatpush1.msra.mxu0 %v3841
          %3900 = vmatprep.subr.mxu0 0.0
          %3901 = vmatpush1.msra.mxu0 %v3840
          %3902 = vmatprep.subr.mxu0 0.0
          %3903 = vmatpush1.msra.mxu0 %v3839
          %3904 = vmatprep.subr.mxu0 0.0
          %3905 = vmatpush1.msra.mxu0 %v3838
          %3906 = vmatprep.subr.mxu0 0.0
          %3907 = vmatpush1.msra.mxu0 %v3837
          %3908 = vmatprep.subr.mxu0 0.0
          %3909 = vmatpush2.msra.mxu0 %v3868
          %3910 = vmatprep.subr.mxu0 0.0
          %3911 = vmatpush2.msra.mxu0 %v3867
          %3912 = vmatprep.subr.mxu0 0.0
          %3913 = vmatpush2.msra.mxu0 %v3866
          %3914 = vmatprep.subr.mxu0 0.0
          %3915 = vmatpush2.msra.mxu0 %v3865
          %3916 = vmatprep.subr.mxu0 0.0
          %3917 = vmatpush2.msra.mxu0 %v3864
          %3918 = vmatprep.subr.mxu0 0.0
          %3919 = vmatpush2.msra.mxu0 %v3863
          %3920 = vmatprep.subr.mxu0 0.0
          %3921 = vmatpush2.msra.mxu0 %v3862
          %3922 = vmatprep.subr.mxu0 0.0
          %3923 = vmatpush2.msra.mxu0 %v3861
          %3924 = vmatprep.subr.mxu0 0.0
          %3925 = vmatpush2.msra.mxu0 %v3860
          %3926 = vmatprep.subr.mxu0 0.0
          %3927 = vmatpush2.msra.mxu0 %v3859
          %3928 = vmatprep.subr.mxu0 0.0
          %3929 = vmatpush2.msra.mxu0 %v3858
          %3930 = vmatprep.subr.mxu0 0.0
          %3931 = vmatpush2.msra.mxu0 %v3857
          %3932 = vmatprep.subr.mxu0 0.0
          %3933 = vmatpush2.msra.mxu0 %v3856
          %3934 = vmatprep.subr.mxu0 0.0
          %3935 = vmatpush2.msra.mxu0 %v3855
          %3936 = vmatprep.subr.mxu0 0.0
          %3937 = vmatpush2.msra.mxu0 %v3854
          %3938 = vmatprep.subr.mxu0 0.0
          %3939 = vmatpush2.msra.mxu0 %v3853
          %3940 = vmatprep.mubr.f32.mxu0 %v3822
          %3941 = vmatmul.mubr.f32.gmra.mxu0 %v3821
          %v3942 = vpop.f32.mrf.mxu0
          %v3943 = vadd.f32 %v3874, %v3942
          %v3944 = vpop.f32.mrf.mxu0
          %3945 = vmatprep.mubr.f32.mxu0 %v3824
          %3946 = vmatmul.mubr.f32.gmra.mxu0 %v3823
          %v3947 = vpop.f32.mrf.mxu0
          %v3948 = vadd.f32 %v3874, %v3947
          %v3949 = vpop.f32.mrf.mxu0
          %3950 = vmatprep.mubr.f32.mxu0 %v3826
          %3951 = vmatmul.mubr.f32.gmra.mxu0 %v3825
          %v3952 = vpop.f32.mrf.mxu0
          %v3953 = vadd.f32 %v3874, %v3952
          %v3954 = vpop.f32.mrf.mxu0
          %3955 = vmatprep.mubr.f32.mxu0 %v3828
          %3956 = vmatmul.mubr.f32.gmra.mxu0 %v3827
          %v3957 = vpop.f32.mrf.mxu0
          %v3958 = vadd.f32 %v3874, %v3957
          %v3959 = vpop.f32.mrf.mxu0
          %3960 = vmatprep.mubr.f32.mxu0 %v3830
          %3961 = vmatmul.mubr.f32.gmra.mxu0 %v3829
          %v3962 = vpop.f32.mrf.mxu0
          %v3963 = vadd.f32 %v3874, %v3962
          %v3964 = vpop.f32.mrf.mxu0
          %3965 = vmatprep.mubr.f32.mxu0 %v3832
          %3966 = vmatmul.mubr.f32.gmra.mxu0 %v3831
          %v3967 = vpop.f32.mrf.mxu0
          %v3968 = vadd.f32 %v3874, %v3967
          %v3969 = vpop.f32.mrf.mxu0
          %3970 = vmatprep.mubr.f32.mxu0 %v3834
          %3971 = vmatmul.mubr.f32.gmra.mxu0 %v3833
          %v3972 = vpop.f32.mrf.mxu0
          %v3973 = vadd.f32 %v3874, %v3972
          %v3974 = vpop.f32.mrf.mxu0
          %3975 = vmatprep.mubr.f32.mxu0 %v3836
          %3976 = vmatmul.mubr.f32.gmra.mxu0 %v3835
          %v3977 = vpop.f32.mrf.mxu0
          %v3978 = vadd.f32 %v3874, %v3977
          %v3979 = vpop.f32.mrf.mxu0
          %3980 = vdwg.mxu0
          %vm3981 = vcmask 15360
          %3982 = vst.msk [vmem:[%s14] sm:$0xff] %vm3981, %v3943
          %3983 = vst.msk [vmem:[%s14 + $0x8] sm:$0xff] %vm3981, %v3948
          %3984 = vst.msk [vmem:[%s14 + $0x10] sm:$0xff] %vm3981, %v3953
          %3985 = vst.msk [vmem:[%s14 + $0x18] sm:$0xff] %vm3981, %v3958
          %3986 = vst.msk [vmem:[%s14 + $0x20] sm:$0xff] %vm3981, %v3963
          %3987 = vst.msk [vmem:[%s14 + $0x28] sm:$0xff] %vm3981, %v3968
          %3988 = vst.msk [vmem:[%s14 + $0x30] sm:$0xff] %vm3981, %v3973
          %3989 = vst.msk [vmem:[%s14 + $0x38] sm:$0xff] %vm3981, %v3978
        $region132: #{simple_block1d_pallas.1} parent=75 // pred_fallthru
          _
        // Predicated region
        $region133: #{simple_block1d_pallas.1} parent=75 // pred_check
          %p3990 = pneg %p369
        $region134: #{simple_block1d_pallas.1} parent=75 // pred_check_branch
          %3992 = sbr.rel (%p3990) target = $region136
        $region135: #{simple_block1d_pallas.1} parent=75 // pred_region
          _
        $region136: #{simple_block1d_pallas.1} parent=75 // pred_fallthru
          _
        // Predicated region
        $region137: #{simple_block1d_pallas.1} parent=75 // pred_check
          %p3993 = pneg %p369
        $region138: #{simple_block1d_pallas.1} parent=75 // pred_check_branch
          %3995 = sbr.rel (%p3993) target = $region140
        $region139: #{simple_block1d_pallas.1} parent=75 // pred_region
          _
        $region140: #{simple_block1d_pallas.1} parent=75 // pred_fallthru
          _
      $region76: #{simple_block1d_pallas.1} parent=5 // pred_fallthru
        _
      %p3996 = scmp.le.s32.totalorder 2, %s32
      // Predicated region
      $region141: #{simple_block1d_pallas.1} parent=5 // pred_check
        %p3997 = pneg %p3996
      $region142: #{simple_block1d_pallas.1} parent=5 // pred_check_branch
        %3999 = sbr.rel (%p3997) target = $region144
      $region143: #{simple_block1d_pallas.1} parent=5 // pred_region
        %s4000 = ssub.s32 %s32, 2
      $region144: #{simple_block1d_pallas.1} parent=5 // pred_fallthru
        _
    $region6: #{simple_block1d_pallas.1} parent=1 // loop_footer
      %s36 = sadd.s32 1, %s32
    $region7: #{simple_block1d_pallas.1} parent=1 // loop_footer_branch
      %31 = sbr.rel target = $region3
    $region8: #{simple_block1d_pallas.1} parent=1 // loop_exit
      _
    %4001 = vsyncpa [#allocation4], 1
    %s4002 = scalar_lea.sflag [#allocation4], 1
    %4003 = vsyncpa %s4002, 1
    %4004 = vsyncpa [#allocation6], 1
    %4005 = vsyncpa [#allocation9], 1
    %s4006 = scalar_lea.sflag [#allocation9], 1
    %4007 = vsyncpa %s4006, 1
    %4008 = vsyncpa [#allocation12], 1
    %s4009 = scalar_lea.sflag [#allocation12], 1
    %4010 = vsyncpa %s4009, 1
    %4011 = vsyncpa [#allocation15], 1
    %s4012 = scalar_lea.sflag [#allocation15], 1
    %4013 = vsyncpa %s4012, 1
    %4014 = vsyncpa [#allocation18], 1

</llo_original>
